<compile_context>
chip_gen: v6e
topology: v6e:2x2x1
jax: 0.10.0
libtpu: 0.0.40
codegen_flags: <defaults>
</compile_context>

<pallas_src>
import functools

import jax
import jax.numpy as jnp
from jax import lax
from jax.experimental import pallas as pl
from jax.experimental.pallas import tpu as pltpu

_LN_EPS = 1e-5


# ------------------------------ helpers (in-kernel) ------------------------ #
def _layernorm(v, gamma, beta):
    m = jnp.mean(v, axis=-1, keepdims=True)
    c = v - m
    var = jnp.mean(c * c, axis=-1, keepdims=True)
    return c * lax.rsqrt(var + _LN_EPS) * gamma + beta


# ------------------------------ fused Pallas kernel ------------------------ #
def _make_fused_kernel(T, B, D, H, layer_N, recurrent_N, use_relu, use_fn):
    """Build a fused forward kernel for the given static configuration.

    Kernel ref order:
      inputs : x2d, hxs, [fn_g, fn_b], w1, b1, ln1_g, ln1_b,
               layer_N * (wh, bh, lnh_g, lnh_b),
               recurrent_N * (wih, whh, bih, bhh),
               rnn_ln_g, rnn_ln_b
      outputs: y2d (T*B, H), hT (B, H)
      scratch: gi (T*B, 3H) f32
    """
    act = (lambda v: jnp.maximum(v, 0.0)) if use_relu else jnp.tanh

    def kernel(*refs):
        idx = 0

        def nxt():
            nonlocal idx
            r = refs[idx]
            idx += 1
            return r

        x_ref = nxt()                       # (T*B, D)
        hxs_ref = nxt()                     # (R, B, H)
        if use_fn:
            fn_g, fn_b = nxt(), nxt()       # (1, D)
        w1, b1, g1, be1 = nxt(), nxt(), nxt(), nxt()
        mlp = [(nxt(), nxt(), nxt(), nxt()) for _ in range(layer_N)]
        gru = [(nxt(), nxt(), nxt(), nxt()) for _ in range(recurrent_N)]
        rg, rb = nxt(), nxt()               # final LN params (1, H)
        y_ref = nxt()                       # (T*B, H)
        hT_ref = nxt()                      # (B, H)
        gi_ref = nxt()                      # scratch (T*B, 3H) f32

        # ---------------- MLP trunk (fully vectorized over T*B rows) -------- #
        h = x_ref[...].astype(jnp.float32)
        if use_fn:
            h = _layernorm(h, fn_g[...], fn_b[...])
        h = _layernorm(
            act(jnp.dot(h, w1[...], preferred_element_type=jnp.float32) + b1[...]),
            g1[...], be1[...])
        for (w, b, g, be) in mlp:
            h = _layernorm(
                act(jnp.dot(h, w[...], preferred_element_type=jnp.float32) + b[...]),
                g[...], be[...])

        # ---------------- GRU layers ---------------------------------------- #
        for l, (wih, whh, bih, bhh) in enumerate(gru):
            if l == 0:
                seq = h                                    # (T*B, H) value
            else:
                seq = y_ref[...].astype(jnp.float32)       # previous layer's raw output

            # Hoisted input projection (one big matmul), b_ih folded in.
            gi_ref[...] = (jnp.dot(seq, wih[...],
                                   preferred_element_type=jnp.float32)
                           + bih[...])

            wh = whh[...]                                   # resident across steps
            bh_b = jnp.broadcast_to(bhh[...], (B, 3 * H))   # hoisted broadcast
            h_t = hxs_ref[l].astype(jnp.float32)            # (B, H)

            # Serial recurrence: only the hidden projection + gate math per step.
            # TODO(synk): for large T switch to lax.fori_loop(unroll=4) to bound
            # program size / vreg pressure.
            for t in range(T):
                gi_t = gi_ref[pl.ds(t * B, B), :]           # (B, 3H) static slice
                gh = jnp.dot(h_t, wh,
                             preferred_element_type=jnp.float32) + bh_b
                r = jax.nn.sigmoid(gi_t[:, :H] + gh[:, :H])
                z = jax.nn.sigmoid(gi_t[:, H:2 * H] + gh[:, H:2 * H])
                n = jnp.tanh(gi_t[:, 2 * H:] + r * gh[:, 2 * H:])
                h_t = n + z * (h_t - n)                     # == (1-z)*n + z*h
                y_ref[pl.ds(t * B, B), :] = h_t.astype(y_ref.dtype)

            if l == 0:
                # RNNLayer returns hxs[0, :, :] (first layer's final hidden).
                hT_ref[...] = h_t.astype(hT_ref.dtype)

        # ---------------- final LayerNorm (off the recurrent critical path) - #
        y_ref[...] = _layernorm(y_ref[...].astype(jnp.float32),
                                rg[...], rb[...]).astype(y_ref.dtype)

    return kernel


def fused_forward(x, hxs, model):
    T, B, D = x.shape
    H = model.hidden_size
    x2d = x.reshape(T * B, D)

    args = [x2d, hxs]
    if model.use_feature_normalization:
        args += [model.fn_gamma, model.fn_beta]
    args += [model.w1_t, model.b1, model.ln1_g, model.ln1_b]
    for i in range(model.layer_N):
        args += [model.wh_t[i], model.bh[i], model.lnh_g[i], model.lnh_b[i]]
    for l in range(model.recurrent_N):
        args += [model.gru_wih_t[l], model.gru_whh_t[l],
                 model.gru_bih[l], model.gru_bhh[l]]
    args += [model.rnn_ln_g, model.rnn_ln_b]

    kernel = _make_fused_kernel(T, B, D, H, model.layer_N, model.recurrent_N,
                                model.use_ReLU, model.use_feature_normalization)
    vm = pl.BlockSpec(memory_space=pltpu.MemorySpace.VMEM)
    y2d, hT = pl.pallas_call(
        kernel,
        out_shape=(jax.ShapeDtypeStruct((T * B, H), jnp.float32),
                   jax.ShapeDtypeStruct((B, H), jnp.float32)),
        in_specs=[vm] * len(args),
        out_specs=(vm, vm),
        scratch_shapes=[pltpu.VMEM((T * B, 3 * H), jnp.float32)],
    )(*args)
    return y2d.reshape(T, B, H), hT


# ------------------------------ parameter init ------------------------------ #
def orthogonal_init(key, shape, gain=1.0):
    rows, cols = shape
    n = max(rows, cols)
    a = jax.random.normal(key, (n, n), dtype=jnp.float32)
    q, r = jnp.linalg.qr(a)
    q = q * jnp.sign(jnp.diag(r))
    return gain * q[:rows, :cols]


def xavier_uniform_init(key, shape, gain=1.0):
    rows, cols = shape
    limit = gain * jnp.sqrt(6.0 / (rows + cols))
    return jax.random.uniform(key, shape, minval=-limit, maxval=limit,
                              dtype=jnp.float32)


# --------------------------------- RNNBase ---------------------------------- #
class RNNBasePallas:
    def __init__(self, key, inputs_dim, hidden_size, layer_N, recurrent_N,
                 use_orthogonal=True, use_ReLU=True,
                 use_feature_normalization=True, use_conv1d=False):
        # TODO(synk): CONVLayer (use_conv1d=True Conv1d stack) not implemented in Pallas.
        assert not use_conv1d
        self.inputs_dim = inputs_dim
        self.hidden_size = hidden_size
        self.layer_N = layer_N
        self.recurrent_N = recurrent_N
        self.use_ReLU = use_ReLU
        self.use_feature_normalization = use_feature_normalization

        init_fn = orthogonal_init if use_orthogonal else xavier_uniform_init
        gain = float(jnp.sqrt(2.0)) if use_ReLU else 5.0 / 3.0  # calculate_gain
        H = hidden_size
        keys = jax.random.split(key, 2 + 2 * recurrent_N)

        # feature_norm (LayerNorm(inputs_dim))
        self.fn_gamma = jnp.ones((1, inputs_dim), jnp.float32)
        self.fn_beta = jnp.zeros((1, inputs_dim), jnp.float32)

        # fc1: Linear(inputs_dim, H); weight stored pre-transposed (inputs_dim, H)
        self.w1_t = init_fn(keys[0], (H, inputs_dim), gain=gain).T
        self.b1 = jnp.zeros((1, H), jnp.float32)
        self.ln1_g = jnp.ones((1, H), jnp.float32)
        self.ln1_b = jnp.zeros((1, H), jnp.float32)

        # fc2: get_clones deep-copies ONE initialized block -> identical init weights
        wh_t = init_fn(keys[1], (H, H), gain=gain).T
        self.wh_t = [wh_t for _ in range(layer_N)]
        self.bh = [jnp.zeros((1, H), jnp.float32) for _ in range(layer_N)]
        self.lnh_g = [jnp.ones((1, H), jnp.float32) for _ in range(layer_N)]
        self.lnh_b = [jnp.zeros((1, H), jnp.float32) for _ in range(layer_N)]

        # GRU layers: PyTorch weight layout (3H, in) / (3H, H), gate order [r|z|n];
        # stored pre-transposed to (in, 3H) / (H, 3H). Biases zero-init.
        self.gru_wih_t, self.gru_whh_t, self.gru_bih, self.gru_bhh = [], [], [], []
        for l in range(recurrent_N):
            k_ih, k_hh = keys[2 + 2 * l], keys[3 + 2 * l]
            self.gru_wih_t.append(init_fn(k_ih, (3 * H, H), gain=1.0).T)
            self.gru_whh_t.append(init_fn(k_hh, (3 * H, H), gain=1.0).T)
            self.gru_bih.append(jnp.zeros((1, 3 * H), jnp.float32))
            self.gru_bhh.append(jnp.zeros((1, 3 * H), jnp.float32))

        # RNNLayer's LayerNorm(outputs_dim)
        self.rnn_ln_g = jnp.ones((1, H), jnp.float32)
        self.rnn_ln_b = jnp.zeros((1, H), jnp.float32)

    @functools.partial(jax.jit, static_argnums=(0,))
    def __call__(self, x, hxs):
        # x: (T, B, inputs_dim), hxs: (recurrent_N, B, hidden_size)
        return fused_forward(x, hxs, self)


# ------------------------------ pure-JAX reference --------------------------- #
def reference_forward(m, x, hxs):
    hp = lax.Precision.HIGHEST

    def ln(v, g, b):
        mu = v.mean(-1, keepdims=True)
        c = v - mu
        var = (c * c).mean(-1, keepdims=True)
        return c / jnp.sqrt(var + _LN_EPS) * g + b

    act = (lambda v: jnp.maximum(v, 0.0)) if m.use_ReLU else jnp.tanh
    T, B, _ = x.shape
    H = m.hidden_size
    h = x
    if m.use_feature_normalization:
        h = ln(h, m.fn_gamma, m.fn_beta)
    h = ln(act(jnp.dot(h, m.w1_t, precision=hp) + m.b1), m.ln1_g, m.ln1_b)
    for i in range(m.layer_N):
        h = ln(act(jnp.dot(h, m.wh_t[i], precision=hp) + m.bh[i]),
               m.lnh_g[i], m.lnh_b[i])
    inp = h
    h_finals = []
    for l in range(m.recurrent_N):
        hprev = hxs[l]
        outs = []
        for t in range(T):
            gi = jnp.dot(inp[t], m.gru_wih_t[l], precision=hp) + m.gru_bih[l]
            gh = jnp.dot(hprev, m.gru_whh_t[l], precision=hp) + m.gru_bhh[l]
            r = 1.0 / (1.0 + jnp.exp(-(gi[:, :H] + gh[:, :H])))
            z = 1.0 / (1.0 + jnp.exp(-(gi[:, H:2 * H] + gh[:, H:2 * H])))
            n = jnp.tanh(gi[:, 2 * H:] + r * gh[:, 2 * H:])
            hprev = (1.0 - z) * n + z * hprev
            outs.append(hprev)
        inp = jnp.stack(outs, 0)
        h_finals.append(hprev)
    return ln(inp, m.rnn_ln_g, m.rnn_ln_b), h_finals[0]


# ----------------------------------- main ------------------------------------ #
if __name__ == "__main__":
    key = jax.random.PRNGKey(0)
    k_param, k_x, k_h = jax.random.split(key, 3)

    # Small, lane-dense shapes: seq=8, batch=8, inputs_dim=128, hidden=128.
    T, B, D, H = 8, 8, 128, 128
    layer_N, recurrent_N = 1, 1

    model = RNNBasePallas(k_param, inputs_dim=D, hidden_size=H,
                          layer_N=layer_N, recurrent_N=recurrent_N,
                          use_orthogonal=True, use_ReLU=True,
                          use_feature_normalization=True, use_conv1d=False)

    x = jax.random.normal(k_x, (T, B, D), dtype=jnp.float32)
    hxs = jax.random.normal(k_h, (recurrent_N, B, H), dtype=jnp.float32)

    out_x, out_h = model(x, hxs)
    out_x = jax.block_until_ready(out_x)
    out_h = jax.block_until_ready(out_h)

    ref_x, ref_h = reference_forward(model, x, hxs)

    assert out_x.shape == (T, B, H)
    assert out_h.shape == (B, H)
    assert jnp.allclose(out_x, ref_x, atol=1e-4, rtol=1e-4)
    assert jnp.allclose(out_h, ref_h, atol=1e-4, rtol=1e-4)

    print("KERNEL_OK")
</pallas_src>

<mosaic_0001>
module attributes {stable_mosaic.version = 11 : i64} {
  func.func @kernel(%arg0: memref<64x128xf32, #tpu.memory_space<vmem>>, %arg1: memref<1x8x128xf32, #tpu.memory_space<vmem>>, %arg2: memref<1x128xf32, #tpu.memory_space<vmem>>, %arg3: memref<1x128xf32, #tpu.memory_space<vmem>>, %arg4: memref<128x128xf32, #tpu.memory_space<vmem>>, %arg5: memref<1x128xf32, #tpu.memory_space<vmem>>, %arg6: memref<1x128xf32, #tpu.memory_space<vmem>>, %arg7: memref<1x128xf32, #tpu.memory_space<vmem>>, %arg8: memref<128x128xf32, #tpu.memory_space<vmem>>, %arg9: memref<1x128xf32, #tpu.memory_space<vmem>>, %arg10: memref<1x128xf32, #tpu.memory_space<vmem>>, %arg11: memref<1x128xf32, #tpu.memory_space<vmem>>, %arg12: memref<128x384xf32, #tpu.memory_space<vmem>>, %arg13: memref<128x384xf32, #tpu.memory_space<vmem>>, %arg14: memref<1x384xf32, #tpu.memory_space<vmem>>, %arg15: memref<1x384xf32, #tpu.memory_space<vmem>>, %arg16: memref<1x128xf32, #tpu.memory_space<vmem>>, %arg17: memref<1x128xf32, #tpu.memory_space<vmem>>, %arg18: memref<64x128xf32, #tpu.memory_space<vmem>>, %arg19: memref<8x128xf32, #tpu.memory_space<vmem>>, %arg20: memref<64x384xf32, #tpu.memory_space<vmem>>) attributes {dimension_semantics = [], scalar_prefetch = 0 : i64, scratch_operands = 1 : i64, tpu.core_type = #tpu.core_type<tc>} {
    %c0 = arith.constant 0 : index
    %c0_0 = arith.constant 0 : index
    %0 = vector.load %arg0[%c0, %c0_0] : memref<64x128xf32, #tpu.memory_space<vmem>>, vector<64x128xf32>
    %c0_1 = arith.constant 0 : index
    %c0_2 = arith.constant 0 : index
    %1 = vector.load %arg2[%c0_1, %c0_2] : memref<1x128xf32, #tpu.memory_space<vmem>>, vector<1x128xf32>
    %c0_3 = arith.constant 0 : index
    %c0_4 = arith.constant 0 : index
    %2 = vector.load %arg3[%c0_3, %c0_4] : memref<1x128xf32, #tpu.memory_space<vmem>>, vector<1x128xf32>
    %cst = arith.constant dense<0.000000e+00> : vector<64xf32>
    %3 = vector.multi_reduction <add>, %0, %cst [1] : vector<64x128xf32> to vector<64xf32>
    %4 = vector.shape_cast %3 : vector<64xf32> to vector<64x1xf32>
    %cst_5 = arith.constant 1.280000e+02 : f32
    %5 = vector.broadcast %cst_5 : f32 to vector<64x1xf32>
    %6 = arith.divf %4, %5 : vector<64x1xf32>
    %7 = vector.broadcast %6 : vector<64x1xf32> to vector<64x128xf32>
    %8 = arith.subf %0, %7 : vector<64x128xf32>
    %9 = arith.mulf %8, %8 : vector<64x128xf32>
    %cst_6 = arith.constant dense<0.000000e+00> : vector<64xf32>
    %10 = vector.multi_reduction <add>, %9, %cst_6 [1] : vector<64x128xf32> to vector<64xf32>
    %11 = vector.shape_cast %10 : vector<64xf32> to vector<64x1xf32>
    %cst_7 = arith.constant 1.280000e+02 : f32
    %12 = vector.broadcast %cst_7 : f32 to vector<64x1xf32>
    %13 = arith.divf %11, %12 : vector<64x1xf32>
    %cst_8 = arith.constant 9.99999974E-6 : f32
    %14 = vector.broadcast %cst_8 : f32 to vector<64x1xf32>
    %15 = arith.addf %13, %14 : vector<64x1xf32>
    %16 = math.rsqrt %15 : vector<64x1xf32>
    %17 = vector.broadcast %16 : vector<64x1xf32> to vector<64x128xf32>
    %18 = arith.mulf %8, %17 : vector<64x128xf32>
    %19 = vector.broadcast %1 : vector<1x128xf32> to vector<64x128xf32>
    %20 = arith.mulf %18, %19 : vector<64x128xf32>
    %21 = vector.broadcast %2 : vector<1x128xf32> to vector<64x128xf32>
    %22 = arith.addf %20, %21 : vector<64x128xf32>
    %c0_9 = arith.constant 0 : index
    %c0_10 = arith.constant 0 : index
    %23 = vector.load %arg4[%c0_9, %c0_10] : memref<128x128xf32, #tpu.memory_space<vmem>>, vector<128x128xf32>
    %cst_11 = arith.constant dense<0.000000e+00> : vector<64x128xf32>
    %24 = tpu.matmul %22, %23, %cst_11 {dimension_numbers = #tpu.dot_dimension_numbers<[1], [0], [0], [1], [0, 0, 1, 1], [], []>} : vector<64x128xf32>, vector<128x128xf32>, vector<64x128xf32> -> vector<64x128xf32>
    %c0_12 = arith.constant 0 : index
    %c0_13 = arith.constant 0 : index
    %25 = vector.load %arg5[%c0_12, %c0_13] : memref<1x128xf32, #tpu.memory_space<vmem>>, vector<1x128xf32>
    %26 = vector.broadcast %25 : vector<1x128xf32> to vector<64x128xf32>
    %27 = arith.addf %24, %26 : vector<64x128xf32>
    %cst_14 = arith.constant 0.000000e+00 : f32
    %28 = vector.broadcast %cst_14 : f32 to vector<64x128xf32>
    %29 = arith.maximumf %27, %28 : vector<64x128xf32>
    %c0_15 = arith.constant 0 : index
    %c0_16 = arith.constant 0 : index
    %30 = vector.load %arg6[%c0_15, %c0_16] : memref<1x128xf32, #tpu.memory_space<vmem>>, vector<1x128xf32>
    %c0_17 = arith.constant 0 : index
    %c0_18 = arith.constant 0 : index
    %31 = vector.load %arg7[%c0_17, %c0_18] : memref<1x128xf32, #tpu.memory_space<vmem>>, vector<1x128xf32>
    %cst_19 = arith.constant dense<0.000000e+00> : vector<64xf32>
    %32 = vector.multi_reduction <add>, %29, %cst_19 [1] : vector<64x128xf32> to vector<64xf32>
    %33 = vector.shape_cast %32 : vector<64xf32> to vector<64x1xf32>
    %cst_20 = arith.constant 1.280000e+02 : f32
    %34 = vector.broadcast %cst_20 : f32 to vector<64x1xf32>
    %35 = arith.divf %33, %34 : vector<64x1xf32>
    %36 = vector.broadcast %35 : vector<64x1xf32> to vector<64x128xf32>
    %37 = arith.subf %29, %36 : vector<64x128xf32>
    %38 = arith.mulf %37, %37 : vector<64x128xf32>
    %cst_21 = arith.constant dense<0.000000e+00> : vector<64xf32>
    %39 = vector.multi_reduction <add>, %38, %cst_21 [1] : vector<64x128xf32> to vector<64xf32>
    %40 = vector.shape_cast %39 : vector<64xf32> to vector<64x1xf32>
    %cst_22 = arith.constant 1.280000e+02 : f32
    %41 = vector.broadcast %cst_22 : f32 to vector<64x1xf32>
    %42 = arith.divf %40, %41 : vector<64x1xf32>
    %cst_23 = arith.constant 9.99999974E-6 : f32
    %43 = vector.broadcast %cst_23 : f32 to vector<64x1xf32>
    %44 = arith.addf %42, %43 : vector<64x1xf32>
    %45 = math.rsqrt %44 : vector<64x1xf32>
    %46 = vector.broadcast %45 : vector<64x1xf32> to vector<64x128xf32>
    %47 = arith.mulf %37, %46 : vector<64x128xf32>
    %48 = vector.broadcast %30 : vector<1x128xf32> to vector<64x128xf32>
    %49 = arith.mulf %47, %48 : vector<64x128xf32>
    %50 = vector.broadcast %31 : vector<1x128xf32> to vector<64x128xf32>
    %51 = arith.addf %49, %50 : vector<64x128xf32>
    %c0_24 = arith.constant 0 : index
    %c0_25 = arith.constant 0 : index
    %52 = vector.load %arg8[%c0_24, %c0_25] : memref<128x128xf32, #tpu.memory_space<vmem>>, vector<128x128xf32>
    %cst_26 = arith.constant dense<0.000000e+00> : vector<64x128xf32>
    %53 = tpu.matmul %51, %52, %cst_26 {dimension_numbers = #tpu.dot_dimension_numbers<[1], [0], [0], [1], [0, 0, 1, 1], [], []>} : vector<64x128xf32>, vector<128x128xf32>, vector<64x128xf32> -> vector<64x128xf32>
    %c0_27 = arith.constant 0 : index
    %c0_28 = arith.constant 0 : index
    %54 = vector.load %arg9[%c0_27, %c0_28] : memref<1x128xf32, #tpu.memory_space<vmem>>, vector<1x128xf32>
    %55 = vector.broadcast %54 : vector<1x128xf32> to vector<64x128xf32>
    %56 = arith.addf %53, %55 : vector<64x128xf32>
    %cst_29 = arith.constant 0.000000e+00 : f32
    %57 = vector.broadcast %cst_29 : f32 to vector<64x128xf32>
    %58 = arith.maximumf %56, %57 : vector<64x128xf32>
    %c0_30 = arith.constant 0 : index
    %c0_31 = arith.constant 0 : index
    %59 = vector.load %arg10[%c0_30, %c0_31] : memref<1x128xf32, #tpu.memory_space<vmem>>, vector<1x128xf32>
    %c0_32 = arith.constant 0 : index
    %c0_33 = arith.constant 0 : index
    %60 = vector.load %arg11[%c0_32, %c0_33] : memref<1x128xf32, #tpu.memory_space<vmem>>, vector<1x128xf32>
    %cst_34 = arith.constant dense<0.000000e+00> : vector<64xf32>
    %61 = vector.multi_reduction <add>, %58, %cst_34 [1] : vector<64x128xf32> to vector<64xf32>
    %62 = vector.shape_cast %61 : vector<64xf32> to vector<64x1xf32>
    %cst_35 = arith.constant 1.280000e+02 : f32
    %63 = vector.broadcast %cst_35 : f32 to vector<64x1xf32>
    %64 = arith.divf %62, %63 : vector<64x1xf32>
    %65 = vector.broadcast %64 : vector<64x1xf32> to vector<64x128xf32>
    %66 = arith.subf %58, %65 : vector<64x128xf32>
    %67 = arith.mulf %66, %66 : vector<64x128xf32>
    %cst_36 = arith.constant dense<0.000000e+00> : vector<64xf32>
    %68 = vector.multi_reduction <add>, %67, %cst_36 [1] : vector<64x128xf32> to vector<64xf32>
    %69 = vector.shape_cast %68 : vector<64xf32> to vector<64x1xf32>
    %cst_37 = arith.constant 1.280000e+02 : f32
    %70 = vector.broadcast %cst_37 : f32 to vector<64x1xf32>
    %71 = arith.divf %69, %70 : vector<64x1xf32>
    %cst_38 = arith.constant 9.99999974E-6 : f32
    %72 = vector.broadcast %cst_38 : f32 to vector<64x1xf32>
    %73 = arith.addf %71, %72 : vector<64x1xf32>
    %74 = math.rsqrt %73 : vector<64x1xf32>
    %75 = vector.broadcast %74 : vector<64x1xf32> to vector<64x128xf32>
    %76 = arith.mulf %66, %75 : vector<64x128xf32>
    %77 = vector.broadcast %59 : vector<1x128xf32> to vector<64x128xf32>
    %78 = arith.mulf %76, %77 : vector<64x128xf32>
    %79 = vector.broadcast %60 : vector<1x128xf32> to vector<64x128xf32>
    %80 = arith.addf %78, %79 : vector<64x128xf32>
    %c0_39 = arith.constant 0 : index
    %c0_40 = arith.constant 0 : index
    %81 = vector.load %arg12[%c0_39, %c0_40] : memref<128x384xf32, #tpu.memory_space<vmem>>, vector<128x384xf32>
    %cst_41 = arith.constant dense<0.000000e+00> : vector<64x384xf32>
    %82 = tpu.matmul %80, %81, %cst_41 {dimension_numbers = #tpu.dot_dimension_numbers<[1], [0], [0], [1], [0, 0, 1, 1], [], []>} : vector<64x128xf32>, vector<128x384xf32>, vector<64x384xf32> -> vector<64x384xf32>
    %c0_42 = arith.constant 0 : index
    %c0_43 = arith.constant 0 : index
    %83 = vector.load %arg14[%c0_42, %c0_43] : memref<1x384xf32, #tpu.memory_space<vmem>>, vector<1x384xf32>
    %84 = vector.broadcast %83 : vector<1x384xf32> to vector<64x384xf32>
    %85 = arith.addf %82, %84 : vector<64x384xf32>
    %c0_44 = arith.constant 0 : index
    %c0_45 = arith.constant 0 : index
    %86 = vector.load %arg20[%c0_44, %c0_45] : memref<64x384xf32, #tpu.memory_space<vmem>>, vector<64x384xf32>
    tpu.vector_store %arg20[%c0_44, %c0_45], %85 {strides = array<i32>} : memref<64x384xf32, #tpu.memory_space<vmem>>, vector<64x384xf32>,
    %c0_46 = arith.constant 0 : index
    %c0_47 = arith.constant 0 : index
    %87 = vector.load %arg13[%c0_46, %c0_47] : memref<128x384xf32, #tpu.memory_space<vmem>>, vector<128x384xf32>
    %c0_48 = arith.constant 0 : index
    %c0_49 = arith.constant 0 : index
    %88 = vector.load %arg15[%c0_48, %c0_49] : memref<1x384xf32, #tpu.memory_space<vmem>>, vector<1x384xf32>
    %89 = vector.shape_cast %88 : vector<1x384xf32> to vector<1x384xf32>
    %90 = vector.broadcast %89 : vector<1x384xf32> to vector<8x384xf32>
    %c0_50 = arith.constant 0 : index
    %c0_51 = arith.constant 0 : index
    %c0_52 = arith.constant 0 : index
    %91 = vector.load %arg1[%c0_50, %c0_51, %c0_52] : memref<1x8x128xf32, #tpu.memory_space<vmem>>, vector<1x8x128xf32>
    %92 = vector.shape_cast %91 : vector<1x8x128xf32> to vector<8x128xf32>
    %c0_53 = arith.constant 0 : index
    %c0_54 = arith.constant 0 : index
    %93 = vector.load %arg20[%c0_53, %c0_54] : memref<64x384xf32, #tpu.memory_space<vmem>>, vector<8x384xf32>
    %cst_55 = arith.constant dense<0.000000e+00> : vector<8x384xf32>
    %94 = tpu.matmul %92, %87, %cst_55 {dimension_numbers = #tpu.dot_dimension_numbers<[1], [0], [0], [1], [0, 0, 1, 1], [], []>} : vector<8x128xf32>, vector<128x384xf32>, vector<8x384xf32> -> vector<8x384xf32>
    %95 = arith.addf %94, %90 : vector<8x384xf32>
    %96 = vector.extract_strided_slice %93 {offsets = [0, 0], sizes = [8, 128], strides = [1, 1]} : vector<8x384xf32> to vector<8x128xf32>
    %97 = vector.extract_strided_slice %95 {offsets = [0, 0], sizes = [8, 128], strides = [1, 1]} : vector<8x384xf32> to vector<8x128xf32>
    %98 = arith.addf %96, %97 : vector<8x128xf32>
    %99 = arith.negf %98 : vector<8x128xf32>
    %100 = math.exp %99 : vector<8x128xf32>
    %cst_56 = arith.constant 1.000000e+00 : f32
    %101 = vector.broadcast %cst_56 : f32 to vector<8x128xf32>
    %102 = arith.addf %101, %100 : vector<8x128xf32>
    %103 = arith.divf %101, %102 : vector<8x128xf32>
    %104 = vector.extract_strided_slice %93 {offsets = [0, 128], sizes = [8, 128], strides = [1, 1]} : vector<8x384xf32> to vector<8x128xf32>
    %105 = vector.extract_strided_slice %95 {offsets = [0, 128], sizes = [8, 128], strides = [1, 1]} : vector<8x384xf32> to vector<8x128xf32>
    %106 = arith.addf %104, %105 : vector<8x128xf32>
    %107 = arith.negf %106 : vector<8x128xf32>
    %108 = math.exp %107 : vector<8x128xf32>
    %cst_57 = arith.constant 1.000000e+00 : f32
    %109 = vector.broadcast %cst_57 : f32 to vector<8x128xf32>
    %110 = arith.addf %109, %108 : vector<8x128xf32>
    %111 = arith.divf %109, %110 : vector<8x128xf32>
    %112 = vector.extract_strided_slice %93 {offsets = [0, 256], sizes = [8, 128], strides = [1, 1]} : vector<8x384xf32> to vector<8x128xf32>
    %113 = vector.extract_strided_slice %95 {offsets = [0, 256], sizes = [8, 128], strides = [1, 1]} : vector<8x384xf32> to vector<8x128xf32>
    %114 = arith.mulf %103, %113 : vector<8x128xf32>
    %115 = arith.addf %112, %114 : vector<8x128xf32>
    %116 = math.tanh %115 : vector<8x128xf32>
    %117 = arith.subf %92, %116 : vector<8x128xf32>
    %118 = arith.mulf %111, %117 : vector<8x128xf32>
    %119 = arith.addf %116, %118 : vector<8x128xf32>
    %c0_58 = arith.constant 0 : index
    %c0_59 = arith.constant 0 : index
    %120 = vector.load %arg18[%c0_58, %c0_59] : memref<64x128xf32, #tpu.memory_space<vmem>>, vector<8x128xf32>
    tpu.vector_store %arg18[%c0_58, %c0_59], %119 {strides = array<i32>} : memref<64x128xf32, #tpu.memory_space<vmem>>, vector<8x128xf32>,
    %c8 = arith.constant 8 : index
    %c0_60 = arith.constant 0 : index
    %121 = vector.load %arg20[%c8, %c0_60] : memref<64x384xf32, #tpu.memory_space<vmem>>, vector<8x384xf32>
    %cst_61 = arith.constant dense<0.000000e+00> : vector<8x384xf32>
    %122 = tpu.matmul %119, %87, %cst_61 {dimension_numbers = #tpu.dot_dimension_numbers<[1], [0], [0], [1], [0, 0, 1, 1], [], []>} : vector<8x128xf32>, vector<128x384xf32>, vector<8x384xf32> -> vector<8x384xf32>
    %123 = arith.addf %122, %90 : vector<8x384xf32>
    %124 = vector.extract_strided_slice %121 {offsets = [0, 0], sizes = [8, 128], strides = [1, 1]} : vector<8x384xf32> to vector<8x128xf32>
    %125 = vector.extract_strided_slice %123 {offsets = [0, 0], sizes = [8, 128], strides = [1, 1]} : vector<8x384xf32> to vector<8x128xf32>
    %126 = arith.addf %124, %125 : vector<8x128xf32>
    %127 = arith.negf %126 : vector<8x128xf32>
    %128 = math.exp %127 : vector<8x128xf32>
    %cst_62 = arith.constant 1.000000e+00 : f32
    %129 = vector.broadcast %cst_62 : f32 to vector<8x128xf32>
    %130 = arith.addf %129, %128 : vector<8x128xf32>
    %131 = arith.divf %129, %130 : vector<8x128xf32>
    %132 = vector.extract_strided_slice %121 {offsets = [0, 128], sizes = [8, 128], strides = [1, 1]} : vector<8x384xf32> to vector<8x128xf32>
    %133 = vector.extract_strided_slice %123 {offsets = [0, 128], sizes = [8, 128], strides = [1, 1]} : vector<8x384xf32> to vector<8x128xf32>
    %134 = arith.addf %132, %133 : vector<8x128xf32>
    %135 = arith.negf %134 : vector<8x128xf32>
    %136 = math.exp %135 : vector<8x128xf32>
    %cst_63 = arith.constant 1.000000e+00 : f32
    %137 = vector.broadcast %cst_63 : f32 to vector<8x128xf32>
    %138 = arith.addf %137, %136 : vector<8x128xf32>
    %139 = arith.divf %137, %138 : vector<8x128xf32>
    %140 = vector.extract_strided_slice %121 {offsets = [0, 256], sizes = [8, 128], strides = [1, 1]} : vector<8x384xf32> to vector<8x128xf32>
    %141 = vector.extract_strided_slice %123 {offsets = [0, 256], sizes = [8, 128], strides = [1, 1]} : vector<8x384xf32> to vector<8x128xf32>
    %142 = arith.mulf %131, %141 : vector<8x128xf32>
    %143 = arith.addf %140, %142 : vector<8x128xf32>
    %144 = math.tanh %143 : vector<8x128xf32>
    %145 = arith.subf %119, %144 : vector<8x128xf32>
    %146 = arith.mulf %139, %145 : vector<8x128xf32>
    %147 = arith.addf %144, %146 : vector<8x128xf32>
    %c8_64 = arith.constant 8 : index
    %c0_65 = arith.constant 0 : index
    %148 = vector.load %arg18[%c8_64, %c0_65] : memref<64x128xf32, #tpu.memory_space<vmem>>, vector<8x128xf32>
    tpu.vector_store %arg18[%c8_64, %c0_65], %147 {strides = array<i32>} : memref<64x128xf32, #tpu.memory_space<vmem>>, vector<8x128xf32>,
    %c16 = arith.constant 16 : index
    %c0_66 = arith.constant 0 : index
    %149 = vector.load %arg20[%c16, %c0_66] : memref<64x384xf32, #tpu.memory_space<vmem>>, vector<8x384xf32>
    %cst_67 = arith.constant dense<0.000000e+00> : vector<8x384xf32>
    %150 = tpu.matmul %147, %87, %cst_67 {dimension_numbers = #tpu.dot_dimension_numbers<[1], [0], [0], [1], [0, 0, 1, 1], [], []>} : vector<8x128xf32>, vector<128x384xf32>, vector<8x384xf32> -> vector<8x384xf32>
    %151 = arith.addf %150, %90 : vector<8x384xf32>
    %152 = vector.extract_strided_slice %149 {offsets = [0, 0], sizes = [8, 128], strides = [1, 1]} : vector<8x384xf32> to vector<8x128xf32>
    %153 = vector.extract_strided_slice %151 {offsets = [0, 0], sizes = [8, 128], strides = [1, 1]} : vector<8x384xf32> to vector<8x128xf32>
    %154 = arith.addf %152, %153 : vector<8x128xf32>
    %155 = arith.negf %154 : vector<8x128xf32>
    %156 = math.exp %155 : vector<8x128xf32>
    %cst_68 = arith.constant 1.000000e+00 : f32
    %157 = vector.broadcast %cst_68 : f32 to vector<8x128xf32>
    %158 = arith.addf %157, %156 : vector<8x128xf32>
    %159 = arith.divf %157, %158 : vector<8x128xf32>
    %160 = vector.extract_strided_slice %149 {offsets = [0, 128], sizes = [8, 128], strides = [1, 1]} : vector<8x384xf32> to vector<8x128xf32>
    %161 = vector.extract_strided_slice %151 {offsets = [0, 128], sizes = [8, 128], strides = [1, 1]} : vector<8x384xf32> to vector<8x128xf32>
    %162 = arith.addf %160, %161 : vector<8x128xf32>
    %163 = arith.negf %162 : vector<8x128xf32>
    %164 = math.exp %163 : vector<8x128xf32>
    %cst_69 = arith.constant 1.000000e+00 : f32
    %165 = vector.broadcast %cst_69 : f32 to vector<8x128xf32>
    %166 = arith.addf %165, %164 : vector<8x128xf32>
    %167 = arith.divf %165, %166 : vector<8x128xf32>
    %168 = vector.extract_strided_slice %149 {offsets = [0, 256], sizes = [8, 128], strides = [1, 1]} : vector<8x384xf32> to vector<8x128xf32>
    %169 = vector.extract_strided_slice %151 {offsets = [0, 256], sizes = [8, 128], strides = [1, 1]} : vector<8x384xf32> to vector<8x128xf32>
    %170 = arith.mulf %159, %169 : vector<8x128xf32>
    %171 = arith.addf %168, %170 : vector<8x128xf32>
    %172 = math.tanh %171 : vector<8x128xf32>
    %173 = arith.subf %147, %172 : vector<8x128xf32>
    %174 = arith.mulf %167, %173 : vector<8x128xf32>
    %175 = arith.addf %172, %174 : vector<8x128xf32>
    %c16_70 = arith.constant 16 : index
    %c0_71 = arith.constant 0 : index
    %176 = vector.load %arg18[%c16_70, %c0_71] : memref<64x128xf32, #tpu.memory_space<vmem>>, vector<8x128xf32>
    tpu.vector_store %arg18[%c16_70, %c0_71], %175 {strides = array<i32>} : memref<64x128xf32, #tpu.memory_space<vmem>>, vector<8x128xf32>,
    %c24 = arith.constant 24 : index
    %c0_72 = arith.constant 0 : index
    %177 = vector.load %arg20[%c24, %c0_72] : memref<64x384xf32, #tpu.memory_space<vmem>>, vector<8x384xf32>
    %cst_73 = arith.constant dense<0.000000e+00> : vector<8x384xf32>
    %178 = tpu.matmul %175, %87, %cst_73 {dimension_numbers = #tpu.dot_dimension_numbers<[1], [0], [0], [1], [0, 0, 1, 1], [], []>} : vector<8x128xf32>, vector<128x384xf32>, vector<8x384xf32> -> vector<8x384xf32>
    %179 = arith.addf %178, %90 : vector<8x384xf32>
    %180 = vector.extract_strided_slice %177 {offsets = [0, 0], sizes = [8, 128], strides = [1, 1]} : vector<8x384xf32> to vector<8x128xf32>
    %181 = vector.extract_strided_slice %179 {offsets = [0, 0], sizes = [8, 128], strides = [1, 1]} : vector<8x384xf32> to vector<8x128xf32>
    %182 = arith.addf %180, %181 : vector<8x128xf32>
    %183 = arith.negf %182 : vector<8x128xf32>
    %184 = math.exp %183 : vector<8x128xf32>
    %cst_74 = arith.constant 1.000000e+00 : f32
    %185 = vector.broadcast %cst_74 : f32 to vector<8x128xf32>
    %186 = arith.addf %185, %184 : vector<8x128xf32>
    %187 = arith.divf %185, %186 : vector<8x128xf32>
    %188 = vector.extract_strided_slice %177 {offsets = [0, 128], sizes = [8, 128], strides = [1, 1]} : vector<8x384xf32> to vector<8x128xf32>
    %189 = vector.extract_strided_slice %179 {offsets = [0, 128], sizes = [8, 128], strides = [1, 1]} : vector<8x384xf32> to vector<8x128xf32>
    %190 = arith.addf %188, %189 : vector<8x128xf32>
    %191 = arith.negf %190 : vector<8x128xf32>
    %192 = math.exp %191 : vector<8x128xf32>
    %cst_75 = arith.constant 1.000000e+00 : f32
    %193 = vector.broadcast %cst_75 : f32 to vector<8x128xf32>
    %194 = arith.addf %193, %192 : vector<8x128xf32>
    %195 = arith.divf %193, %194 : vector<8x128xf32>
    %196 = vector.extract_strided_slice %177 {offsets = [0, 256], sizes = [8, 128], strides = [1, 1]} : vector<8x384xf32> to vector<8x128xf32>
    %197 = vector.extract_strided_slice %179 {offsets = [0, 256], sizes = [8, 128], strides = [1, 1]} : vector<8x384xf32> to vector<8x128xf32>
    %198 = arith.mulf %187, %197 : vector<8x128xf32>
    %199 = arith.addf %196, %198 : vector<8x128xf32>
    %200 = math.tanh %199 : vector<8x128xf32>
    %201 = arith.subf %175, %200 : vector<8x128xf32>
    %202 = arith.mulf %195, %201 : vector<8x128xf32>
    %203 = arith.addf %200, %202 : vector<8x128xf32>
    %c24_76 = arith.constant 24 : index
    %c0_77 = arith.constant 0 : index
    %204 = vector.load %arg18[%c24_76, %c0_77] : memref<64x128xf32, #tpu.memory_space<vmem>>, vector<8x128xf32>
    tpu.vector_store %arg18[%c24_76, %c0_77], %203 {strides = array<i32>} : memref<64x128xf32, #tpu.memory_space<vmem>>, vector<8x128xf32>,
    %c32 = arith.constant 32 : index
    %c0_78 = arith.constant 0 : index
    %205 = vector.load %arg20[%c32, %c0_78] : memref<64x384xf32, #tpu.memory_space<vmem>>, vector<8x384xf32>
    %cst_79 = arith.constant dense<0.000000e+00> : vector<8x384xf32>
    %206 = tpu.matmul %203, %87, %cst_79 {dimension_numbers = #tpu.dot_dimension_numbers<[1], [0], [0], [1], [0, 0, 1, 1], [], []>} : vector<8x128xf32>, vector<128x384xf32>, vector<8x384xf32> -> vector<8x384xf32>
    %207 = arith.addf %206, %90 : vector<8x384xf32>
    %208 = vector.extract_strided_slice %205 {offsets = [0, 0], sizes = [8, 128], strides = [1, 1]} : vector<8x384xf32> to vector<8x128xf32>
    %209 = vector.extract_strided_slice %207 {offsets = [0, 0], sizes = [8, 128], strides = [1, 1]} : vector<8x384xf32> to vector<8x128xf32>
    %210 = arith.addf %208, %209 : vector<8x128xf32>
    %211 = arith.negf %210 : vector<8x128xf32>
    %212 = math.exp %211 : vector<8x128xf32>
    %cst_80 = arith.constant 1.000000e+00 : f32
    %213 = vector.broadcast %cst_80 : f32 to vector<8x128xf32>
    %214 = arith.addf %213, %212 : vector<8x128xf32>
    %215 = arith.divf %213, %214 : vector<8x128xf32>
    %216 = vector.extract_strided_slice %205 {offsets = [0, 128], sizes = [8, 128], strides = [1, 1]} : vector<8x384xf32> to vector<8x128xf32>
    %217 = vector.extract_strided_slice %207 {offsets = [0, 128], sizes = [8, 128], strides = [1, 1]} : vector<8x384xf32> to vector<8x128xf32>
    %218 = arith.addf %216, %217 : vector<8x128xf32>
    %219 = arith.negf %218 : vector<8x128xf32>
    %220 = math.exp %219 : vector<8x128xf32>
    %cst_81 = arith.constant 1.000000e+00 : f32
    %221 = vector.broadcast %cst_81 : f32 to vector<8x128xf32>
    %222 = arith.addf %221, %220 : vector<8x128xf32>
    %223 = arith.divf %221, %222 : vector<8x128xf32>
    %224 = vector.extract_strided_slice %205 {offsets = [0, 256], sizes = [8, 128], strides = [1, 1]} : vector<8x384xf32> to vector<8x128xf32>
    %225 = vector.extract_strided_slice %207 {offsets = [0, 256], sizes = [8, 128], strides = [1, 1]} : vector<8x384xf32> to vector<8x128xf32>
    %226 = arith.mulf %215, %225 : vector<8x128xf32>
    %227 = arith.addf %224, %226 : vector<8x128xf32>
    %228 = math.tanh %227 : vector<8x128xf32>
    %229 = arith.subf %203, %228 : vector<8x128xf32>
    %230 = arith.mulf %223, %229 : vector<8x128xf32>
    %231 = arith.addf %228, %230 : vector<8x128xf32>
    %c32_82 = arith.constant 32 : index
    %c0_83 = arith.constant 0 : index
    %232 = vector.load %arg18[%c32_82, %c0_83] : memref<64x128xf32, #tpu.memory_space<vmem>>, vector<8x128xf32>
    tpu.vector_store %arg18[%c32_82, %c0_83], %231 {strides = array<i32>} : memref<64x128xf32, #tpu.memory_space<vmem>>, vector<8x128xf32>,
    %c40 = arith.constant 40 : index
    %c0_84 = arith.constant 0 : index
    %233 = vector.load %arg20[%c40, %c0_84] : memref<64x384xf32, #tpu.memory_space<vmem>>, vector<8x384xf32>
    %cst_85 = arith.constant dense<0.000000e+00> : vector<8x384xf32>
    %234 = tpu.matmul %231, %87, %cst_85 {dimension_numbers = #tpu.dot_dimension_numbers<[1], [0], [0], [1], [0, 0, 1, 1], [], []>} : vector<8x128xf32>, vector<128x384xf32>, vector<8x384xf32> -> vector<8x384xf32>
    %235 = arith.addf %234, %90 : vector<8x384xf32>
    %236 = vector.extract_strided_slice %233 {offsets = [0, 0], sizes = [8, 128], strides = [1, 1]} : vector<8x384xf32> to vector<8x128xf32>
    %237 = vector.extract_strided_slice %235 {offsets = [0, 0], sizes = [8, 128], strides = [1, 1]} : vector<8x384xf32> to vector<8x128xf32>
    %238 = arith.addf %236, %237 : vector<8x128xf32>
    %239 = arith.negf %238 : vector<8x128xf32>
    %240 = math.exp %239 : vector<8x128xf32>
    %cst_86 = arith.constant 1.000000e+00 : f32
    %241 = vector.broadcast %cst_86 : f32 to vector<8x128xf32>
    %242 = arith.addf %241, %240 : vector<8x128xf32>
    %243 = arith.divf %241, %242 : vector<8x128xf32>
    %244 = vector.extract_strided_slice %233 {offsets = [0, 128], sizes = [8, 128], strides = [1, 1]} : vector<8x384xf32> to vector<8x128xf32>
    %245 = vector.extract_strided_slice %235 {offsets = [0, 128], sizes = [8, 128], strides = [1, 1]} : vector<8x384xf32> to vector<8x128xf32>
    %246 = arith.addf %244, %245 : vector<8x128xf32>
    %247 = arith.negf %246 : vector<8x128xf32>
    %248 = math.exp %247 : vector<8x128xf32>
    %cst_87 = arith.constant 1.000000e+00 : f32
    %249 = vector.broadcast %cst_87 : f32 to vector<8x128xf32>
    %250 = arith.addf %249, %248 : vector<8x128xf32>
    %251 = arith.divf %249, %250 : vector<8x128xf32>
    %252 = vector.extract_strided_slice %233 {offsets = [0, 256], sizes = [8, 128], strides = [1, 1]} : vector<8x384xf32> to vector<8x128xf32>
    %253 = vector.extract_strided_slice %235 {offsets = [0, 256], sizes = [8, 128], strides = [1, 1]} : vector<8x384xf32> to vector<8x128xf32>
    %254 = arith.mulf %243, %253 : vector<8x128xf32>
    %255 = arith.addf %252, %254 : vector<8x128xf32>
    %256 = math.tanh %255 : vector<8x128xf32>
    %257 = arith.subf %231, %256 : vector<8x128xf32>
    %258 = arith.mulf %251, %257 : vector<8x128xf32>
    %259 = arith.addf %256, %258 : vector<8x128xf32>
    %c40_88 = arith.constant 40 : index
    %c0_89 = arith.constant 0 : index
    %260 = vector.load %arg18[%c40_88, %c0_89] : memref<64x128xf32, #tpu.memory_space<vmem>>, vector<8x128xf32>
    tpu.vector_store %arg18[%c40_88, %c0_89], %259 {strides = array<i32>} : memref<64x128xf32, #tpu.memory_space<vmem>>, vector<8x128xf32>,
    %c48 = arith.constant 48 : index
    %c0_90 = arith.constant 0 : index
    %261 = vector.load %arg20[%c48, %c0_90] : memref<64x384xf32, #tpu.memory_space<vmem>>, vector<8x384xf32>
    %cst_91 = arith.constant dense<0.000000e+00> : vector<8x384xf32>
    %262 = tpu.matmul %259, %87, %cst_91 {dimension_numbers = #tpu.dot_dimension_numbers<[1], [0], [0], [1], [0, 0, 1, 1], [], []>} : vector<8x128xf32>, vector<128x384xf32>, vector<8x384xf32> -> vector<8x384xf32>
    %263 = arith.addf %262, %90 : vector<8x384xf32>
    %264 = vector.extract_strided_slice %261 {offsets = [0, 0], sizes = [8, 128], strides = [1, 1]} : vector<8x384xf32> to vector<8x128xf32>
    %265 = vector.extract_strided_slice %263 {offsets = [0, 0], sizes = [8, 128], strides = [1, 1]} : vector<8x384xf32> to vector<8x128xf32>
    %266 = arith.addf %264, %265 : vector<8x128xf32>
    %267 = arith.negf %266 : vector<8x128xf32>
    %268 = math.exp %267 : vector<8x128xf32>
    %cst_92 = arith.constant 1.000000e+00 : f32
    %269 = vector.broadcast %cst_92 : f32 to vector<8x128xf32>
    %270 = arith.addf %269, %268 : vector<8x128xf32>
    %271 = arith.divf %269, %270 : vector<8x128xf32>
    %272 = vector.extract_strided_slice %261 {offsets = [0, 128], sizes = [8, 128], strides = [1, 1]} : vector<8x384xf32> to vector<8x128xf32>
    %273 = vector.extract_strided_slice %263 {offsets = [0, 128], sizes = [8, 128], strides = [1, 1]} : vector<8x384xf32> to vector<8x128xf32>
    %274 = arith.addf %272, %273 : vector<8x128xf32>
    %275 = arith.negf %274 : vector<8x128xf32>
    %276 = math.exp %275 : vector<8x128xf32>
    %cst_93 = arith.constant 1.000000e+00 : f32
    %277 = vector.broadcast %cst_93 : f32 to vector<8x128xf32>
    %278 = arith.addf %277, %276 : vector<8x128xf32>
    %279 = arith.divf %277, %278 : vector<8x128xf32>
    %280 = vector.extract_strided_slice %261 {offsets = [0, 256], sizes = [8, 128], strides = [1, 1]} : vector<8x384xf32> to vector<8x128xf32>
    %281 = vector.extract_strided_slice %263 {offsets = [0, 256], sizes = [8, 128], strides = [1, 1]} : vector<8x384xf32> to vector<8x128xf32>
    %282 = arith.mulf %271, %281 : vector<8x128xf32>
    %283 = arith.addf %280, %282 : vector<8x128xf32>
    %284 = math.tanh %283 : vector<8x128xf32>
    %285 = arith.subf %259, %284 : vector<8x128xf32>
    %286 = arith.mulf %279, %285 : vector<8x128xf32>
    %287 = arith.addf %284, %286 : vector<8x128xf32>
    %c48_94 = arith.constant 48 : index
    %c0_95 = arith.constant 0 : index
    %288 = vector.load %arg18[%c48_94, %c0_95] : memref<64x128xf32, #tpu.memory_space<vmem>>, vector<8x128xf32>
    tpu.vector_store %arg18[%c48_94, %c0_95], %287 {strides = array<i32>} : memref<64x128xf32, #tpu.memory_space<vmem>>, vector<8x128xf32>,
    %c56 = arith.constant 56 : index
    %c0_96 = arith.constant 0 : index
    %289 = vector.load %arg20[%c56, %c0_96] : memref<64x384xf32, #tpu.memory_space<vmem>>, vector<8x384xf32>
    %cst_97 = arith.constant dense<0.000000e+00> : vector<8x384xf32>
    %290 = tpu.matmul %287, %87, %cst_97 {dimension_numbers = #tpu.dot_dimension_numbers<[1], [0], [0], [1], [0, 0, 1, 1], [], []>} : vector<8x128xf32>, vector<128x384xf32>, vector<8x384xf32> -> vector<8x384xf32>
    %291 = arith.addf %290, %90 : vector<8x384xf32>
    %292 = vector.extract_strided_slice %289 {offsets = [0, 0], sizes = [8, 128], strides = [1, 1]} : vector<8x384xf32> to vector<8x128xf32>
    %293 = vector.extract_strided_slice %291 {offsets = [0, 0], sizes = [8, 128], strides = [1, 1]} : vector<8x384xf32> to vector<8x128xf32>
    %294 = arith.addf %292, %293 : vector<8x128xf32>
    %295 = arith.negf %294 : vector<8x128xf32>
    %296 = math.exp %295 : vector<8x128xf32>
    %cst_98 = arith.constant 1.000000e+00 : f32
    %297 = vector.broadcast %cst_98 : f32 to vector<8x128xf32>
    %298 = arith.addf %297, %296 : vector<8x128xf32>
    %299 = arith.divf %297, %298 : vector<8x128xf32>
    %300 = vector.extract_strided_slice %289 {offsets = [0, 128], sizes = [8, 128], strides = [1, 1]} : vector<8x384xf32> to vector<8x128xf32>
    %301 = vector.extract_strided_slice %291 {offsets = [0, 128], sizes = [8, 128], strides = [1, 1]} : vector<8x384xf32> to vector<8x128xf32>
    %302 = arith.addf %300, %301 : vector<8x128xf32>
    %303 = arith.negf %302 : vector<8x128xf32>
    %304 = math.exp %303 : vector<8x128xf32>
    %cst_99 = arith.constant 1.000000e+00 : f32
    %305 = vector.broadcast %cst_99 : f32 to vector<8x128xf32>
    %306 = arith.addf %305, %304 : vector<8x128xf32>
    %307 = arith.divf %305, %306 : vector<8x128xf32>
    %308 = vector.extract_strided_slice %289 {offsets = [0, 256], sizes = [8, 128], strides = [1, 1]} : vector<8x384xf32> to vector<8x128xf32>
    %309 = vector.extract_strided_slice %291 {offsets = [0, 256], sizes = [8, 128], strides = [1, 1]} : vector<8x384xf32> to vector<8x128xf32>
    %310 = arith.mulf %299, %309 : vector<8x128xf32>
    %311 = arith.addf %308, %310 : vector<8x128xf32>
    %312 = math.tanh %311 : vector<8x128xf32>
    %313 = arith.subf %287, %312 : vector<8x128xf32>
    %314 = arith.mulf %307, %313 : vector<8x128xf32>
    %315 = arith.addf %312, %314 : vector<8x128xf32>
    %c56_100 = arith.constant 56 : index
    %c0_101 = arith.constant 0 : index
    %316 = vector.load %arg18[%c56_100, %c0_101] : memref<64x128xf32, #tpu.memory_space<vmem>>, vector<8x128xf32>
    tpu.vector_store %arg18[%c56_100, %c0_101], %315 {strides = array<i32>} : memref<64x128xf32, #tpu.memory_space<vmem>>, vector<8x128xf32>,
    %c0_102 = arith.constant 0 : index
    %c0_103 = arith.constant 0 : index
    %317 = vector.load %arg19[%c0_102, %c0_103] : memref<8x128xf32, #tpu.memory_space<vmem>>, vector<8x128xf32>
    tpu.vector_store %arg19[%c0_102, %c0_103], %315 {strides = array<i32>} : memref<8x128xf32, #tpu.memory_space<vmem>>, vector<8x128xf32>,
    %c0_104 = arith.constant 0 : index
    %c0_105 = arith.constant 0 : index
    %318 = vector.load %arg18[%c0_104, %c0_105] : memref<64x128xf32, #tpu.memory_space<vmem>>, vector<64x128xf32>
    %c0_106 = arith.constant 0 : index
    %c0_107 = arith.constant 0 : index
    %319 = vector.load %arg16[%c0_106, %c0_107] : memref<1x128xf32, #tpu.memory_space<vmem>>, vector<1x128xf32>
    %c0_108 = arith.constant 0 : index
    %c0_109 = arith.constant 0 : index
    %320 = vector.load %arg17[%c0_108, %c0_109] : memref<1x128xf32, #tpu.memory_space<vmem>>, vector<1x128xf32>
    %cst_110 = arith.constant dense<0.000000e+00> : vector<64xf32>
    %321 = vector.multi_reduction <add>, %318, %cst_110 [1] : vector<64x128xf32> to vector<64xf32>
    %322 = vector.shape_cast %321 : vector<64xf32> to vector<64x1xf32>
    %cst_111 = arith.constant 1.280000e+02 : f32
    %323 = vector.broadcast %cst_111 : f32 to vector<64x1xf32>
    %324 = arith.divf %322, %323 : vector<64x1xf32>
    %325 = vector.broadcast %324 : vector<64x1xf32> to vector<64x128xf32>
    %326 = arith.subf %318, %325 : vector<64x128xf32>
    %327 = arith.mulf %326, %326 : vector<64x128xf32>
    %cst_112 = arith.constant dense<0.000000e+00> : vector<64xf32>
    %328 = vector.multi_reduction <add>, %327, %cst_112 [1] : vector<64x128xf32> to vector<64xf32>
    %329 = vector.shape_cast %328 : vector<64xf32> to vector<64x1xf32>
    %cst_113 = arith.constant 1.280000e+02 : f32
    %330 = vector.broadcast %cst_113 : f32 to vector<64x1xf32>
    %331 = arith.divf %329, %330 : vector<64x1xf32>
    %cst_114 = arith.constant 9.99999974E-6 : f32
    %332 = vector.broadcast %cst_114 : f32 to vector<64x1xf32>
    %333 = arith.addf %331, %332 : vector<64x1xf32>
    %334 = math.rsqrt %333 : vector<64x1xf32>
    %335 = vector.broadcast %334 : vector<64x1xf32> to vector<64x128xf32>
    %336 = arith.mulf %326, %335 : vector<64x128xf32>
    %337 = vector.broadcast %319 : vector<1x128xf32> to vector<64x128xf32>
    %338 = arith.mulf %336, %337 : vector<64x128xf32>
    %339 = vector.broadcast %320 : vector<1x128xf32> to vector<64x128xf32>
    %340 = arith.addf %338, %339 : vector<64x128xf32>
    %c0_115 = arith.constant 0 : index
    %c0_116 = arith.constant 0 : index
    %341 = vector.load %arg18[%c0_115, %c0_116] : memref<64x128xf32, #tpu.memory_space<vmem>>, vector<64x128xf32>
    tpu.vector_store %arg18[%c0_115, %c0_116], %340 {strides = array<i32>} : memref<64x128xf32, #tpu.memory_space<vmem>>, vector<64x128xf32>,
    return
  }
}

</mosaic_0001>

<llo_original>
// kernel: a_call__.1
$region0: #{a_call__.1}
  #allocation0 [shape = 'u32[]', space=smem, size = 0x4, offset = 0x4, fixed_abs, tag = 'smem constant byte address 0x4 - core index']
  #allocation1 [shape = 'u32[144,128]{1,0:T(1,128)}', space=vmem, size = 0x12000, scoped, tag = 'internal scratch']
  #allocation2 [shape = 'f32[64,384]{1,0:T(8,128)}', space=vmem, size = 0x18000, scoped, tag = 'scratch operand']
  %s0 = inlined_call_operand.hbm [shape: f32[64,128], index: 0, kind: input, shape index: {}]
  %s1 = inlined_call_operand.vmem [shape: f32[1,8,128], index: 1, kind: input, shape index: {}]
  %s2 = inlined_call_operand.vmem [shape: f32[1,128], index: 2, kind: input, shape index: {}, may-alias: {2,6,10,16}]
  %s3 = inlined_call_operand.vmem [shape: f32[1,128], index: 3, kind: input, shape index: {}, may-alias: {3,5,7,9,11,17}]
  %s4 = inlined_call_operand.hbm [shape: f32[128,128], index: 4, kind: input, shape index: {}]
  %s5 = inlined_call_operand.vmem [shape: f32[1,128], index: 5, kind: input, shape index: {}, may-alias: {3,5,7,9,11,17}]
  %s6 = inlined_call_operand.vmem [shape: f32[1,128], index: 6, kind: input, shape index: {}, may-alias: {2,6,10,16}]
  %s7 = inlined_call_operand.vmem [shape: f32[1,128], index: 7, kind: input, shape index: {}, may-alias: {3,5,7,9,11,17}]
  %s8 = inlined_call_operand.hbm [shape: f32[128,128], index: 8, kind: input, shape index: {}]
  %s9 = inlined_call_operand.vmem [shape: f32[1,128], index: 9, kind: input, shape index: {}, may-alias: {3,5,7,9,11,17}]
  %s10 = inlined_call_operand.vmem [shape: f32[1,128], index: 10, kind: input, shape index: {}, may-alias: {2,6,10,16}]
  %s11 = inlined_call_operand.vmem [shape: f32[1,128], index: 11, kind: input, shape index: {}, may-alias: {3,5,7,9,11,17}]
  %s12 = inlined_call_operand.hbm [shape: f32[128,384], index: 12, kind: input, shape index: {}]
  %s13 = inlined_call_operand.hbm [shape: f32[128,384], index: 13, kind: input, shape index: {}]
  %s14 = inlined_call_operand.vmem [shape: f32[1,384], index: 14, kind: input, shape index: {}, may-alias: {14,15}]
  %s15 = inlined_call_operand.vmem [shape: f32[1,384], index: 15, kind: input, shape index: {}, may-alias: {14,15}]
  %s16 = inlined_call_operand.vmem [shape: f32[1,128], index: 16, kind: input, shape index: {}, may-alias: {2,6,10,16}]
  %s17 = inlined_call_operand.vmem [shape: f32[1,128], index: 17, kind: input, shape index: {}, may-alias: {3,5,7,9,11,17}]
  %s18 = inlined_call_operand.hbm [shape: f32[64,128], index: 18, kind: output, shape index: {0}]
  %s19 = inlined_call_operand.hbm [shape: f32[8,128], index: 19, kind: output, shape index: {1}]
  %20 = xla_tuple %s18, %s19
  %s21 = sld [smem:[#allocation0]]
  $region110: #{a_call__.1} parent=0
    _
  %s23 = ssub.s32 1, %s21
  %s24 = scalar_select 0, %s23, %s21
  $region1: #{a_call__.1} parent=0
    #allocation3 [shape = 'u8[32768]{0}', space=vmem, size = 0x8000, scoped, tag = 'input window, operand 0, single buffered']
    #allocation4 [shape = 's32[1]{0}', space=sflag, size = 0x4, scoped, tag = 'scoped memory for a_call__.1']
    #allocation5 [shape = 's32[1]{0}', space=sflag, size = 0x4, scoped, tag = 'scoped memory for a_call__.1']
    #allocation6 [shape = 'u8[65536]{0}', space=vmem, size = 0x10000, scoped, tag = 'input window, operand 4, single buffered']
    #allocation7 [shape = 's32[1]{0}', space=sflag, size = 0x4, scoped, tag = 'scoped memory for a_call__.1']
    #allocation8 [shape = 'u8[65536]{0}', space=vmem, size = 0x10000, scoped, tag = 'input window, operand 8, single buffered']
    #allocation9 [shape = 'u8[196608]{0}', space=vmem, size = 0x30000, scoped, tag = 'input window, operand 12, single buffered']
    #allocation10 [shape = 's32[1]{0}', space=sflag, size = 0x4, scoped, tag = 'scoped memory for a_call__.1']
    #allocation11 [shape = 'u8[196608]{0}', space=vmem, size = 0x30000, scoped, tag = 'input window, operand 13, single buffered']
    #allocation12 [shape = 'u8[32768]{0}', space=vmem, size = 0x8000, scoped, tag = 'output window, operand 0, single buffered']
    #allocation13 [shape = 'u8[4096]{0}', space=vmem, size = 0x1000, scoped, tag = 'output window, operand 1, single buffered']
    #allocation14 [shape = 's32[1]{0}', space=sflag, size = 0x4, scoped, tag = 'scoped memory for a_call__.1']
    %25 = vsyncpa [#allocation4], 0
    %26 = vsyncpa [#allocation7], 0
    %27 = vsyncpa [#allocation10], 0
    %28 = vsyncpa [#allocation5], 0
    %29 = vsyncpa [#allocation14], 0
    // Predicated region
    $region2: #{a_call__.1} parent=1 // pred_check
      _
    $region3: #{a_call__.1} parent=1 // pred_check_branch
      %31 = sbr.rel (0) target = $region5
    $region4: #{a_call__.1} parent=1 // pred_region
      %s33 = ssub.s32 1024, 1024
      %34 = vsyncadd [#allocation4], %s33
      %s35 = sshll.u32 [#allocation3], 4
      %s36 = int_to_ptr.vmem [resolvable:$true] %s35
      %41 = dma.hbm_to_vmem [thread:$0]  %s0, 1024, %s36, [#allocation4], 128, 128, 8
    $region5: #{a_call__.1} parent=1 // pred_fallthru
      _
    // Predicated region
    $region6: #{a_call__.1} parent=1 // pred_check
      _
    $region7: #{a_call__.1} parent=1 // pred_check_branch
      %43 = sbr.rel (0) target = $region9
    $region8: #{a_call__.1} parent=1 // pred_region
      _
    $region9: #{a_call__.1} parent=1 // pred_fallthru
      _
    // Predicated region
    $region10: #{a_call__.1} parent=1 // pred_check
      _
    $region11: #{a_call__.1} parent=1 // pred_check_branch
      %45 = sbr.rel (0) target = $region13
    $region12: #{a_call__.1} parent=1 // pred_region
      _
    $region13: #{a_call__.1} parent=1 // pred_fallthru
      _
    // Predicated region
    $region14: #{a_call__.1} parent=1 // pred_check
      _
    $region15: #{a_call__.1} parent=1 // pred_check_branch
      %47 = sbr.rel (0) target = $region17
    $region16: #{a_call__.1} parent=1 // pred_region
      _
    $region17: #{a_call__.1} parent=1 // pred_fallthru
      _
    // Predicated region
    $region18: #{a_call__.1} parent=1 // pred_check
      _
    $region19: #{a_call__.1} parent=1 // pred_check_branch
      %49 = sbr.rel (0) target = $region21
    $region20: #{a_call__.1} parent=1 // pred_region
      %s51 = ssub.s32 2048, 2048
      %52 = vsyncadd [#allocation7], %s51
      %s53 = sshll.u32 [#allocation6], 4
      %s54 = int_to_ptr.vmem [resolvable:$true] %s53
      %59 = dma.hbm_to_vmem [thread:$0]  %s4, 2048, %s54, [#allocation7], 128, 128, 8
    $region21: #{a_call__.1} parent=1 // pred_fallthru
      _
    // Predicated region
    $region22: #{a_call__.1} parent=1 // pred_check
      _
    $region23: #{a_call__.1} parent=1 // pred_check_branch
      %61 = sbr.rel (0) target = $region25
    $region24: #{a_call__.1} parent=1 // pred_region
      _
    $region25: #{a_call__.1} parent=1 // pred_fallthru
      _
    // Predicated region
    $region26: #{a_call__.1} parent=1 // pred_check
      _
    $region27: #{a_call__.1} parent=1 // pred_check_branch
      %63 = sbr.rel (0) target = $region29
    $region28: #{a_call__.1} parent=1 // pred_region
      _
    $region29: #{a_call__.1} parent=1 // pred_fallthru
      _
    // Predicated region
    $region30: #{a_call__.1} parent=1 // pred_check
      _
    $region31: #{a_call__.1} parent=1 // pred_check_branch
      %65 = sbr.rel (0) target = $region33
    $region32: #{a_call__.1} parent=1 // pred_region
      _
    $region33: #{a_call__.1} parent=1 // pred_fallthru
      _
    // Predicated region
    $region34: #{a_call__.1} parent=1 // pred_check
      _
    $region35: #{a_call__.1} parent=1 // pred_check_branch
      %67 = sbr.rel (0) target = $region37
    $region36: #{a_call__.1} parent=1 // pred_region
      %s69 = ssub.s32 2048, 2048
      %70 = vsyncadd [#allocation7], %s69
      %s71 = sshll.u32 [#allocation8], 4
      %s72 = int_to_ptr.vmem [resolvable:$true] %s71
      %77 = dma.hbm_to_vmem [thread:$0]  %s8, 2048, %s72, [#allocation7], 128, 128, 8
    $region37: #{a_call__.1} parent=1 // pred_fallthru
      _
    // Predicated region
    $region38: #{a_call__.1} parent=1 // pred_check
      _
    $region39: #{a_call__.1} parent=1 // pred_check_branch
      %79 = sbr.rel (0) target = $region41
    $region40: #{a_call__.1} parent=1 // pred_region
      _
    $region41: #{a_call__.1} parent=1 // pred_fallthru
      _
    // Predicated region
    $region42: #{a_call__.1} parent=1 // pred_check
      _
    $region43: #{a_call__.1} parent=1 // pred_check_branch
      %81 = sbr.rel (0) target = $region45
    $region44: #{a_call__.1} parent=1 // pred_region
      _
    $region45: #{a_call__.1} parent=1 // pred_fallthru
      _
    // Predicated region
    $region46: #{a_call__.1} parent=1 // pred_check
      _
    $region47: #{a_call__.1} parent=1 // pred_check_branch
      %83 = sbr.rel (0) target = $region49
    $region48: #{a_call__.1} parent=1 // pred_region
      _
    $region49: #{a_call__.1} parent=1 // pred_fallthru
      _
    // Predicated region
    $region50: #{a_call__.1} parent=1 // pred_check
      _
    $region51: #{a_call__.1} parent=1 // pred_check_branch
      %85 = sbr.rel (0) target = $region53
    $region52: #{a_call__.1} parent=1 // pred_region
      %s87 = ssub.s32 6144, 6144
      %88 = vsyncadd [#allocation10], %s87
      %s89 = sshll.u32 [#allocation9], 4
      %s90 = int_to_ptr.vmem [resolvable:$true] %s89
      %95 = dma.hbm_to_vmem [thread:$0]  %s12, 6144, %s90, [#allocation10], 384, 384, 24
    $region53: #{a_call__.1} parent=1 // pred_fallthru
      _
    // Predicated region
    $region54: #{a_call__.1} parent=1 // pred_check
      _
    $region55: #{a_call__.1} parent=1 // pred_check_branch
      %97 = sbr.rel (0) target = $region57
    $region56: #{a_call__.1} parent=1 // pred_region
      %s99 = ssub.s32 6144, 6144
      %100 = vsyncadd [#allocation10], %s99
      %s101 = sshll.u32 [#allocation11], 4
      %s102 = int_to_ptr.vmem [resolvable:$true] %s101
      %107 = dma.hbm_to_vmem [thread:$0]  %s13, 6144, %s102, [#allocation10], 384, 384, 24
    $region57: #{a_call__.1} parent=1 // pred_fallthru
      _
    // Predicated region
    $region58: #{a_call__.1} parent=1 // pred_check
      _
    $region59: #{a_call__.1} parent=1 // pred_check_branch
      %109 = sbr.rel (0) target = $region61
    $region60: #{a_call__.1} parent=1 // pred_region
      _
    $region61: #{a_call__.1} parent=1 // pred_fallthru
      _
    // Predicated region
    $region62: #{a_call__.1} parent=1 // pred_check
      _
    $region63: #{a_call__.1} parent=1 // pred_check_branch
      %111 = sbr.rel (0) target = $region65
    $region64: #{a_call__.1} parent=1 // pred_region
      _
    $region65: #{a_call__.1} parent=1 // pred_fallthru
      _
    // Predicated region
    $region66: #{a_call__.1} parent=1 // pred_check
      _
    $region67: #{a_call__.1} parent=1 // pred_check_branch
      %113 = sbr.rel (0) target = $region69
    $region68: #{a_call__.1} parent=1 // pred_region
      _
    $region69: #{a_call__.1} parent=1 // pred_fallthru
      _
    // Predicated region
    $region70: #{a_call__.1} parent=1 // pred_check
      _
    $region71: #{a_call__.1} parent=1 // pred_check_branch
      %115 = sbr.rel (0) target = $region73
    $region72: #{a_call__.1} parent=1 // pred_region
      _
    $region73: #{a_call__.1} parent=1 // pred_fallthru
      _
    // Predicated region
    $region74: #{a_call__.1} parent=1 // pred_check
      _
    $region75: #{a_call__.1} parent=1 // pred_check_branch
      %117 = sbr.rel (0) target = $region77
    $region76: #{a_call__.1} parent=1 // pred_region
      %118 = dma.done [#allocation4], 1024
    $region77: #{a_call__.1} parent=1 // pred_fallthru
      _
    // Predicated region
    $region78: #{a_call__.1} parent=1 // pred_check
      _
    $region79: #{a_call__.1} parent=1 // pred_check_branch
      %120 = sbr.rel (0) target = $region81
    $region80: #{a_call__.1} parent=1 // pred_region
      %121 = dma.done [#allocation7], 2048
    $region81: #{a_call__.1} parent=1 // pred_fallthru
      _
    // Predicated region
    $region82: #{a_call__.1} parent=1 // pred_check
      _
    $region83: #{a_call__.1} parent=1 // pred_check_branch
      %123 = sbr.rel (0) target = $region85
    $region84: #{a_call__.1} parent=1 // pred_region
      %124 = dma.done [#allocation7], 2048
    $region85: #{a_call__.1} parent=1 // pred_fallthru
      _
    // Predicated region
    $region86: #{a_call__.1} parent=1 // pred_check
      _
    $region87: #{a_call__.1} parent=1 // pred_check_branch
      %126 = sbr.rel (0) target = $region89
    $region88: #{a_call__.1} parent=1 // pred_region
      %127 = dma.done [#allocation10], 6144
    $region89: #{a_call__.1} parent=1 // pred_fallthru
      _
    // Predicated region
    $region90: #{a_call__.1} parent=1 // pred_check
      _
    $region91: #{a_call__.1} parent=1 // pred_check_branch
      %129 = sbr.rel (0) target = $region93
    $region92: #{a_call__.1} parent=1 // pred_region
      %130 = dma.done [#allocation10], 6144
    $region93: #{a_call__.1} parent=1 // pred_fallthru
      _
    %v131 = vld [vmem:[#allocation3] sm:$0xff]
    %v132 = vld [vmem:[#allocation3 + $0x8] sm:$0xff]
    %v133 = vld [vmem:[#allocation3 + $0x10] sm:$0xff]
    %v134 = vld [vmem:[#allocation3 + $0x18] sm:$0xff]
    %v135 = vld [vmem:[#allocation3 + $0x20] sm:$0xff]
    %v136 = vld [vmem:[#allocation3 + $0x28] sm:$0xff]
    %v137 = vld [vmem:[#allocation3 + $0x30] sm:$0xff]
    %v138 = vld [vmem:[#allocation3 + $0x38] sm:$0xff]
    %v139 = vld [vmem:[%s2] sm:$0x1]
    %v140 = vld [vmem:[%s3] sm:$0x1]
    %141 = vadd.xlane.f32.xlu0 %v131
    %v142 = vpop.xlane.xlu0 %141
    %143 = vadd.xlane.f32.xlu0 %v132
    %v144 = vpop.xlane.xlu0 %143
    %145 = vadd.xlane.f32.xlu0 %v133
    %v146 = vpop.xlane.xlu0 %145
    %147 = vadd.xlane.f32.xlu0 %v134
    %v148 = vpop.xlane.xlu0 %147
    %149 = vadd.xlane.f32.xlu0 %v135
    %v150 = vpop.xlane.xlu0 %149
    %151 = vadd.xlane.f32.xlu0 %v136
    %v152 = vpop.xlane.xlu0 %151
    %153 = vadd.xlane.f32.xlu0 %v137
    %v154 = vpop.xlane.xlu0 %153
    %155 = vadd.xlane.f32.xlu0 %v138
    %v156 = vpop.xlane.xlu0 %155
    %v157 = vrcp.pop 128.0
    %v158 = vmul.f32 %v142, %v157
    %v159 = vmul.f32 %v144, %v157
    %v160 = vmul.f32 %v146, %v157
    %v161 = vmul.f32 %v148, %v157
    %v162 = vmul.f32 %v150, %v157
    %v163 = vmul.f32 %v152, %v157
    %v164 = vmul.f32 %v154, %v157
    %v165 = vmul.f32 %v156, %v157
    %v166 = vsub.f32 %v131, %v158
    %v167 = vsub.f32 %v132, %v159
    %v168 = vsub.f32 %v133, %v160
    %v169 = vsub.f32 %v134, %v161
    %v170 = vsub.f32 %v135, %v162
    %v171 = vsub.f32 %v136, %v163
    %v172 = vsub.f32 %v137, %v164
    %v173 = vsub.f32 %v138, %v165
    %v174 = vmul.f32 %v166, %v166
    %v175 = vmul.f32 %v167, %v167
    %v176 = vmul.f32 %v168, %v168
    %v177 = vmul.f32 %v169, %v169
    %v178 = vmul.f32 %v170, %v170
    %v179 = vmul.f32 %v171, %v171
    %v180 = vmul.f32 %v172, %v172
    %v181 = vmul.f32 %v173, %v173
    %182 = vadd.xlane.f32.xlu0 %v174
    %v183 = vpop.xlane.xlu0 %182
    %184 = vadd.xlane.f32.xlu0 %v175
    %v185 = vpop.xlane.xlu0 %184
    %186 = vadd.xlane.f32.xlu0 %v176
    %v187 = vpop.xlane.xlu0 %186
    %188 = vadd.xlane.f32.xlu0 %v177
    %v189 = vpop.xlane.xlu0 %188
    %190 = vadd.xlane.f32.xlu0 %v178
    %v191 = vpop.xlane.xlu0 %190
    %192 = vadd.xlane.f32.xlu0 %v179
    %v193 = vpop.xlane.xlu0 %192
    %194 = vadd.xlane.f32.xlu0 %v180
    %v195 = vpop.xlane.xlu0 %194
    %196 = vadd.xlane.f32.xlu0 %v181
    %v197 = vpop.xlane.xlu0 %196
    %v198 = vmul.f32 %v183, %v157
    %v199 = vmul.f32 %v185, %v157
    %v200 = vmul.f32 %v187, %v157
    %v201 = vmul.f32 %v189, %v157
    %v202 = vmul.f32 %v191, %v157
    %v203 = vmul.f32 %v193, %v157
    %v204 = vmul.f32 %v195, %v157
    %v205 = vmul.f32 %v197, %v157
    %v206 = vadd.f32 %v198, 1e-05
    %v207 = vadd.f32 %v199, 1e-05
    %v208 = vadd.f32 %v200, 1e-05
    %v209 = vadd.f32 %v201, 1e-05
    %v210 = vadd.f32 %v202, 1e-05
    %v211 = vadd.f32 %v203, 1e-05
    %v212 = vadd.f32 %v204, 1e-05
    %v213 = vadd.f32 %v205, 1e-05
    %v214 = vrsqrt.pop %v206
    %v215 = vrsqrt.pop %v207
    %v216 = vrsqrt.pop %v208
    %v217 = vrsqrt.pop %v209
    %v218 = vrsqrt.pop %v210
    %v219 = vrsqrt.pop %v211
    %v220 = vrsqrt.pop %v212
    %v221 = vrsqrt.pop %v213
    %v222 = vmul.f32 %v166, %v214
    %v223 = vmul.f32 %v167, %v215
    %v224 = vmul.f32 %v168, %v216
    %v225 = vmul.f32 %v169, %v217
    %v226 = vmul.f32 %v170, %v218
    %v227 = vmul.f32 %v171, %v219
    %v228 = vmul.f32 %v172, %v220
    %v229 = vmul.f32 %v173, %v221
    %v231 = vlaneseq
    %v232 = vshrl.u32 %v231, 7
    %v233 = vsub.s32 0, %v232
    %v234 = vrot.slane %v139, %v233
    %v236 = vmul.f32 %v222, %v234
    %v237 = vmul.f32 %v223, %v234
    %v238 = vmul.f32 %v224, %v234
    %v239 = vmul.f32 %v225, %v234
    %v240 = vmul.f32 %v226, %v234
    %v241 = vmul.f32 %v227, %v234
    %v242 = vmul.f32 %v228, %v234
    %v243 = vmul.f32 %v229, %v234
    %v245 = vlaneseq
    %v246 = vshrl.u32 %v245, 7
    %v247 = vsub.s32 0, %v246
    %v248 = vrot.slane %v140, %v247
    %v250 = vadd.f32 %v236, %v248
    %v251 = vadd.f32 %v237, %v248
    %v252 = vadd.f32 %v238, %v248
    %v253 = vadd.f32 %v239, %v248
    %v254 = vadd.f32 %v240, %v248
    %v255 = vadd.f32 %v241, %v248
    %v256 = vadd.f32 %v242, %v248
    %v257 = vadd.f32 %v243, %v248
    %v258 = vld [vmem:[#allocation6] sm:$0xff]
    %v259 = vld [vmem:[#allocation6 + $0x8] sm:$0xff]
    %v260 = vld [vmem:[#allocation6 + $0x10] sm:$0xff]
    %v261 = vld [vmem:[#allocation6 + $0x18] sm:$0xff]
    %v262 = vld [vmem:[#allocation6 + $0x20] sm:$0xff]
    %v263 = vld [vmem:[#allocation6 + $0x28] sm:$0xff]
    %v264 = vld [vmem:[#allocation6 + $0x30] sm:$0xff]
    %v265 = vld [vmem:[#allocation6 + $0x38] sm:$0xff]
    %v266 = vld [vmem:[#allocation6 + $0x40] sm:$0xff]
    %v267 = vld [vmem:[#allocation6 + $0x48] sm:$0xff]
    %v268 = vld [vmem:[#allocation6 + $0x50] sm:$0xff]
    %v269 = vld [vmem:[#allocation6 + $0x58] sm:$0xff]
    %v270 = vld [vmem:[#allocation6 + $0x60] sm:$0xff]
    %v271 = vld [vmem:[#allocation6 + $0x68] sm:$0xff]
    %v272 = vld [vmem:[#allocation6 + $0x70] sm:$0xff]
    %v273 = vld [vmem:[#allocation6 + $0x78] sm:$0xff]
    %v274 = vld [vmem:[%s5] sm:$0x1]
    %v276 = vlaneseq
    %v277 = vshrl.u32 %v276, 7
    %v278 = vsub.s32 0, %v277
    %v279 = vrot.slane %v274, %v278
    %281 = vmatprep.subr.mxu0 0.0
    %282 = vmatpush1.msra.mxu0 %v273
    %283 = vmatprep.subr.mxu0 0.0
    %284 = vmatpush1.msra.mxu0 %v272
    %285 = vmatprep.subr.mxu0 0.0
    %286 = vmatpush1.msra.mxu0 %v271
    %287 = vmatprep.subr.mxu0 0.0
    %288 = vmatpush1.msra.mxu0 %v270
    %289 = vmatprep.subr.mxu0 0.0
    %290 = vmatpush1.msra.mxu0 %v269
    %291 = vmatprep.subr.mxu0 0.0
    %292 = vmatpush1.msra.mxu0 %v268
    %293 = vmatprep.subr.mxu0 0.0
    %294 = vmatpush1.msra.mxu0 %v267
    %295 = vmatprep.subr.mxu0 0.0
    %296 = vmatpush1.msra.mxu0 %v266
    %297 = vmatprep.subr.mxu0 0.0
    %298 = vmatpush1.msra.mxu0 %v265
    %299 = vmatprep.subr.mxu0 0.0
    %300 = vmatpush1.msra.mxu0 %v264
    %301 = vmatprep.subr.mxu0 0.0
    %302 = vmatpush1.msra.mxu0 %v263
    %303 = vmatprep.subr.mxu0 0.0
    %304 = vmatpush1.msra.mxu0 %v262
    %305 = vmatprep.subr.mxu0 0.0
    %306 = vmatpush1.msra.mxu0 %v261
    %307 = vmatprep.subr.mxu0 0.0
    %308 = vmatpush1.msra.mxu0 %v260
    %309 = vmatprep.subr.mxu0 0.0
    %310 = vmatpush1.msra.mxu0 %v259
    %311 = vmatprep.subr.mxu0 0.0
    %312 = vmatpush1.msra.mxu0 %v258
    %313 = vmatprep.subr.mxu0 0.0
    %314 = vmatpush2.msra.mxu0 0.0
    %315 = vmatprep.subr.mxu0 0.0
    %316 = vmatpush2.msra.mxu0 0.0
    %317 = vmatprep.subr.mxu0 0.0
    %318 = vmatpush2.msra.mxu0 0.0
    %319 = vmatprep.subr.mxu0 0.0
    %320 = vmatpush2.msra.mxu0 0.0
    %321 = vmatprep.subr.mxu0 0.0
    %322 = vmatpush2.msra.mxu0 0.0
    %323 = vmatprep.subr.mxu0 0.0
    %324 = vmatpush2.msra.mxu0 0.0
    %325 = vmatprep.subr.mxu0 0.0
    %326 = vmatpush2.msra.mxu0 0.0
    %327 = vmatprep.subr.mxu0 0.0
    %328 = vmatpush2.msra.mxu0 0.0
    %329 = vmatprep.subr.mxu0 0.0
    %330 = vmatpush2.msra.mxu0 0.0
    %331 = vmatprep.subr.mxu0 0.0
    %332 = vmatpush2.msra.mxu0 0.0
    %333 = vmatprep.subr.mxu0 0.0
    %334 = vmatpush2.msra.mxu0 0.0
    %335 = vmatprep.subr.mxu0 0.0
    %336 = vmatpush2.msra.mxu0 0.0
    %337 = vmatprep.subr.mxu0 0.0
    %338 = vmatpush2.msra.mxu0 0.0
    %339 = vmatprep.subr.mxu0 0.0
    %340 = vmatpush2.msra.mxu0 0.0
    %341 = vmatprep.subr.mxu0 0.0
    %342 = vmatpush2.msra.mxu0 0.0
    %343 = vmatprep.subr.mxu0 0.0
    %344 = vmatpush2.msra.mxu0 0.0
    %345 = vmatprep.mubr.f32.mxu0 0.0
    %346 = vmatmul.mubr.f32.gmra.mxu0 %v250
    %v347 = vpop.f32.mrf.mxu0
    %v348 = vadd.f32 %v279, %v347
    %v349 = vpop.f32.mrf.mxu0
    %350 = vmatprep.mubr.f32.mxu0 0.0
    %351 = vmatmul.mubr.f32.gmra.mxu0 %v251
    %v352 = vpop.f32.mrf.mxu0
    %v353 = vadd.f32 %v279, %v352
    %v354 = vpop.f32.mrf.mxu0
    %355 = vmatprep.mubr.f32.mxu0 0.0
    %356 = vmatmul.mubr.f32.gmra.mxu0 %v252
    %v357 = vpop.f32.mrf.mxu0
    %v358 = vadd.f32 %v279, %v357
    %v359 = vpop.f32.mrf.mxu0
    %360 = vmatprep.mubr.f32.mxu0 0.0
    %361 = vmatmul.mubr.f32.gmra.mxu0 %v253
    %v362 = vpop.f32.mrf.mxu0
    %v363 = vadd.f32 %v279, %v362
    %v364 = vpop.f32.mrf.mxu0
    %365 = vmatprep.mubr.f32.mxu0 0.0
    %366 = vmatmul.mubr.f32.gmra.mxu0 %v254
    %v367 = vpop.f32.mrf.mxu0
    %v368 = vadd.f32 %v279, %v367
    %v369 = vpop.f32.mrf.mxu0
    %370 = vmatprep.mubr.f32.mxu0 0.0
    %371 = vmatmul.mubr.f32.gmra.mxu0 %v255
    %v372 = vpop.f32.mrf.mxu0
    %v373 = vadd.f32 %v279, %v372
    %v374 = vpop.f32.mrf.mxu0
    %375 = vmatprep.mubr.f32.mxu0 0.0
    %376 = vmatmul.mubr.f32.gmra.mxu0 %v256
    %v377 = vpop.f32.mrf.mxu0
    %v378 = vadd.f32 %v279, %v377
    %v379 = vpop.f32.mrf.mxu0
    %380 = vmatprep.mubr.f32.mxu0 0.0
    %381 = vmatmul.mubr.f32.gmra.mxu0 %v257
    %v382 = vpop.f32.mrf.mxu0
    %v383 = vadd.f32 %v279, %v382
    %v384 = vpop.f32.mrf.mxu0
    %385 = vdwg.mxu0
    %v386 = vmax.f32 %v348, 0.0
    %v387 = vmax.f32 %v353, 0.0
    %v388 = vmax.f32 %v358, 0.0
    %v389 = vmax.f32 %v363, 0.0
    %v390 = vmax.f32 %v368, 0.0
    %v391 = vmax.f32 %v373, 0.0
    %v392 = vmax.f32 %v378, 0.0
    %v393 = vmax.f32 %v383, 0.0
    %v394 = vld [vmem:[%s6] sm:$0x1]
    %v395 = vld [vmem:[%s7] sm:$0x1]
    %396 = vadd.xlane.f32.xlu0 %v386
    %v397 = vpop.xlane.xlu0 %396
    %398 = vadd.xlane.f32.xlu0 %v387
    %v399 = vpop.xlane.xlu0 %398
    %400 = vadd.xlane.f32.xlu0 %v388
    %v401 = vpop.xlane.xlu0 %400
    %402 = vadd.xlane.f32.xlu0 %v389
    %v403 = vpop.xlane.xlu0 %402
    %404 = vadd.xlane.f32.xlu0 %v390
    %v405 = vpop.xlane.xlu0 %404
    %406 = vadd.xlane.f32.xlu0 %v391
    %v407 = vpop.xlane.xlu0 %406
    %408 = vadd.xlane.f32.xlu0 %v392
    %v409 = vpop.xlane.xlu0 %408
    %410 = vadd.xlane.f32.xlu0 %v393
    %v411 = vpop.xlane.xlu0 %410
    %v412 = vmul.f32 %v397, %v157
    %v413 = vmul.f32 %v399, %v157
    %v414 = vmul.f32 %v401, %v157
    %v415 = vmul.f32 %v403, %v157
    %v416 = vmul.f32 %v405, %v157
    %v417 = vmul.f32 %v407, %v157
    %v418 = vmul.f32 %v409, %v157
    %v419 = vmul.f32 %v411, %v157
    %v420 = vsub.f32 %v386, %v412
    %v421 = vsub.f32 %v387, %v413
    %v422 = vsub.f32 %v388, %v414
    %v423 = vsub.f32 %v389, %v415
    %v424 = vsub.f32 %v390, %v416
    %v425 = vsub.f32 %v391, %v417
    %v426 = vsub.f32 %v392, %v418
    %v427 = vsub.f32 %v393, %v419
    %v428 = vmul.f32 %v420, %v420
    %v429 = vmul.f32 %v421, %v421
    %v430 = vmul.f32 %v422, %v422
    %v431 = vmul.f32 %v423, %v423
    %v432 = vmul.f32 %v424, %v424
    %v433 = vmul.f32 %v425, %v425
    %v434 = vmul.f32 %v426, %v426
    %v435 = vmul.f32 %v427, %v427
    %436 = vadd.xlane.f32.xlu0 %v428
    %v437 = vpop.xlane.xlu0 %436
    %438 = vadd.xlane.f32.xlu0 %v429
    %v439 = vpop.xlane.xlu0 %438
    %440 = vadd.xlane.f32.xlu0 %v430
    %v441 = vpop.xlane.xlu0 %440
    %442 = vadd.xlane.f32.xlu0 %v431
    %v443 = vpop.xlane.xlu0 %442
    %444 = vadd.xlane.f32.xlu0 %v432
    %v445 = vpop.xlane.xlu0 %444
    %446 = vadd.xlane.f32.xlu0 %v433
    %v447 = vpop.xlane.xlu0 %446
    %448 = vadd.xlane.f32.xlu0 %v434
    %v449 = vpop.xlane.xlu0 %448
    %450 = vadd.xlane.f32.xlu0 %v435
    %v451 = vpop.xlane.xlu0 %450
    %v452 = vmul.f32 %v437, %v157
    %v453 = vmul.f32 %v439, %v157
    %v454 = vmul.f32 %v441, %v157
    %v455 = vmul.f32 %v443, %v157
    %v456 = vmul.f32 %v445, %v157
    %v457 = vmul.f32 %v447, %v157
    %v458 = vmul.f32 %v449, %v157
    %v459 = vmul.f32 %v451, %v157
    %v460 = vadd.f32 %v452, 1e-05
    %v461 = vadd.f32 %v453, 1e-05
    %v462 = vadd.f32 %v454, 1e-05
    %v463 = vadd.f32 %v455, 1e-05
    %v464 = vadd.f32 %v456, 1e-05
    %v465 = vadd.f32 %v457, 1e-05
    %v466 = vadd.f32 %v458, 1e-05
    %v467 = vadd.f32 %v459, 1e-05
    %v468 = vrsqrt.pop %v460
    %v469 = vrsqrt.pop %v461
    %v470 = vrsqrt.pop %v462
    %v471 = vrsqrt.pop %v463
    %v472 = vrsqrt.pop %v464
    %v473 = vrsqrt.pop %v465
    %v474 = vrsqrt.pop %v466
    %v475 = vrsqrt.pop %v467
    %v476 = vmul.f32 %v420, %v468
    %v477 = vmul.f32 %v421, %v469
    %v478 = vmul.f32 %v422, %v470
    %v479 = vmul.f32 %v423, %v471
    %v480 = vmul.f32 %v424, %v472
    %v481 = vmul.f32 %v425, %v473
    %v482 = vmul.f32 %v426, %v474
    %v483 = vmul.f32 %v427, %v475
    %v485 = vlaneseq
    %v486 = vshrl.u32 %v485, 7
    %v487 = vsub.s32 0, %v486
    %v488 = vrot.slane %v394, %v487
    %v490 = vmul.f32 %v476, %v488
    %v491 = vmul.f32 %v477, %v488
    %v492 = vmul.f32 %v478, %v488
    %v493 = vmul.f32 %v479, %v488
    %v494 = vmul.f32 %v480, %v488
    %v495 = vmul.f32 %v481, %v488
    %v496 = vmul.f32 %v482, %v488
    %v497 = vmul.f32 %v483, %v488
    %v499 = vlaneseq
    %v500 = vshrl.u32 %v499, 7
    %v501 = vsub.s32 0, %v500
    %v502 = vrot.slane %v395, %v501
    %v504 = vadd.f32 %v490, %v502
    %v505 = vadd.f32 %v491, %v502
    %v506 = vadd.f32 %v492, %v502
    %v507 = vadd.f32 %v493, %v502
    %v508 = vadd.f32 %v494, %v502
    %v509 = vadd.f32 %v495, %v502
    %v510 = vadd.f32 %v496, %v502
    %v511 = vadd.f32 %v497, %v502
    %v512 = vld [vmem:[#allocation8] sm:$0xff]
    %v513 = vld [vmem:[#allocation8 + $0x8] sm:$0xff]
    %v514 = vld [vmem:[#allocation8 + $0x10] sm:$0xff]
    %v515 = vld [vmem:[#allocation8 + $0x18] sm:$0xff]
    %v516 = vld [vmem:[#allocation8 + $0x20] sm:$0xff]
    %v517 = vld [vmem:[#allocation8 + $0x28] sm:$0xff]
    %v518 = vld [vmem:[#allocation8 + $0x30] sm:$0xff]
    %v519 = vld [vmem:[#allocation8 + $0x38] sm:$0xff]
    %v520 = vld [vmem:[#allocation8 + $0x40] sm:$0xff]
    %v521 = vld [vmem:[#allocation8 + $0x48] sm:$0xff]
    %v522 = vld [vmem:[#allocation8 + $0x50] sm:$0xff]
    %v523 = vld [vmem:[#allocation8 + $0x58] sm:$0xff]
    %v524 = vld [vmem:[#allocation8 + $0x60] sm:$0xff]
    %v525 = vld [vmem:[#allocation8 + $0x68] sm:$0xff]
    %v526 = vld [vmem:[#allocation8 + $0x70] sm:$0xff]
    %v527 = vld [vmem:[#allocation8 + $0x78] sm:$0xff]
    %v528 = vld [vmem:[%s9] sm:$0x1]
    %v530 = vlaneseq
    %v531 = vshrl.u32 %v530, 7
    %v532 = vsub.s32 0, %v531
    %v533 = vrot.slane %v528, %v532
    %535 = vmatprep.subr.mxu0 0.0
    %536 = vmatpush1.msra.mxu0 %v527
    %537 = vmatprep.subr.mxu0 0.0
    %538 = vmatpush1.msra.mxu0 %v526
    %539 = vmatprep.subr.mxu0 0.0
    %540 = vmatpush1.msra.mxu0 %v525
    %541 = vmatprep.subr.mxu0 0.0
    %542 = vmatpush1.msra.mxu0 %v524
    %543 = vmatprep.subr.mxu0 0.0
    %544 = vmatpush1.msra.mxu0 %v523
    %545 = vmatprep.subr.mxu0 0.0
    %546 = vmatpush1.msra.mxu0 %v522
    %547 = vmatprep.subr.mxu0 0.0
    %548 = vmatpush1.msra.mxu0 %v521
    %549 = vmatprep.subr.mxu0 0.0
    %550 = vmatpush1.msra.mxu0 %v520
    %551 = vmatprep.subr.mxu0 0.0
    %552 = vmatpush1.msra.mxu0 %v519
    %553 = vmatprep.subr.mxu0 0.0
    %554 = vmatpush1.msra.mxu0 %v518
    %555 = vmatprep.subr.mxu0 0.0
    %556 = vmatpush1.msra.mxu0 %v517
    %557 = vmatprep.subr.mxu0 0.0
    %558 = vmatpush1.msra.mxu0 %v516
    %559 = vmatprep.subr.mxu0 0.0
    %560 = vmatpush1.msra.mxu0 %v515
    %561 = vmatprep.subr.mxu0 0.0
    %562 = vmatpush1.msra.mxu0 %v514
    %563 = vmatprep.subr.mxu0 0.0
    %564 = vmatpush1.msra.mxu0 %v513
    %565 = vmatprep.subr.mxu0 0.0
    %566 = vmatpush1.msra.mxu0 %v512
    %567 = vmatprep.subr.mxu0 0.0
    %568 = vmatpush2.msra.mxu0 0.0
    %569 = vmatprep.subr.mxu0 0.0
    %570 = vmatpush2.msra.mxu0 0.0
    %571 = vmatprep.subr.mxu0 0.0
    %572 = vmatpush2.msra.mxu0 0.0
    %573 = vmatprep.subr.mxu0 0.0
    %574 = vmatpush2.msra.mxu0 0.0
    %575 = vmatprep.subr.mxu0 0.0
    %576 = vmatpush2.msra.mxu0 0.0
    %577 = vmatprep.subr.mxu0 0.0
    %578 = vmatpush2.msra.mxu0 0.0
    %579 = vmatprep.subr.mxu0 0.0
    %580 = vmatpush2.msra.mxu0 0.0
    %581 = vmatprep.subr.mxu0 0.0
    %582 = vmatpush2.msra.mxu0 0.0
    %583 = vmatprep.subr.mxu0 0.0
    %584 = vmatpush2.msra.mxu0 0.0
    %585 = vmatprep.subr.mxu0 0.0
    %586 = vmatpush2.msra.mxu0 0.0
    %587 = vmatprep.subr.mxu0 0.0
    %588 = vmatpush2.msra.mxu0 0.0
    %589 = vmatprep.subr.mxu0 0.0
    %590 = vmatpush2.msra.mxu0 0.0
    %591 = vmatprep.subr.mxu0 0.0
    %592 = vmatpush2.msra.mxu0 0.0
    %593 = vmatprep.subr.mxu0 0.0
    %594 = vmatpush2.msra.mxu0 0.0
    %595 = vmatprep.subr.mxu0 0.0
    %596 = vmatpush2.msra.mxu0 0.0
    %597 = vmatprep.subr.mxu0 0.0
    %598 = vmatpush2.msra.mxu0 0.0
    %599 = vmatprep.mubr.f32.mxu0 0.0
    %600 = vmatmul.mubr.f32.gmra.mxu0 %v504
    %v601 = vpop.f32.mrf.mxu0
    %v602 = vadd.f32 %v533, %v601
    %v603 = vpop.f32.mrf.mxu0
    %604 = vmatprep.mubr.f32.mxu0 0.0
    %605 = vmatmul.mubr.f32.gmra.mxu0 %v505
    %v606 = vpop.f32.mrf.mxu0
    %v607 = vadd.f32 %v533, %v606
    %v608 = vpop.f32.mrf.mxu0
    %609 = vmatprep.mubr.f32.mxu0 0.0
    %610 = vmatmul.mubr.f32.gmra.mxu0 %v506
    %v611 = vpop.f32.mrf.mxu0
    %v612 = vadd.f32 %v533, %v611
    %v613 = vpop.f32.mrf.mxu0
    %614 = vmatprep.mubr.f32.mxu0 0.0
    %615 = vmatmul.mubr.f32.gmra.mxu0 %v507
    %v616 = vpop.f32.mrf.mxu0
    %v617 = vadd.f32 %v533, %v616
    %v618 = vpop.f32.mrf.mxu0
    %619 = vmatprep.mubr.f32.mxu0 0.0
    %620 = vmatmul.mubr.f32.gmra.mxu0 %v508
    %v621 = vpop.f32.mrf.mxu0
    %v622 = vadd.f32 %v533, %v621
    %v623 = vpop.f32.mrf.mxu0
    %624 = vmatprep.mubr.f32.mxu0 0.0
    %625 = vmatmul.mubr.f32.gmra.mxu0 %v509
    %v626 = vpop.f32.mrf.mxu0
    %v627 = vadd.f32 %v533, %v626
    %v628 = vpop.f32.mrf.mxu0
    %629 = vmatprep.mubr.f32.mxu0 0.0
    %630 = vmatmul.mubr.f32.gmra.mxu0 %v510
    %v631 = vpop.f32.mrf.mxu0
    %v632 = vadd.f32 %v533, %v631
    %v633 = vpop.f32.mrf.mxu0
    %634 = vmatprep.mubr.f32.mxu0 0.0
    %635 = vmatmul.mubr.f32.gmra.mxu0 %v511
    %v636 = vpop.f32.mrf.mxu0
    %v637 = vadd.f32 %v533, %v636
    %v638 = vpop.f32.mrf.mxu0
    %639 = vdwg.mxu0
    %v640 = vmax.f32 %v602, 0.0
    %v641 = vmax.f32 %v607, 0.0
    %v642 = vmax.f32 %v612, 0.0
    %v643 = vmax.f32 %v617, 0.0
    %v644 = vmax.f32 %v622, 0.0
    %v645 = vmax.f32 %v627, 0.0
    %v646 = vmax.f32 %v632, 0.0
    %v647 = vmax.f32 %v637, 0.0
    %v648 = vld [vmem:[%s10] sm:$0x1]
    %v649 = vld [vmem:[%s11] sm:$0x1]
    %650 = vadd.xlane.f32.xlu0 %v640
    %v651 = vpop.xlane.xlu0 %650
    %652 = vadd.xlane.f32.xlu0 %v641
    %v653 = vpop.xlane.xlu0 %652
    %654 = vadd.xlane.f32.xlu0 %v642
    %v655 = vpop.xlane.xlu0 %654
    %656 = vadd.xlane.f32.xlu0 %v643
    %v657 = vpop.xlane.xlu0 %656
    %658 = vadd.xlane.f32.xlu0 %v644
    %v659 = vpop.xlane.xlu0 %658
    %660 = vadd.xlane.f32.xlu0 %v645
    %v661 = vpop.xlane.xlu0 %660
    %662 = vadd.xlane.f32.xlu0 %v646
    %v663 = vpop.xlane.xlu0 %662
    %664 = vadd.xlane.f32.xlu0 %v647
    %v665 = vpop.xlane.xlu0 %664
    %v666 = vmul.f32 %v651, %v157
    %v667 = vmul.f32 %v653, %v157
    %v668 = vmul.f32 %v655, %v157
    %v669 = vmul.f32 %v657, %v157
    %v670 = vmul.f32 %v659, %v157
    %v671 = vmul.f32 %v661, %v157
    %v672 = vmul.f32 %v663, %v157
    %v673 = vmul.f32 %v665, %v157
    %v674 = vsub.f32 %v640, %v666
    %v675 = vsub.f32 %v641, %v667
    %v676 = vsub.f32 %v642, %v668
    %v677 = vsub.f32 %v643, %v669
    %v678 = vsub.f32 %v644, %v670
    %v679 = vsub.f32 %v645, %v671
    %v680 = vsub.f32 %v646, %v672
    %v681 = vsub.f32 %v647, %v673
    %v682 = vmul.f32 %v674, %v674
    %v683 = vmul.f32 %v675, %v675
    %v684 = vmul.f32 %v676, %v676
    %v685 = vmul.f32 %v677, %v677
    %v686 = vmul.f32 %v678, %v678
    %v687 = vmul.f32 %v679, %v679
    %v688 = vmul.f32 %v680, %v680
    %v689 = vmul.f32 %v681, %v681
    %690 = vadd.xlane.f32.xlu0 %v682
    %v691 = vpop.xlane.xlu0 %690
    %692 = vadd.xlane.f32.xlu0 %v683
    %v693 = vpop.xlane.xlu0 %692
    %694 = vadd.xlane.f32.xlu0 %v684
    %v695 = vpop.xlane.xlu0 %694
    %696 = vadd.xlane.f32.xlu0 %v685
    %v697 = vpop.xlane.xlu0 %696
    %698 = vadd.xlane.f32.xlu0 %v686
    %v699 = vpop.xlane.xlu0 %698
    %700 = vadd.xlane.f32.xlu0 %v687
    %v701 = vpop.xlane.xlu0 %700
    %702 = vadd.xlane.f32.xlu0 %v688
    %v703 = vpop.xlane.xlu0 %702
    %704 = vadd.xlane.f32.xlu0 %v689
    %v705 = vpop.xlane.xlu0 %704
    %v706 = vmul.f32 %v691, %v157
    %v707 = vmul.f32 %v693, %v157
    %v708 = vmul.f32 %v695, %v157
    %v709 = vmul.f32 %v697, %v157
    %v710 = vmul.f32 %v699, %v157
    %v711 = vmul.f32 %v701, %v157
    %v712 = vmul.f32 %v703, %v157
    %v713 = vmul.f32 %v705, %v157
    %v714 = vadd.f32 %v706, 1e-05
    %v715 = vadd.f32 %v707, 1e-05
    %v716 = vadd.f32 %v708, 1e-05
    %v717 = vadd.f32 %v709, 1e-05
    %v718 = vadd.f32 %v710, 1e-05
    %v719 = vadd.f32 %v711, 1e-05
    %v720 = vadd.f32 %v712, 1e-05
    %v721 = vadd.f32 %v713, 1e-05
    %v722 = vrsqrt.pop %v714
    %v723 = vrsqrt.pop %v715
    %v724 = vrsqrt.pop %v716
    %v725 = vrsqrt.pop %v717
    %v726 = vrsqrt.pop %v718
    %v727 = vrsqrt.pop %v719
    %v728 = vrsqrt.pop %v720
    %v729 = vrsqrt.pop %v721
    %v730 = vmul.f32 %v674, %v722
    %v731 = vmul.f32 %v675, %v723
    %v732 = vmul.f32 %v676, %v724
    %v733 = vmul.f32 %v677, %v725
    %v734 = vmul.f32 %v678, %v726
    %v735 = vmul.f32 %v679, %v727
    %v736 = vmul.f32 %v680, %v728
    %v737 = vmul.f32 %v681, %v729
    %v739 = vlaneseq
    %v740 = vshrl.u32 %v739, 7
    %v741 = vsub.s32 0, %v740
    %v742 = vrot.slane %v648, %v741
    %v744 = vmul.f32 %v730, %v742
    %v745 = vmul.f32 %v731, %v742
    %v746 = vmul.f32 %v732, %v742
    %v747 = vmul.f32 %v733, %v742
    %v748 = vmul.f32 %v734, %v742
    %v749 = vmul.f32 %v735, %v742
    %v750 = vmul.f32 %v736, %v742
    %v751 = vmul.f32 %v737, %v742
    %v753 = vlaneseq
    %v754 = vshrl.u32 %v753, 7
    %v755 = vsub.s32 0, %v754
    %v756 = vrot.slane %v649, %v755
    %v758 = vadd.f32 %v744, %v756
    %v759 = vadd.f32 %v745, %v756
    %v760 = vadd.f32 %v746, %v756
    %v761 = vadd.f32 %v747, %v756
    %v762 = vadd.f32 %v748, %v756
    %v763 = vadd.f32 %v749, %v756
    %v764 = vadd.f32 %v750, %v756
    %v765 = vadd.f32 %v751, %v756
    %v766 = vld [vmem:[#allocation9] sm:$0xff]
    %v767 = vld [vmem:[#allocation9 + $0x8] sm:$0xff]
    %v768 = vld [vmem:[#allocation9 + $0x10] sm:$0xff]
    %v769 = vld [vmem:[#allocation9 + $0x18] sm:$0xff]
    %v770 = vld [vmem:[#allocation9 + $0x20] sm:$0xff]
    %v771 = vld [vmem:[#allocation9 + $0x28] sm:$0xff]
    %v772 = vld [vmem:[#allocation9 + $0x30] sm:$0xff]
    %v773 = vld [vmem:[#allocation9 + $0x38] sm:$0xff]
    %v774 = vld [vmem:[#allocation9 + $0x40] sm:$0xff]
    %v775 = vld [vmem:[#allocation9 + $0x48] sm:$0xff]
    %v776 = vld [vmem:[#allocation9 + $0x50] sm:$0xff]
    %v777 = vld [vmem:[#allocation9 + $0x58] sm:$0xff]
    %v778 = vld [vmem:[#allocation9 + $0x60] sm:$0xff]
    %v779 = vld [vmem:[#allocation9 + $0x68] sm:$0xff]
    %v780 = vld [vmem:[#allocation9 + $0x70] sm:$0xff]
    %v781 = vld [vmem:[#allocation9 + $0x78] sm:$0xff]
    %v782 = vld [vmem:[#allocation9 + $0x80] sm:$0xff]
    %v783 = vld [vmem:[#allocation9 + $0x88] sm:$0xff]
    %v784 = vld [vmem:[#allocation9 + $0x90] sm:$0xff]
    %v785 = vld [vmem:[#allocation9 + $0x98] sm:$0xff]
    %v786 = vld [vmem:[#allocation9 + $0xa0] sm:$0xff]
    %v787 = vld [vmem:[#allocation9 + $0xa8] sm:$0xff]
    %v788 = vld [vmem:[#allocation9 + $0xb0] sm:$0xff]
    %v789 = vld [vmem:[#allocation9 + $0xb8] sm:$0xff]
    %v790 = vld [vmem:[#allocation9 + $0xc0] sm:$0xff]
    %v791 = vld [vmem:[#allocation9 + $0xc8] sm:$0xff]
    %v792 = vld [vmem:[#allocation9 + $0xd0] sm:$0xff]
    %v793 = vld [vmem:[#allocation9 + $0xd8] sm:$0xff]
    %v794 = vld [vmem:[#allocation9 + $0xe0] sm:$0xff]
    %v795 = vld [vmem:[#allocation9 + $0xe8] sm:$0xff]
    %v796 = vld [vmem:[#allocation9 + $0xf0] sm:$0xff]
    %v797 = vld [vmem:[#allocation9 + $0xf8] sm:$0xff]
    %v798 = vld [vmem:[#allocation9 + $0x100] sm:$0xff]
    %v799 = vld [vmem:[#allocation9 + $0x108] sm:$0xff]
    %v800 = vld [vmem:[#allocation9 + $0x110] sm:$0xff]
    %v801 = vld [vmem:[#allocation9 + $0x118] sm:$0xff]
    %v802 = vld [vmem:[#allocation9 + $0x120] sm:$0xff]
    %v803 = vld [vmem:[#allocation9 + $0x128] sm:$0xff]
    %v804 = vld [vmem:[#allocation9 + $0x130] sm:$0xff]
    %v805 = vld [vmem:[#allocation9 + $0x138] sm:$0xff]
    %v806 = vld [vmem:[#allocation9 + $0x140] sm:$0xff]
    %v807 = vld [vmem:[#allocation9 + $0x148] sm:$0xff]
    %v808 = vld [vmem:[#allocation9 + $0x150] sm:$0xff]
    %v809 = vld [vmem:[#allocation9 + $0x158] sm:$0xff]
    %v810 = vld [vmem:[#allocation9 + $0x160] sm:$0xff]
    %v811 = vld [vmem:[#allocation9 + $0x168] sm:$0xff]
    %v812 = vld [vmem:[#allocation9 + $0x170] sm:$0xff]
    %v813 = vld [vmem:[#allocation9 + $0x178] sm:$0xff]
    %v814 = vld [vmem:[%s14] sm:$0x7]
    %v816 = vlaneseq
    %v817 = vshrl.u32 %v816, 7
    %v818 = vsub.s32 0, %v817
    %v819 = vrot.slane %v814, %v818
    %v820 = vlaneseq
    %v821 = vshrl.u32 %v820, 7
    %v822 = vsub.s32 1, %v821
    %v823 = vrot.slane %v814, %v822
    %v824 = vlaneseq
    %v825 = vshrl.u32 %v824, 7
    %v826 = vsub.s32 2, %v825
    %v827 = vrot.slane %v814, %v826
    %831 = vmatprep.subr.mxu0 %v812
    %832 = vmatpush1.msra.mxu0 %v811
    %833 = vmatprep.subr.mxu0 %v809
    %834 = vmatpush1.msra.mxu0 %v808
    %835 = vmatprep.subr.mxu0 %v806
    %836 = vmatpush1.msra.mxu0 %v805
    %837 = vmatprep.subr.mxu0 %v803
    %838 = vmatpush1.msra.mxu0 %v802
    %839 = vmatprep.subr.mxu0 %v800
    %840 = vmatpush1.msra.mxu0 %v799
    %841 = vmatprep.subr.mxu0 %v797
    %842 = vmatpush1.msra.mxu0 %v796
    %843 = vmatprep.subr.mxu0 %v794
    %844 = vmatpush1.msra.mxu0 %v793
    %845 = vmatprep.subr.mxu0 %v791
    %846 = vmatpush1.msra.mxu0 %v790
    %847 = vmatprep.subr.mxu0 %v788
    %848 = vmatpush1.msra.mxu0 %v787
    %849 = vmatprep.subr.mxu0 %v785
    %850 = vmatpush1.msra.mxu0 %v784
    %851 = vmatprep.subr.mxu0 %v782
    %852 = vmatpush1.msra.mxu0 %v781
    %853 = vmatprep.subr.mxu0 %v779
    %854 = vmatpush1.msra.mxu0 %v778
    %855 = vmatprep.subr.mxu0 %v776
    %856 = vmatpush1.msra.mxu0 %v775
    %857 = vmatprep.subr.mxu0 %v773
    %858 = vmatpush1.msra.mxu0 %v772
    %859 = vmatprep.subr.mxu0 %v770
    %860 = vmatpush1.msra.mxu0 %v769
    %861 = vmatprep.subr.mxu0 %v767
    %862 = vmatpush1.msra.mxu0 %v766
    %863 = vmatprep.subr.mxu0 0.0
    %864 = vmatpush2.msra.mxu0 0.0
    %865 = vmatprep.subr.mxu0 0.0
    %866 = vmatpush2.msra.mxu0 0.0
    %867 = vmatprep.subr.mxu0 0.0
    %868 = vmatpush2.msra.mxu0 0.0
    %869 = vmatprep.subr.mxu0 0.0
    %870 = vmatpush2.msra.mxu0 0.0
    %871 = vmatprep.subr.mxu0 0.0
    %872 = vmatpush2.msra.mxu0 0.0
    %873 = vmatprep.subr.mxu0 0.0
    %874 = vmatpush2.msra.mxu0 0.0
    %875 = vmatprep.subr.mxu0 0.0
    %876 = vmatpush2.msra.mxu0 0.0
    %877 = vmatprep.subr.mxu0 0.0
    %878 = vmatpush2.msra.mxu0 0.0
    %879 = vmatprep.subr.mxu0 0.0
    %880 = vmatpush2.msra.mxu0 0.0
    %881 = vmatprep.subr.mxu0 0.0
    %882 = vmatpush2.msra.mxu0 0.0
    %883 = vmatprep.subr.mxu0 0.0
    %884 = vmatpush2.msra.mxu0 0.0
    %885 = vmatprep.subr.mxu0 0.0
    %886 = vmatpush2.msra.mxu0 0.0
    %887 = vmatprep.subr.mxu0 0.0
    %888 = vmatpush2.msra.mxu0 0.0
    %889 = vmatprep.subr.mxu0 0.0
    %890 = vmatpush2.msra.mxu0 0.0
    %891 = vmatprep.subr.mxu0 0.0
    %892 = vmatpush2.msra.mxu0 0.0
    %893 = vmatprep.subr.mxu0 0.0
    %894 = vmatpush2.msra.mxu0 0.0
    %895 = vmatprep.mubr.f32.mxu0 0.0
    %896 = vmatmul.mubr.f32.gmra.mxu0 %v758
    %v897 = vpop.f32.mrf.mxu0
    %v898 = vadd.f32 %v819, %v897
    %v899 = vpop.f32.mrf.mxu0
    %v900 = vadd.f32 %v823, %v899
    %901 = vmatprep.mubr.f32.mxu0 0.0
    %902 = vmatmul.mubr.f32.gmra.mxu0 %v759
    %v903 = vpop.f32.mrf.mxu0
    %v904 = vadd.f32 %v819, %v903
    %v905 = vpop.f32.mrf.mxu0
    %v906 = vadd.f32 %v823, %v905
    %907 = vmatprep.mubr.f32.mxu0 0.0
    %908 = vmatmul.mubr.f32.gmra.mxu0 %v760
    %v909 = vpop.f32.mrf.mxu0
    %v910 = vadd.f32 %v819, %v909
    %v911 = vpop.f32.mrf.mxu0
    %v912 = vadd.f32 %v823, %v911
    %913 = vmatprep.mubr.f32.mxu0 0.0
    %914 = vmatmul.mubr.f32.gmra.mxu0 %v761
    %v915 = vpop.f32.mrf.mxu0
    %v916 = vadd.f32 %v819, %v915
    %v917 = vpop.f32.mrf.mxu0
    %v918 = vadd.f32 %v823, %v917
    %919 = vmatprep.mubr.f32.mxu0 0.0
    %920 = vmatmul.mubr.f32.gmra.mxu0 %v762
    %v921 = vpop.f32.mrf.mxu0
    %v922 = vadd.f32 %v819, %v921
    %v923 = vpop.f32.mrf.mxu0
    %v924 = vadd.f32 %v823, %v923
    %925 = vmatprep.mubr.f32.mxu0 0.0
    %926 = vmatmul.mubr.f32.gmra.mxu0 %v763
    %v927 = vpop.f32.mrf.mxu0
    %v928 = vadd.f32 %v819, %v927
    %v929 = vpop.f32.mrf.mxu0
    %v930 = vadd.f32 %v823, %v929
    %931 = vmatprep.mubr.f32.mxu0 0.0
    %932 = vmatmul.mubr.f32.gmra.mxu0 %v764
    %v933 = vpop.f32.mrf.mxu0
    %v934 = vadd.f32 %v819, %v933
    %v935 = vpop.f32.mrf.mxu0
    %v936 = vadd.f32 %v823, %v935
    %937 = vmatprep.mubr.f32.mxu0 0.0
    %938 = vmatmul.mubr.f32.gmra.mxu0 %v765
    %v939 = vpop.f32.mrf.mxu0
    %v940 = vadd.f32 %v819, %v939
    %v941 = vpop.f32.mrf.mxu0
    %v942 = vadd.f32 %v823, %v941
    %943 = vdwg.mxu0
    %944 = vmatprep.subr.mxu0 0.0
    %945 = vmatpush1.msra.mxu0 %v813
    %946 = vmatprep.subr.mxu0 0.0
    %947 = vmatpush1.msra.mxu0 %v810
    %948 = vmatprep.subr.mxu0 0.0
    %949 = vmatpush1.msra.mxu0 %v807
    %950 = vmatprep.subr.mxu0 0.0
    %951 = vmatpush1.msra.mxu0 %v804
    %952 = vmatprep.subr.mxu0 0.0
    %953 = vmatpush1.msra.mxu0 %v801
    %954 = vmatprep.subr.mxu0 0.0
    %955 = vmatpush1.msra.mxu0 %v798
    %956 = vmatprep.subr.mxu0 0.0
    %957 = vmatpush1.msra.mxu0 %v795
    %958 = vmatprep.subr.mxu0 0.0
    %959 = vmatpush1.msra.mxu0 %v792
    %960 = vmatprep.subr.mxu0 0.0
    %961 = vmatpush1.msra.mxu0 %v789
    %962 = vmatprep.subr.mxu0 0.0
    %963 = vmatpush1.msra.mxu0 %v786
    %964 = vmatprep.subr.mxu0 0.0
    %965 = vmatpush1.msra.mxu0 %v783
    %966 = vmatprep.subr.mxu0 0.0
    %967 = vmatpush1.msra.mxu0 %v780
    %968 = vmatprep.subr.mxu0 0.0
    %969 = vmatpush1.msra.mxu0 %v777
    %970 = vmatprep.subr.mxu0 0.0
    %971 = vmatpush1.msra.mxu0 %v774
    %972 = vmatprep.subr.mxu0 0.0
    %973 = vmatpush1.msra.mxu0 %v771
    %974 = vmatprep.subr.mxu0 0.0
    %975 = vmatpush1.msra.mxu0 %v768
    %976 = vmatprep.subr.mxu0 0.0
    %977 = vmatpush2.msra.mxu0 0.0
    %978 = vmatprep.subr.mxu0 0.0
    %979 = vmatpush2.msra.mxu0 0.0
    %980 = vmatprep.subr.mxu0 0.0
    %981 = vmatpush2.msra.mxu0 0.0
    %982 = vmatprep.subr.mxu0 0.0
    %983 = vmatpush2.msra.mxu0 0.0
    %984 = vmatprep.subr.mxu0 0.0
    %985 = vmatpush2.msra.mxu0 0.0
    %986 = vmatprep.subr.mxu0 0.0
    %987 = vmatpush2.msra.mxu0 0.0
    %988 = vmatprep.subr.mxu0 0.0
    %989 = vmatpush2.msra.mxu0 0.0
    %990 = vmatprep.subr.mxu0 0.0
    %991 = vmatpush2.msra.mxu0 0.0
    %992 = vmatprep.subr.mxu0 0.0
    %993 = vmatpush2.msra.mxu0 0.0
    %994 = vmatprep.subr.mxu0 0.0
    %995 = vmatpush2.msra.mxu0 0.0
    %996 = vmatprep.subr.mxu0 0.0
    %997 = vmatpush2.msra.mxu0 0.0
    %998 = vmatprep.subr.mxu0 0.0
    %999 = vmatpush2.msra.mxu0 0.0
    %1000 = vmatprep.subr.mxu0 0.0
    %1001 = vmatpush2.msra.mxu0 0.0
    %1002 = vmatprep.subr.mxu0 0.0
    %1003 = vmatpush2.msra.mxu0 0.0
    %1004 = vmatprep.subr.mxu0 0.0
    %1005 = vmatpush2.msra.mxu0 0.0
    %1006 = vmatprep.subr.mxu0 0.0
    %1007 = vmatpush2.msra.mxu0 0.0
    %1008 = vmatprep.mubr.f32.mxu0 0.0
    %1009 = vmatmul.mubr.f32.gmra.mxu0 %v758
    %v1010 = vpop.f32.mrf.mxu0
    %v1011 = vadd.f32 %v827, %v1010
    %v1012 = vpop.f32.mrf.mxu0
    %1013 = vmatprep.mubr.f32.mxu0 0.0
    %1014 = vmatmul.mubr.f32.gmra.mxu0 %v759
    %v1015 = vpop.f32.mrf.mxu0
    %v1016 = vadd.f32 %v827, %v1015
    %v1017 = vpop.f32.mrf.mxu0
    %1018 = vmatprep.mubr.f32.mxu0 0.0
    %1019 = vmatmul.mubr.f32.gmra.mxu0 %v760
    %v1020 = vpop.f32.mrf.mxu0
    %v1021 = vadd.f32 %v827, %v1020
    %v1022 = vpop.f32.mrf.mxu0
    %1023 = vmatprep.mubr.f32.mxu0 0.0
    %1024 = vmatmul.mubr.f32.gmra.mxu0 %v761
    %v1025 = vpop.f32.mrf.mxu0
    %v1026 = vadd.f32 %v827, %v1025
    %v1027 = vpop.f32.mrf.mxu0
    %1028 = vmatprep.mubr.f32.mxu0 0.0
    %1029 = vmatmul.mubr.f32.gmra.mxu0 %v762
    %v1030 = vpop.f32.mrf.mxu0
    %v1031 = vadd.f32 %v827, %v1030
    %v1032 = vpop.f32.mrf.mxu0
    %1033 = vmatprep.mubr.f32.mxu0 0.0
    %1034 = vmatmul.mubr.f32.gmra.mxu0 %v763
    %v1035 = vpop.f32.mrf.mxu0
    %v1036 = vadd.f32 %v827, %v1035
    %v1037 = vpop.f32.mrf.mxu0
    %1038 = vmatprep.mubr.f32.mxu0 0.0
    %1039 = vmatmul.mubr.f32.gmra.mxu0 %v764
    %v1040 = vpop.f32.mrf.mxu0
    %v1041 = vadd.f32 %v827, %v1040
    %v1042 = vpop.f32.mrf.mxu0
    %1043 = vmatprep.mubr.f32.mxu0 0.0
    %1044 = vmatmul.mubr.f32.gmra.mxu0 %v765
    %v1045 = vpop.f32.mrf.mxu0
    %v1046 = vadd.f32 %v827, %v1045
    %v1047 = vpop.f32.mrf.mxu0
    %1048 = vdwg.mxu0
    %1049 = vst [vmem:[#allocation2] sm:$0xff] %v898
    %1050 = vst [vmem:[#allocation2 + $0x8] sm:$0xff] %v900
    %1051 = vst [vmem:[#allocation2 + $0x10] sm:$0xff] %v1011
    %1052 = vst [vmem:[#allocation2 + $0x18] sm:$0xff] %v904
    %1053 = vst [vmem:[#allocation2 + $0x20] sm:$0xff] %v906
    %1054 = vst [vmem:[#allocation2 + $0x28] sm:$0xff] %v1016
    %1055 = vst [vmem:[#allocation2 + $0x30] sm:$0xff] %v910
    %1056 = vst [vmem:[#allocation2 + $0x38] sm:$0xff] %v912
    %1057 = vst [vmem:[#allocation2 + $0x40] sm:$0xff] %v1021
    %1058 = vst [vmem:[#allocation2 + $0x48] sm:$0xff] %v916
    %1059 = vst [vmem:[#allocation2 + $0x50] sm:$0xff] %v918
    %1060 = vst [vmem:[#allocation2 + $0x58] sm:$0xff] %v1026
    %1061 = vst [vmem:[#allocation2 + $0x60] sm:$0xff] %v922
    %1062 = vst [vmem:[#allocation2 + $0x68] sm:$0xff] %v924
    %1063 = vst [vmem:[#allocation2 + $0x70] sm:$0xff] %v1031
    %1064 = vst [vmem:[#allocation2 + $0x78] sm:$0xff] %v928
    %1065 = vst [vmem:[#allocation2 + $0x80] sm:$0xff] %v930
    %1066 = vst [vmem:[#allocation2 + $0x88] sm:$0xff] %v1036
    %1067 = vst [vmem:[#allocation2 + $0x90] sm:$0xff] %v934
    %1068 = vst [vmem:[#allocation2 + $0x98] sm:$0xff] %v936
    %1069 = vst [vmem:[#allocation2 + $0xa0] sm:$0xff] %v1041
    %1070 = vst [vmem:[#allocation2 + $0xa8] sm:$0xff] %v940
    %1071 = vst [vmem:[#allocation2 + $0xb0] sm:$0xff] %v942
    %1072 = vst [vmem:[#allocation2 + $0xb8] sm:$0xff] %v1046
    %v1073 = vld [vmem:[#allocation11] sm:$0xff]
    %v1074 = vld [vmem:[#allocation11 + $0x8] sm:$0xff]
    %v1075 = vld [vmem:[#allocation11 + $0x10] sm:$0xff]
    %v1076 = vld [vmem:[#allocation11 + $0x18] sm:$0xff]
    %v1077 = vld [vmem:[#allocation11 + $0x20] sm:$0xff]
    %v1078 = vld [vmem:[#allocation11 + $0x28] sm:$0xff]
    %v1079 = vld [vmem:[#allocation11 + $0x30] sm:$0xff]
    %v1080 = vld [vmem:[#allocation11 + $0x38] sm:$0xff]
    %v1081 = vld [vmem:[#allocation11 + $0x40] sm:$0xff]
    %v1082 = vld [vmem:[#allocation11 + $0x48] sm:$0xff]
    %v1083 = vld [vmem:[#allocation11 + $0x50] sm:$0xff]
    %v1084 = vld [vmem:[#allocation11 + $0x58] sm:$0xff]
    %v1085 = vld [vmem:[#allocation11 + $0x60] sm:$0xff]
    %v1086 = vld [vmem:[#allocation11 + $0x68] sm:$0xff]
    %v1087 = vld [vmem:[#allocation11 + $0x70] sm:$0xff]
    %v1088 = vld [vmem:[#allocation11 + $0x78] sm:$0xff]
    %v1089 = vld [vmem:[#allocation11 + $0x80] sm:$0xff]
    %v1090 = vld [vmem:[#allocation11 + $0x88] sm:$0xff]
    %v1091 = vld [vmem:[#allocation11 + $0x90] sm:$0xff]
    %v1092 = vld [vmem:[#allocation11 + $0x98] sm:$0xff]
    %v1093 = vld [vmem:[#allocation11 + $0xa0] sm:$0xff]
    %v1094 = vld [vmem:[#allocation11 + $0xa8] sm:$0xff]
    %v1095 = vld [vmem:[#allocation11 + $0xb0] sm:$0xff]
    %v1096 = vld [vmem:[#allocation11 + $0xb8] sm:$0xff]
    %v1097 = vld [vmem:[#allocation11 + $0xc0] sm:$0xff]
    %v1098 = vld [vmem:[#allocation11 + $0xc8] sm:$0xff]
    %v1099 = vld [vmem:[#allocation11 + $0xd0] sm:$0xff]
    %v1100 = vld [vmem:[#allocation11 + $0xd8] sm:$0xff]
    %v1101 = vld [vmem:[#allocation11 + $0xe0] sm:$0xff]
    %v1102 = vld [vmem:[#allocation11 + $0xe8] sm:$0xff]
    %v1103 = vld [vmem:[#allocation11 + $0xf0] sm:$0xff]
    %v1104 = vld [vmem:[#allocation11 + $0xf8] sm:$0xff]
    %v1105 = vld [vmem:[#allocation11 + $0x100] sm:$0xff]
    %v1106 = vld [vmem:[#allocation11 + $0x108] sm:$0xff]
    %v1107 = vld [vmem:[#allocation11 + $0x110] sm:$0xff]
    %v1108 = vld [vmem:[#allocation11 + $0x118] sm:$0xff]
    %v1109 = vld [vmem:[#allocation11 + $0x120] sm:$0xff]
    %v1110 = vld [vmem:[#allocation11 + $0x128] sm:$0xff]
    %v1111 = vld [vmem:[#allocation11 + $0x130] sm:$0xff]
    %v1112 = vld [vmem:[#allocation11 + $0x138] sm:$0xff]
    %v1113 = vld [vmem:[#allocation11 + $0x140] sm:$0xff]
    %v1114 = vld [vmem:[#allocation11 + $0x148] sm:$0xff]
    %v1115 = vld [vmem:[#allocation11 + $0x150] sm:$0xff]
    %v1116 = vld [vmem:[#allocation11 + $0x158] sm:$0xff]
    %v1117 = vld [vmem:[#allocation11 + $0x160] sm:$0xff]
    %v1118 = vld [vmem:[#allocation11 + $0x168] sm:$0xff]
    %v1119 = vld [vmem:[#allocation11 + $0x170] sm:$0xff]
    %v1120 = vld [vmem:[#allocation11 + $0x178] sm:$0xff]
    %v1121 = vld [vmem:[%s15] sm:$0x7]
    %v1123 = vlaneseq
    %v1124 = vshrl.u32 %v1123, 7
    %v1125 = vsub.s32 0, %v1124
    %v1126 = vrot.slane %v1121, %v1125
    %v1127 = vlaneseq
    %v1128 = vshrl.u32 %v1127, 7
    %v1129 = vsub.s32 1, %v1128
    %v1130 = vrot.slane %v1121, %v1129
    %v1131 = vlaneseq
    %v1132 = vshrl.u32 %v1131, 7
    %v1133 = vsub.s32 2, %v1132
    %v1134 = vrot.slane %v1121, %v1133
    %v1138 = vld [vmem:[%s1] sm:$0xff]
    %v1139 = vld [vmem:[#allocation2] sm:$0xff]
    %v1140 = vld [vmem:[#allocation2 + $0x8] sm:$0xff]
    %v1141 = vld [vmem:[#allocation2 + $0x10] sm:$0xff]
    %1142 = vmatprep.subr.mxu0 %v1119
    %1143 = vmatpush1.msra.mxu0 %v1118
    %1144 = vmatprep.subr.mxu0 %v1116
    %1145 = vmatpush1.msra.mxu0 %v1115
    %1146 = vmatprep.subr.mxu0 %v1113
    %1147 = vmatpush1.msra.mxu0 %v1112
    %1148 = vmatprep.subr.mxu0 %v1110
    %1149 = vmatpush1.msra.mxu0 %v1109
    %1150 = vmatprep.subr.mxu0 %v1107
    %1151 = vmatpush1.msra.mxu0 %v1106
    %1152 = vmatprep.subr.mxu0 %v1104
    %1153 = vmatpush1.msra.mxu0 %v1103
    %1154 = vmatprep.subr.mxu0 %v1101
    %1155 = vmatpush1.msra.mxu0 %v1100
    %1156 = vmatprep.subr.mxu0 %v1098
    %1157 = vmatpush1.msra.mxu0 %v1097
    %1158 = vmatprep.subr.mxu0 %v1095
    %1159 = vmatpush1.msra.mxu0 %v1094
    %1160 = vmatprep.subr.mxu0 %v1092
    %1161 = vmatpush1.msra.mxu0 %v1091
    %1162 = vmatprep.subr.mxu0 %v1089
    %1163 = vmatpush1.msra.mxu0 %v1088
    %1164 = vmatprep.subr.mxu0 %v1086
    %1165 = vmatpush1.msra.mxu0 %v1085
    %1166 = vmatprep.subr.mxu0 %v1083
    %1167 = vmatpush1.msra.mxu0 %v1082
    %1168 = vmatprep.subr.mxu0 %v1080
    %1169 = vmatpush1.msra.mxu0 %v1079
    %1170 = vmatprep.subr.mxu0 %v1077
    %1171 = vmatpush1.msra.mxu0 %v1076
    %1172 = vmatprep.subr.mxu0 %v1074
    %1173 = vmatpush1.msra.mxu0 %v1073
    %1174 = vmatprep.subr.mxu0 0.0
    %1175 = vmatpush2.msra.mxu0 0.0
    %1176 = vmatprep.subr.mxu0 0.0
    %1177 = vmatpush2.msra.mxu0 0.0
    %1178 = vmatprep.subr.mxu0 0.0
    %1179 = vmatpush2.msra.mxu0 0.0
    %1180 = vmatprep.subr.mxu0 0.0
    %1181 = vmatpush2.msra.mxu0 0.0
    %1182 = vmatprep.subr.mxu0 0.0
    %1183 = vmatpush2.msra.mxu0 0.0
    %1184 = vmatprep.subr.mxu0 0.0
    %1185 = vmatpush2.msra.mxu0 0.0
    %1186 = vmatprep.subr.mxu0 0.0
    %1187 = vmatpush2.msra.mxu0 0.0
    %1188 = vmatprep.subr.mxu0 0.0
    %1189 = vmatpush2.msra.mxu0 0.0
    %1190 = vmatprep.subr.mxu0 0.0
    %1191 = vmatpush2.msra.mxu0 0.0
    %1192 = vmatprep.subr.mxu0 0.0
    %1193 = vmatpush2.msra.mxu0 0.0
    %1194 = vmatprep.subr.mxu0 0.0
    %1195 = vmatpush2.msra.mxu0 0.0
    %1196 = vmatprep.subr.mxu0 0.0
    %1197 = vmatpush2.msra.mxu0 0.0
    %1198 = vmatprep.subr.mxu0 0.0
    %1199 = vmatpush2.msra.mxu0 0.0
    %1200 = vmatprep.subr.mxu0 0.0
    %1201 = vmatpush2.msra.mxu0 0.0
    %1202 = vmatprep.subr.mxu0 0.0
    %1203 = vmatpush2.msra.mxu0 0.0
    %1204 = vmatprep.subr.mxu0 0.0
    %1205 = vmatpush2.msra.mxu0 0.0
    %1206 = vmatprep.mubr.f32.mxu0 0.0
    %1207 = vmatmul.mubr.f32.gmra.mxu0 %v1138
    %v1208 = vpop.f32.mrf.mxu0
    %v1209 = vadd.f32 %v1126, %v1208
    %v1210 = vpop.f32.mrf.mxu0
    %v1211 = vadd.f32 %v1130, %v1210
    %1212 = vdwg.mxu0
    %1213 = vmatprep.subr.mxu0 0.0
    %1214 = vmatpush1.msra.mxu0 %v1120
    %1215 = vmatprep.subr.mxu0 0.0
    %1216 = vmatpush1.msra.mxu0 %v1117
    %1217 = vmatprep.subr.mxu0 0.0
    %1218 = vmatpush1.msra.mxu0 %v1114
    %1219 = vmatprep.subr.mxu0 0.0
    %1220 = vmatpush1.msra.mxu0 %v1111
    %1221 = vmatprep.subr.mxu0 0.0
    %1222 = vmatpush1.msra.mxu0 %v1108
    %1223 = vmatprep.subr.mxu0 0.0
    %1224 = vmatpush1.msra.mxu0 %v1105
    %1225 = vmatprep.subr.mxu0 0.0
    %1226 = vmatpush1.msra.mxu0 %v1102
    %1227 = vmatprep.subr.mxu0 0.0
    %1228 = vmatpush1.msra.mxu0 %v1099
    %1229 = vmatprep.subr.mxu0 0.0
    %1230 = vmatpush1.msra.mxu0 %v1096
    %1231 = vmatprep.subr.mxu0 0.0
    %1232 = vmatpush1.msra.mxu0 %v1093
    %1233 = vmatprep.subr.mxu0 0.0
    %1234 = vmatpush1.msra.mxu0 %v1090
    %1235 = vmatprep.subr.mxu0 0.0
    %1236 = vmatpush1.msra.mxu0 %v1087
    %1237 = vmatprep.subr.mxu0 0.0
    %1238 = vmatpush1.msra.mxu0 %v1084
    %1239 = vmatprep.subr.mxu0 0.0
    %1240 = vmatpush1.msra.mxu0 %v1081
    %1241 = vmatprep.subr.mxu0 0.0
    %1242 = vmatpush1.msra.mxu0 %v1078
    %1243 = vmatprep.subr.mxu0 0.0
    %1244 = vmatpush1.msra.mxu0 %v1075
    %1245 = vmatprep.subr.mxu0 0.0
    %1246 = vmatpush2.msra.mxu0 0.0
    %1247 = vmatprep.subr.mxu0 0.0
    %1248 = vmatpush2.msra.mxu0 0.0
    %1249 = vmatprep.subr.mxu0 0.0
    %1250 = vmatpush2.msra.mxu0 0.0
    %1251 = vmatprep.subr.mxu0 0.0
    %1252 = vmatpush2.msra.mxu0 0.0
    %1253 = vmatprep.subr.mxu0 0.0
    %1254 = vmatpush2.msra.mxu0 0.0
    %1255 = vmatprep.subr.mxu0 0.0
    %1256 = vmatpush2.msra.mxu0 0.0
    %1257 = vmatprep.subr.mxu0 0.0
    %1258 = vmatpush2.msra.mxu0 0.0
    %1259 = vmatprep.subr.mxu0 0.0
    %1260 = vmatpush2.msra.mxu0 0.0
    %1261 = vmatprep.subr.mxu0 0.0
    %1262 = vmatpush2.msra.mxu0 0.0
    %1263 = vmatprep.subr.mxu0 0.0
    %1264 = vmatpush2.msra.mxu0 0.0
    %1265 = vmatprep.subr.mxu0 0.0
    %1266 = vmatpush2.msra.mxu0 0.0
    %1267 = vmatprep.subr.mxu0 0.0
    %1268 = vmatpush2.msra.mxu0 0.0
    %1269 = vmatprep.subr.mxu0 0.0
    %1270 = vmatpush2.msra.mxu0 0.0
    %1271 = vmatprep.subr.mxu0 0.0
    %1272 = vmatpush2.msra.mxu0 0.0
    %1273 = vmatprep.subr.mxu0 0.0
    %1274 = vmatpush2.msra.mxu0 0.0
    %1275 = vmatprep.subr.mxu0 0.0
    %1276 = vmatpush2.msra.mxu0 0.0
    %1277 = vmatprep.mubr.f32.mxu0 0.0
    %1278 = vmatmul.mubr.f32.gmra.mxu0 %v1138
    %v1279 = vpop.f32.mrf.mxu0
    %v1280 = vadd.f32 %v1134, %v1279
    %v1281 = vpop.f32.mrf.mxu0
    %1282 = vdwg.mxu0
    %v1283 = vadd.f32 %v1139, %v1209
    %v1284 = vxor.u32 %v1283, 2147483648
    %v1285 = vmul.f32 %v1284, 1.442695
    %v1286 = vpow.pop %v1285
    %v1287 = vadd.f32 %v1286, 1.0
    %v1288 = vrcp.pop %v1287
    %v1289 = vmul.f32 1.0, %v1288
    %v1290 = vadd.f32 %v1140, %v1211
    %v1291 = vxor.u32 %v1290, 2147483648
    %v1292 = vmul.f32 %v1291, 1.442695
    %v1293 = vpow.pop %v1292
    %v1294 = vadd.f32 %v1293, 1.0
    %v1295 = vrcp.pop %v1294
    %v1296 = vmul.f32 1.0, %v1295
    %v1297 = vmul.f32 %v1289, %v1280
    %v1298 = vadd.f32 %v1141, %v1297
    %v1299 = vtanh.pop %v1298
    %v1300 = vsub.f32 %v1138, %v1299
    %v1301 = vmul.f32 %v1296, %v1300
    %v1302 = vadd.f32 %v1299, %v1301
    %1303 = vst [vmem:[#allocation12] sm:$0xff] %v1302
    %v1304 = vld [vmem:[#allocation2 + $0x18] sm:$0xff]
    %v1305 = vld [vmem:[#allocation2 + $0x20] sm:$0xff]
    %v1306 = vld [vmem:[#allocation2 + $0x28] sm:$0xff]
    %1307 = vmatprep.subr.mxu0 %v1119
    %1308 = vmatpush1.msra.mxu0 %v1118
    %1309 = vmatprep.subr.mxu0 %v1116
    %1310 = vmatpush1.msra.mxu0 %v1115
    %1311 = vmatprep.subr.mxu0 %v1113
    %1312 = vmatpush1.msra.mxu0 %v1112
    %1313 = vmatprep.subr.mxu0 %v1110
    %1314 = vmatpush1.msra.mxu0 %v1109
    %1315 = vmatprep.subr.mxu0 %v1107
    %1316 = vmatpush1.msra.mxu0 %v1106
    %1317 = vmatprep.subr.mxu0 %v1104
    %1318 = vmatpush1.msra.mxu0 %v1103
    %1319 = vmatprep.subr.mxu0 %v1101
    %1320 = vmatpush1.msra.mxu0 %v1100
    %1321 = vmatprep.subr.mxu0 %v1098
    %1322 = vmatpush1.msra.mxu0 %v1097
    %1323 = vmatprep.subr.mxu0 %v1095
    %1324 = vmatpush1.msra.mxu0 %v1094
    %1325 = vmatprep.subr.mxu0 %v1092
    %1326 = vmatpush1.msra.mxu0 %v1091
    %1327 = vmatprep.subr.mxu0 %v1089
    %1328 = vmatpush1.msra.mxu0 %v1088
    %1329 = vmatprep.subr.mxu0 %v1086
    %1330 = vmatpush1.msra.mxu0 %v1085
    %1331 = vmatprep.subr.mxu0 %v1083
    %1332 = vmatpush1.msra.mxu0 %v1082
    %1333 = vmatprep.subr.mxu0 %v1080
    %1334 = vmatpush1.msra.mxu0 %v1079
    %1335 = vmatprep.subr.mxu0 %v1077
    %1336 = vmatpush1.msra.mxu0 %v1076
    %1337 = vmatprep.subr.mxu0 %v1074
    %1338 = vmatpush1.msra.mxu0 %v1073
    %1339 = vmatprep.subr.mxu0 0.0
    %1340 = vmatpush2.msra.mxu0 0.0
    %1341 = vmatprep.subr.mxu0 0.0
    %1342 = vmatpush2.msra.mxu0 0.0
    %1343 = vmatprep.subr.mxu0 0.0
    %1344 = vmatpush2.msra.mxu0 0.0
    %1345 = vmatprep.subr.mxu0 0.0
    %1346 = vmatpush2.msra.mxu0 0.0
    %1347 = vmatprep.subr.mxu0 0.0
    %1348 = vmatpush2.msra.mxu0 0.0
    %1349 = vmatprep.subr.mxu0 0.0
    %1350 = vmatpush2.msra.mxu0 0.0
    %1351 = vmatprep.subr.mxu0 0.0
    %1352 = vmatpush2.msra.mxu0 0.0
    %1353 = vmatprep.subr.mxu0 0.0
    %1354 = vmatpush2.msra.mxu0 0.0
    %1355 = vmatprep.subr.mxu0 0.0
    %1356 = vmatpush2.msra.mxu0 0.0
    %1357 = vmatprep.subr.mxu0 0.0
    %1358 = vmatpush2.msra.mxu0 0.0
    %1359 = vmatprep.subr.mxu0 0.0
    %1360 = vmatpush2.msra.mxu0 0.0
    %1361 = vmatprep.subr.mxu0 0.0
    %1362 = vmatpush2.msra.mxu0 0.0
    %1363 = vmatprep.subr.mxu0 0.0
    %1364 = vmatpush2.msra.mxu0 0.0
    %1365 = vmatprep.subr.mxu0 0.0
    %1366 = vmatpush2.msra.mxu0 0.0
    %1367 = vmatprep.subr.mxu0 0.0
    %1368 = vmatpush2.msra.mxu0 0.0
    %1369 = vmatprep.subr.mxu0 0.0
    %1370 = vmatpush2.msra.mxu0 0.0
    %1371 = vmatprep.mubr.f32.mxu0 0.0
    %1372 = vmatmul.mubr.f32.gmra.mxu0 %v1302
    %v1373 = vpop.f32.mrf.mxu0
    %v1374 = vadd.f32 %v1126, %v1373
    %v1375 = vpop.f32.mrf.mxu0
    %v1376 = vadd.f32 %v1130, %v1375
    %1377 = vdwg.mxu0
    %1378 = vmatprep.subr.mxu0 0.0
    %1379 = vmatpush1.msra.mxu0 %v1120
    %1380 = vmatprep.subr.mxu0 0.0
    %1381 = vmatpush1.msra.mxu0 %v1117
    %1382 = vmatprep.subr.mxu0 0.0
    %1383 = vmatpush1.msra.mxu0 %v1114
    %1384 = vmatprep.subr.mxu0 0.0
    %1385 = vmatpush1.msra.mxu0 %v1111
    %1386 = vmatprep.subr.mxu0 0.0
    %1387 = vmatpush1.msra.mxu0 %v1108
    %1388 = vmatprep.subr.mxu0 0.0
    %1389 = vmatpush1.msra.mxu0 %v1105
    %1390 = vmatprep.subr.mxu0 0.0
    %1391 = vmatpush1.msra.mxu0 %v1102
    %1392 = vmatprep.subr.mxu0 0.0
    %1393 = vmatpush1.msra.mxu0 %v1099
    %1394 = vmatprep.subr.mxu0 0.0
    %1395 = vmatpush1.msra.mxu0 %v1096
    %1396 = vmatprep.subr.mxu0 0.0
    %1397 = vmatpush1.msra.mxu0 %v1093
    %1398 = vmatprep.subr.mxu0 0.0
    %1399 = vmatpush1.msra.mxu0 %v1090
    %1400 = vmatprep.subr.mxu0 0.0
    %1401 = vmatpush1.msra.mxu0 %v1087
    %1402 = vmatprep.subr.mxu0 0.0
    %1403 = vmatpush1.msra.mxu0 %v1084
    %1404 = vmatprep.subr.mxu0 0.0
    %1405 = vmatpush1.msra.mxu0 %v1081
    %1406 = vmatprep.subr.mxu0 0.0
    %1407 = vmatpush1.msra.mxu0 %v1078
    %1408 = vmatprep.subr.mxu0 0.0
    %1409 = vmatpush1.msra.mxu0 %v1075
    %1410 = vmatprep.subr.mxu0 0.0
    %1411 = vmatpush2.msra.mxu0 0.0
    %1412 = vmatprep.subr.mxu0 0.0
    %1413 = vmatpush2.msra.mxu0 0.0
    %1414 = vmatprep.subr.mxu0 0.0
    %1415 = vmatpush2.msra.mxu0 0.0
    %1416 = vmatprep.subr.mxu0 0.0
    %1417 = vmatpush2.msra.mxu0 0.0
    %1418 = vmatprep.subr.mxu0 0.0
    %1419 = vmatpush2.msra.mxu0 0.0
    %1420 = vmatprep.subr.mxu0 0.0
    %1421 = vmatpush2.msra.mxu0 0.0
    %1422 = vmatprep.subr.mxu0 0.0
    %1423 = vmatpush2.msra.mxu0 0.0
    %1424 = vmatprep.subr.mxu0 0.0
    %1425 = vmatpush2.msra.mxu0 0.0
    %1426 = vmatprep.subr.mxu0 0.0
    %1427 = vmatpush2.msra.mxu0 0.0
    %1428 = vmatprep.subr.mxu0 0.0
    %1429 = vmatpush2.msra.mxu0 0.0
    %1430 = vmatprep.subr.mxu0 0.0
    %1431 = vmatpush2.msra.mxu0 0.0
    %1432 = vmatprep.subr.mxu0 0.0
    %1433 = vmatpush2.msra.mxu0 0.0
    %1434 = vmatprep.subr.mxu0 0.0
    %1435 = vmatpush2.msra.mxu0 0.0
    %1436 = vmatprep.subr.mxu0 0.0
    %1437 = vmatpush2.msra.mxu0 0.0
    %1438 = vmatprep.subr.mxu0 0.0
    %1439 = vmatpush2.msra.mxu0 0.0
    %1440 = vmatprep.subr.mxu0 0.0
    %1441 = vmatpush2.msra.mxu0 0.0
    %1442 = vmatprep.mubr.f32.mxu0 0.0
    %1443 = vmatmul.mubr.f32.gmra.mxu0 %v1302
    %v1444 = vpop.f32.mrf.mxu0
    %v1445 = vadd.f32 %v1134, %v1444
    %v1446 = vpop.f32.mrf.mxu0
    %1447 = vdwg.mxu0
    %v1448 = vadd.f32 %v1304, %v1374
    %v1449 = vxor.u32 %v1448, 2147483648
    %v1450 = vmul.f32 %v1449, 1.442695
    %v1451 = vpow.pop %v1450
    %v1452 = vadd.f32 %v1451, 1.0
    %v1453 = vrcp.pop %v1452
    %v1454 = vmul.f32 1.0, %v1453
    %v1455 = vadd.f32 %v1305, %v1376
    %v1456 = vxor.u32 %v1455, 2147483648
    %v1457 = vmul.f32 %v1456, 1.442695
    %v1458 = vpow.pop %v1457
    %v1459 = vadd.f32 %v1458, 1.0
    %v1460 = vrcp.pop %v1459
    %v1461 = vmul.f32 1.0, %v1460
    %v1462 = vmul.f32 %v1454, %v1445
    %v1463 = vadd.f32 %v1306, %v1462
    %v1464 = vtanh.pop %v1463
    %v1465 = vsub.f32 %v1302, %v1464
    %v1466 = vmul.f32 %v1461, %v1465
    %v1467 = vadd.f32 %v1464, %v1466
    %1468 = vst [vmem:[#allocation12 + $0x8] sm:$0xff] %v1467
    %v1469 = vld [vmem:[#allocation2 + $0x30] sm:$0xff]
    %v1470 = vld [vmem:[#allocation2 + $0x38] sm:$0xff]
    %v1471 = vld [vmem:[#allocation2 + $0x40] sm:$0xff]
    %1472 = vmatprep.subr.mxu0 %v1119
    %1473 = vmatpush1.msra.mxu0 %v1118
    %1474 = vmatprep.subr.mxu0 %v1116
    %1475 = vmatpush1.msra.mxu0 %v1115
    %1476 = vmatprep.subr.mxu0 %v1113
    %1477 = vmatpush1.msra.mxu0 %v1112
    %1478 = vmatprep.subr.mxu0 %v1110
    %1479 = vmatpush1.msra.mxu0 %v1109
    %1480 = vmatprep.subr.mxu0 %v1107
    %1481 = vmatpush1.msra.mxu0 %v1106
    %1482 = vmatprep.subr.mxu0 %v1104
    %1483 = vmatpush1.msra.mxu0 %v1103
    %1484 = vmatprep.subr.mxu0 %v1101
    %1485 = vmatpush1.msra.mxu0 %v1100
    %1486 = vmatprep.subr.mxu0 %v1098
    %1487 = vmatpush1.msra.mxu0 %v1097
    %1488 = vmatprep.subr.mxu0 %v1095
    %1489 = vmatpush1.msra.mxu0 %v1094
    %1490 = vmatprep.subr.mxu0 %v1092
    %1491 = vmatpush1.msra.mxu0 %v1091
    %1492 = vmatprep.subr.mxu0 %v1089
    %1493 = vmatpush1.msra.mxu0 %v1088
    %1494 = vmatprep.subr.mxu0 %v1086
    %1495 = vmatpush1.msra.mxu0 %v1085
    %1496 = vmatprep.subr.mxu0 %v1083
    %1497 = vmatpush1.msra.mxu0 %v1082
    %1498 = vmatprep.subr.mxu0 %v1080
    %1499 = vmatpush1.msra.mxu0 %v1079
    %1500 = vmatprep.subr.mxu0 %v1077
    %1501 = vmatpush1.msra.mxu0 %v1076
    %1502 = vmatprep.subr.mxu0 %v1074
    %1503 = vmatpush1.msra.mxu0 %v1073
    %1504 = vmatprep.subr.mxu0 0.0
    %1505 = vmatpush2.msra.mxu0 0.0
    %1506 = vmatprep.subr.mxu0 0.0
    %1507 = vmatpush2.msra.mxu0 0.0
    %1508 = vmatprep.subr.mxu0 0.0
    %1509 = vmatpush2.msra.mxu0 0.0
    %1510 = vmatprep.subr.mxu0 0.0
    %1511 = vmatpush2.msra.mxu0 0.0
    %1512 = vmatprep.subr.mxu0 0.0
    %1513 = vmatpush2.msra.mxu0 0.0
    %1514 = vmatprep.subr.mxu0 0.0
    %1515 = vmatpush2.msra.mxu0 0.0
    %1516 = vmatprep.subr.mxu0 0.0
    %1517 = vmatpush2.msra.mxu0 0.0
    %1518 = vmatprep.subr.mxu0 0.0
    %1519 = vmatpush2.msra.mxu0 0.0
    %1520 = vmatprep.subr.mxu0 0.0
    %1521 = vmatpush2.msra.mxu0 0.0
    %1522 = vmatprep.subr.mxu0 0.0
    %1523 = vmatpush2.msra.mxu0 0.0
    %1524 = vmatprep.subr.mxu0 0.0
    %1525 = vmatpush2.msra.mxu0 0.0
    %1526 = vmatprep.subr.mxu0 0.0
    %1527 = vmatpush2.msra.mxu0 0.0
    %1528 = vmatprep.subr.mxu0 0.0
    %1529 = vmatpush2.msra.mxu0 0.0
    %1530 = vmatprep.subr.mxu0 0.0
    %1531 = vmatpush2.msra.mxu0 0.0
    %1532 = vmatprep.subr.mxu0 0.0
    %1533 = vmatpush2.msra.mxu0 0.0
    %1534 = vmatprep.subr.mxu0 0.0
    %1535 = vmatpush2.msra.mxu0 0.0
    %1536 = vmatprep.mubr.f32.mxu0 0.0
    %1537 = vmatmul.mubr.f32.gmra.mxu0 %v1467
    %v1538 = vpop.f32.mrf.mxu0
    %v1539 = vadd.f32 %v1126, %v1538
    %v1540 = vpop.f32.mrf.mxu0
    %v1541 = vadd.f32 %v1130, %v1540
    %1542 = vdwg.mxu0
    %1543 = vmatprep.subr.mxu0 0.0
    %1544 = vmatpush1.msra.mxu0 %v1120
    %1545 = vmatprep.subr.mxu0 0.0
    %1546 = vmatpush1.msra.mxu0 %v1117
    %1547 = vmatprep.subr.mxu0 0.0
    %1548 = vmatpush1.msra.mxu0 %v1114
    %1549 = vmatprep.subr.mxu0 0.0
    %1550 = vmatpush1.msra.mxu0 %v1111
    %1551 = vmatprep.subr.mxu0 0.0
    %1552 = vmatpush1.msra.mxu0 %v1108
    %1553 = vmatprep.subr.mxu0 0.0
    %1554 = vmatpush1.msra.mxu0 %v1105
    %1555 = vmatprep.subr.mxu0 0.0
    %1556 = vmatpush1.msra.mxu0 %v1102
    %1557 = vmatprep.subr.mxu0 0.0
    %1558 = vmatpush1.msra.mxu0 %v1099
    %1559 = vmatprep.subr.mxu0 0.0
    %1560 = vmatpush1.msra.mxu0 %v1096
    %1561 = vmatprep.subr.mxu0 0.0
    %1562 = vmatpush1.msra.mxu0 %v1093
    %1563 = vmatprep.subr.mxu0 0.0
    %1564 = vmatpush1.msra.mxu0 %v1090
    %1565 = vmatprep.subr.mxu0 0.0
    %1566 = vmatpush1.msra.mxu0 %v1087
    %1567 = vmatprep.subr.mxu0 0.0
    %1568 = vmatpush1.msra.mxu0 %v1084
    %1569 = vmatprep.subr.mxu0 0.0
    %1570 = vmatpush1.msra.mxu0 %v1081
    %1571 = vmatprep.subr.mxu0 0.0
    %1572 = vmatpush1.msra.mxu0 %v1078
    %1573 = vmatprep.subr.mxu0 0.0
    %1574 = vmatpush1.msra.mxu0 %v1075
    %1575 = vmatprep.subr.mxu0 0.0
    %1576 = vmatpush2.msra.mxu0 0.0
    %1577 = vmatprep.subr.mxu0 0.0
    %1578 = vmatpush2.msra.mxu0 0.0
    %1579 = vmatprep.subr.mxu0 0.0
    %1580 = vmatpush2.msra.mxu0 0.0
    %1581 = vmatprep.subr.mxu0 0.0
    %1582 = vmatpush2.msra.mxu0 0.0
    %1583 = vmatprep.subr.mxu0 0.0
    %1584 = vmatpush2.msra.mxu0 0.0
    %1585 = vmatprep.subr.mxu0 0.0
    %1586 = vmatpush2.msra.mxu0 0.0
    %1587 = vmatprep.subr.mxu0 0.0
    %1588 = vmatpush2.msra.mxu0 0.0
    %1589 = vmatprep.subr.mxu0 0.0
    %1590 = vmatpush2.msra.mxu0 0.0
    %1591 = vmatprep.subr.mxu0 0.0
    %1592 = vmatpush2.msra.mxu0 0.0
    %1593 = vmatprep.subr.mxu0 0.0
    %1594 = vmatpush2.msra.mxu0 0.0
    %1595 = vmatprep.subr.mxu0 0.0
    %1596 = vmatpush2.msra.mxu0 0.0
    %1597 = vmatprep.subr.mxu0 0.0
    %1598 = vmatpush2.msra.mxu0 0.0
    %1599 = vmatprep.subr.mxu0 0.0
    %1600 = vmatpush2.msra.mxu0 0.0
    %1601 = vmatprep.subr.mxu0 0.0
    %1602 = vmatpush2.msra.mxu0 0.0
    %1603 = vmatprep.subr.mxu0 0.0
    %1604 = vmatpush2.msra.mxu0 0.0
    %1605 = vmatprep.subr.mxu0 0.0
    %1606 = vmatpush2.msra.mxu0 0.0
    %1607 = vmatprep.mubr.f32.mxu0 0.0
    %1608 = vmatmul.mubr.f32.gmra.mxu0 %v1467
    %v1609 = vpop.f32.mrf.mxu0
    %v1610 = vadd.f32 %v1134, %v1609
    %v1611 = vpop.f32.mrf.mxu0
    %1612 = vdwg.mxu0
    %v1613 = vadd.f32 %v1469, %v1539
    %v1614 = vxor.u32 %v1613, 2147483648
    %v1615 = vmul.f32 %v1614, 1.442695
    %v1616 = vpow.pop %v1615
    %v1617 = vadd.f32 %v1616, 1.0
    %v1618 = vrcp.pop %v1617
    %v1619 = vmul.f32 1.0, %v1618
    %v1620 = vadd.f32 %v1470, %v1541
    %v1621 = vxor.u32 %v1620, 2147483648
    %v1622 = vmul.f32 %v1621, 1.442695
    %v1623 = vpow.pop %v1622
    %v1624 = vadd.f32 %v1623, 1.0
    %v1625 = vrcp.pop %v1624
    %v1626 = vmul.f32 1.0, %v1625
    %v1627 = vmul.f32 %v1619, %v1610
    %v1628 = vadd.f32 %v1471, %v1627
    %v1629 = vtanh.pop %v1628
    %v1630 = vsub.f32 %v1467, %v1629
    %v1631 = vmul.f32 %v1626, %v1630
    %v1632 = vadd.f32 %v1629, %v1631
    %1633 = vst [vmem:[#allocation12 + $0x10] sm:$0xff] %v1632
    %v1634 = vld [vmem:[#allocation2 + $0x48] sm:$0xff]
    %v1635 = vld [vmem:[#allocation2 + $0x50] sm:$0xff]
    %v1636 = vld [vmem:[#allocation2 + $0x58] sm:$0xff]
    %1637 = vmatprep.subr.mxu0 %v1119
    %1638 = vmatpush1.msra.mxu0 %v1118
    %1639 = vmatprep.subr.mxu0 %v1116
    %1640 = vmatpush1.msra.mxu0 %v1115
    %1641 = vmatprep.subr.mxu0 %v1113
    %1642 = vmatpush1.msra.mxu0 %v1112
    %1643 = vmatprep.subr.mxu0 %v1110
    %1644 = vmatpush1.msra.mxu0 %v1109
    %1645 = vmatprep.subr.mxu0 %v1107
    %1646 = vmatpush1.msra.mxu0 %v1106
    %1647 = vmatprep.subr.mxu0 %v1104
    %1648 = vmatpush1.msra.mxu0 %v1103
    %1649 = vmatprep.subr.mxu0 %v1101
    %1650 = vmatpush1.msra.mxu0 %v1100
    %1651 = vmatprep.subr.mxu0 %v1098
    %1652 = vmatpush1.msra.mxu0 %v1097
    %1653 = vmatprep.subr.mxu0 %v1095
    %1654 = vmatpush1.msra.mxu0 %v1094
    %1655 = vmatprep.subr.mxu0 %v1092
    %1656 = vmatpush1.msra.mxu0 %v1091
    %1657 = vmatprep.subr.mxu0 %v1089
    %1658 = vmatpush1.msra.mxu0 %v1088
    %1659 = vmatprep.subr.mxu0 %v1086
    %1660 = vmatpush1.msra.mxu0 %v1085
    %1661 = vmatprep.subr.mxu0 %v1083
    %1662 = vmatpush1.msra.mxu0 %v1082
    %1663 = vmatprep.subr.mxu0 %v1080
    %1664 = vmatpush1.msra.mxu0 %v1079
    %1665 = vmatprep.subr.mxu0 %v1077
    %1666 = vmatpush1.msra.mxu0 %v1076
    %1667 = vmatprep.subr.mxu0 %v1074
    %1668 = vmatpush1.msra.mxu0 %v1073
    %1669 = vmatprep.subr.mxu0 0.0
    %1670 = vmatpush2.msra.mxu0 0.0
    %1671 = vmatprep.subr.mxu0 0.0
    %1672 = vmatpush2.msra.mxu0 0.0
    %1673 = vmatprep.subr.mxu0 0.0
    %1674 = vmatpush2.msra.mxu0 0.0
    %1675 = vmatprep.subr.mxu0 0.0
    %1676 = vmatpush2.msra.mxu0 0.0
    %1677 = vmatprep.subr.mxu0 0.0
    %1678 = vmatpush2.msra.mxu0 0.0
    %1679 = vmatprep.subr.mxu0 0.0
    %1680 = vmatpush2.msra.mxu0 0.0
    %1681 = vmatprep.subr.mxu0 0.0
    %1682 = vmatpush2.msra.mxu0 0.0
    %1683 = vmatprep.subr.mxu0 0.0
    %1684 = vmatpush2.msra.mxu0 0.0
    %1685 = vmatprep.subr.mxu0 0.0
    %1686 = vmatpush2.msra.mxu0 0.0
    %1687 = vmatprep.subr.mxu0 0.0
    %1688 = vmatpush2.msra.mxu0 0.0
    %1689 = vmatprep.subr.mxu0 0.0
    %1690 = vmatpush2.msra.mxu0 0.0
    %1691 = vmatprep.subr.mxu0 0.0
    %1692 = vmatpush2.msra.mxu0 0.0
    %1693 = vmatprep.subr.mxu0 0.0
    %1694 = vmatpush2.msra.mxu0 0.0
    %1695 = vmatprep.subr.mxu0 0.0
    %1696 = vmatpush2.msra.mxu0 0.0
    %1697 = vmatprep.subr.mxu0 0.0
    %1698 = vmatpush2.msra.mxu0 0.0
    %1699 = vmatprep.subr.mxu0 0.0
    %1700 = vmatpush2.msra.mxu0 0.0
    %1701 = vmatprep.mubr.f32.mxu0 0.0
    %1702 = vmatmul.mubr.f32.gmra.mxu0 %v1632
    %v1703 = vpop.f32.mrf.mxu0
    %v1704 = vadd.f32 %v1126, %v1703
    %v1705 = vpop.f32.mrf.mxu0
    %v1706 = vadd.f32 %v1130, %v1705
    %1707 = vdwg.mxu0
    %1708 = vmatprep.subr.mxu0 0.0
    %1709 = vmatpush1.msra.mxu0 %v1120
    %1710 = vmatprep.subr.mxu0 0.0
    %1711 = vmatpush1.msra.mxu0 %v1117
    %1712 = vmatprep.subr.mxu0 0.0
    %1713 = vmatpush1.msra.mxu0 %v1114
    %1714 = vmatprep.subr.mxu0 0.0
    %1715 = vmatpush1.msra.mxu0 %v1111
    %1716 = vmatprep.subr.mxu0 0.0
    %1717 = vmatpush1.msra.mxu0 %v1108
    %1718 = vmatprep.subr.mxu0 0.0
    %1719 = vmatpush1.msra.mxu0 %v1105
    %1720 = vmatprep.subr.mxu0 0.0
    %1721 = vmatpush1.msra.mxu0 %v1102
    %1722 = vmatprep.subr.mxu0 0.0
    %1723 = vmatpush1.msra.mxu0 %v1099
    %1724 = vmatprep.subr.mxu0 0.0
    %1725 = vmatpush1.msra.mxu0 %v1096
    %1726 = vmatprep.subr.mxu0 0.0
    %1727 = vmatpush1.msra.mxu0 %v1093
    %1728 = vmatprep.subr.mxu0 0.0
    %1729 = vmatpush1.msra.mxu0 %v1090
    %1730 = vmatprep.subr.mxu0 0.0
    %1731 = vmatpush1.msra.mxu0 %v1087
    %1732 = vmatprep.subr.mxu0 0.0
    %1733 = vmatpush1.msra.mxu0 %v1084
    %1734 = vmatprep.subr.mxu0 0.0
    %1735 = vmatpush1.msra.mxu0 %v1081
    %1736 = vmatprep.subr.mxu0 0.0
    %1737 = vmatpush1.msra.mxu0 %v1078
    %1738 = vmatprep.subr.mxu0 0.0
    %1739 = vmatpush1.msra.mxu0 %v1075
    %1740 = vmatprep.subr.mxu0 0.0
    %1741 = vmatpush2.msra.mxu0 0.0
    %1742 = vmatprep.subr.mxu0 0.0
    %1743 = vmatpush2.msra.mxu0 0.0
    %1744 = vmatprep.subr.mxu0 0.0
    %1745 = vmatpush2.msra.mxu0 0.0
    %1746 = vmatprep.subr.mxu0 0.0
    %1747 = vmatpush2.msra.mxu0 0.0
    %1748 = vmatprep.subr.mxu0 0.0
    %1749 = vmatpush2.msra.mxu0 0.0
    %1750 = vmatprep.subr.mxu0 0.0
    %1751 = vmatpush2.msra.mxu0 0.0
    %1752 = vmatprep.subr.mxu0 0.0
    %1753 = vmatpush2.msra.mxu0 0.0
    %1754 = vmatprep.subr.mxu0 0.0
    %1755 = vmatpush2.msra.mxu0 0.0
    %1756 = vmatprep.subr.mxu0 0.0
    %1757 = vmatpush2.msra.mxu0 0.0
    %1758 = vmatprep.subr.mxu0 0.0
    %1759 = vmatpush2.msra.mxu0 0.0
    %1760 = vmatprep.subr.mxu0 0.0
    %1761 = vmatpush2.msra.mxu0 0.0
    %1762 = vmatprep.subr.mxu0 0.0
    %1763 = vmatpush2.msra.mxu0 0.0
    %1764 = vmatprep.subr.mxu0 0.0
    %1765 = vmatpush2.msra.mxu0 0.0
    %1766 = vmatprep.subr.mxu0 0.0
    %1767 = vmatpush2.msra.mxu0 0.0
    %1768 = vmatprep.subr.mxu0 0.0
    %1769 = vmatpush2.msra.mxu0 0.0
    %1770 = vmatprep.subr.mxu0 0.0
    %1771 = vmatpush2.msra.mxu0 0.0
    %1772 = vmatprep.mubr.f32.mxu0 0.0
    %1773 = vmatmul.mubr.f32.gmra.mxu0 %v1632
    %v1774 = vpop.f32.mrf.mxu0
    %v1775 = vadd.f32 %v1134, %v1774
    %v1776 = vpop.f32.mrf.mxu0
    %1777 = vdwg.mxu0
    %v1778 = vadd.f32 %v1634, %v1704
    %v1779 = vxor.u32 %v1778, 2147483648
    %v1780 = vmul.f32 %v1779, 1.442695
    %v1781 = vpow.pop %v1780
    %v1782 = vadd.f32 %v1781, 1.0
    %v1783 = vrcp.pop %v1782
    %v1784 = vmul.f32 1.0, %v1783
    %v1785 = vadd.f32 %v1635, %v1706
    %v1786 = vxor.u32 %v1785, 2147483648
    %v1787 = vmul.f32 %v1786, 1.442695
    %v1788 = vpow.pop %v1787
    %v1789 = vadd.f32 %v1788, 1.0
    %v1790 = vrcp.pop %v1789
    %v1791 = vmul.f32 1.0, %v1790
    %v1792 = vmul.f32 %v1784, %v1775
    %v1793 = vadd.f32 %v1636, %v1792
    %v1794 = vtanh.pop %v1793
    %v1795 = vsub.f32 %v1632, %v1794
    %v1796 = vmul.f32 %v1791, %v1795
    %v1797 = vadd.f32 %v1794, %v1796
    %1798 = vst [vmem:[#allocation12 + $0x18] sm:$0xff] %v1797
    %v1799 = vld [vmem:[#allocation2 + $0x60] sm:$0xff]
    %v1800 = vld [vmem:[#allocation2 + $0x68] sm:$0xff]
    %v1801 = vld [vmem:[#allocation2 + $0x70] sm:$0xff]
    %1802 = vmatprep.subr.mxu0 %v1119
    %1803 = vmatpush1.msra.mxu0 %v1118
    %1804 = vmatprep.subr.mxu0 %v1116
    %1805 = vmatpush1.msra.mxu0 %v1115
    %1806 = vmatprep.subr.mxu0 %v1113
    %1807 = vmatpush1.msra.mxu0 %v1112
    %1808 = vmatprep.subr.mxu0 %v1110
    %1809 = vmatpush1.msra.mxu0 %v1109
    %1810 = vmatprep.subr.mxu0 %v1107
    %1811 = vmatpush1.msra.mxu0 %v1106
    %1812 = vmatprep.subr.mxu0 %v1104
    %1813 = vmatpush1.msra.mxu0 %v1103
    %1814 = vmatprep.subr.mxu0 %v1101
    %1815 = vmatpush1.msra.mxu0 %v1100
    %1816 = vmatprep.subr.mxu0 %v1098
    %1817 = vmatpush1.msra.mxu0 %v1097
    %1818 = vmatprep.subr.mxu0 %v1095
    %1819 = vmatpush1.msra.mxu0 %v1094
    %1820 = vmatprep.subr.mxu0 %v1092
    %1821 = vmatpush1.msra.mxu0 %v1091
    %1822 = vmatprep.subr.mxu0 %v1089
    %1823 = vmatpush1.msra.mxu0 %v1088
    %1824 = vmatprep.subr.mxu0 %v1086
    %1825 = vmatpush1.msra.mxu0 %v1085
    %1826 = vmatprep.subr.mxu0 %v1083
    %1827 = vmatpush1.msra.mxu0 %v1082
    %1828 = vmatprep.subr.mxu0 %v1080
    %1829 = vmatpush1.msra.mxu0 %v1079
    %1830 = vmatprep.subr.mxu0 %v1077
    %1831 = vmatpush1.msra.mxu0 %v1076
    %1832 = vmatprep.subr.mxu0 %v1074
    %1833 = vmatpush1.msra.mxu0 %v1073
    %1834 = vmatprep.subr.mxu0 0.0
    %1835 = vmatpush2.msra.mxu0 0.0
    %1836 = vmatprep.subr.mxu0 0.0
    %1837 = vmatpush2.msra.mxu0 0.0
    %1838 = vmatprep.subr.mxu0 0.0
    %1839 = vmatpush2.msra.mxu0 0.0
    %1840 = vmatprep.subr.mxu0 0.0
    %1841 = vmatpush2.msra.mxu0 0.0
    %1842 = vmatprep.subr.mxu0 0.0
    %1843 = vmatpush2.msra.mxu0 0.0
    %1844 = vmatprep.subr.mxu0 0.0
    %1845 = vmatpush2.msra.mxu0 0.0
    %1846 = vmatprep.subr.mxu0 0.0
    %1847 = vmatpush2.msra.mxu0 0.0
    %1848 = vmatprep.subr.mxu0 0.0
    %1849 = vmatpush2.msra.mxu0 0.0
    %1850 = vmatprep.subr.mxu0 0.0
    %1851 = vmatpush2.msra.mxu0 0.0
    %1852 = vmatprep.subr.mxu0 0.0
    %1853 = vmatpush2.msra.mxu0 0.0
    %1854 = vmatprep.subr.mxu0 0.0
    %1855 = vmatpush2.msra.mxu0 0.0
    %1856 = vmatprep.subr.mxu0 0.0
    %1857 = vmatpush2.msra.mxu0 0.0
    %1858 = vmatprep.subr.mxu0 0.0
    %1859 = vmatpush2.msra.mxu0 0.0
    %1860 = vmatprep.subr.mxu0 0.0
    %1861 = vmatpush2.msra.mxu0 0.0
    %1862 = vmatprep.subr.mxu0 0.0
    %1863 = vmatpush2.msra.mxu0 0.0
    %1864 = vmatprep.subr.mxu0 0.0
    %1865 = vmatpush2.msra.mxu0 0.0
    %1866 = vmatprep.mubr.f32.mxu0 0.0
    %1867 = vmatmul.mubr.f32.gmra.mxu0 %v1797
    %v1868 = vpop.f32.mrf.mxu0
    %v1869 = vadd.f32 %v1126, %v1868
    %v1870 = vpop.f32.mrf.mxu0
    %v1871 = vadd.f32 %v1130, %v1870
    %1872 = vdwg.mxu0
    %1873 = vmatprep.subr.mxu0 0.0
    %1874 = vmatpush1.msra.mxu0 %v1120
    %1875 = vmatprep.subr.mxu0 0.0
    %1876 = vmatpush1.msra.mxu0 %v1117
    %1877 = vmatprep.subr.mxu0 0.0
    %1878 = vmatpush1.msra.mxu0 %v1114
    %1879 = vmatprep.subr.mxu0 0.0
    %1880 = vmatpush1.msra.mxu0 %v1111
    %1881 = vmatprep.subr.mxu0 0.0
    %1882 = vmatpush1.msra.mxu0 %v1108
    %1883 = vmatprep.subr.mxu0 0.0
    %1884 = vmatpush1.msra.mxu0 %v1105
    %1885 = vmatprep.subr.mxu0 0.0
    %1886 = vmatpush1.msra.mxu0 %v1102
    %1887 = vmatprep.subr.mxu0 0.0
    %1888 = vmatpush1.msra.mxu0 %v1099
    %1889 = vmatprep.subr.mxu0 0.0
    %1890 = vmatpush1.msra.mxu0 %v1096
    %1891 = vmatprep.subr.mxu0 0.0
    %1892 = vmatpush1.msra.mxu0 %v1093
    %1893 = vmatprep.subr.mxu0 0.0
    %1894 = vmatpush1.msra.mxu0 %v1090
    %1895 = vmatprep.subr.mxu0 0.0
    %1896 = vmatpush1.msra.mxu0 %v1087
    %1897 = vmatprep.subr.mxu0 0.0
    %1898 = vmatpush1.msra.mxu0 %v1084
    %1899 = vmatprep.subr.mxu0 0.0
    %1900 = vmatpush1.msra.mxu0 %v1081
    %1901 = vmatprep.subr.mxu0 0.0
    %1902 = vmatpush1.msra.mxu0 %v1078
    %1903 = vmatprep.subr.mxu0 0.0
    %1904 = vmatpush1.msra.mxu0 %v1075
    %1905 = vmatprep.subr.mxu0 0.0
    %1906 = vmatpush2.msra.mxu0 0.0
    %1907 = vmatprep.subr.mxu0 0.0
    %1908 = vmatpush2.msra.mxu0 0.0
    %1909 = vmatprep.subr.mxu0 0.0
    %1910 = vmatpush2.msra.mxu0 0.0
    %1911 = vmatprep.subr.mxu0 0.0
    %1912 = vmatpush2.msra.mxu0 0.0
    %1913 = vmatprep.subr.mxu0 0.0
    %1914 = vmatpush2.msra.mxu0 0.0
    %1915 = vmatprep.subr.mxu0 0.0
    %1916 = vmatpush2.msra.mxu0 0.0
    %1917 = vmatprep.subr.mxu0 0.0
    %1918 = vmatpush2.msra.mxu0 0.0
    %1919 = vmatprep.subr.mxu0 0.0
    %1920 = vmatpush2.msra.mxu0 0.0
    %1921 = vmatprep.subr.mxu0 0.0
    %1922 = vmatpush2.msra.mxu0 0.0
    %1923 = vmatprep.subr.mxu0 0.0
    %1924 = vmatpush2.msra.mxu0 0.0
    %1925 = vmatprep.subr.mxu0 0.0
    %1926 = vmatpush2.msra.mxu0 0.0
    %1927 = vmatprep.subr.mxu0 0.0
    %1928 = vmatpush2.msra.mxu0 0.0
    %1929 = vmatprep.subr.mxu0 0.0
    %1930 = vmatpush2.msra.mxu0 0.0
    %1931 = vmatprep.subr.mxu0 0.0
    %1932 = vmatpush2.msra.mxu0 0.0
    %1933 = vmatprep.subr.mxu0 0.0
    %1934 = vmatpush2.msra.mxu0 0.0
    %1935 = vmatprep.subr.mxu0 0.0
    %1936 = vmatpush2.msra.mxu0 0.0
    %1937 = vmatprep.mubr.f32.mxu0 0.0
    %1938 = vmatmul.mubr.f32.gmra.mxu0 %v1797
    %v1939 = vpop.f32.mrf.mxu0
    %v1940 = vadd.f32 %v1134, %v1939
    %v1941 = vpop.f32.mrf.mxu0
    %1942 = vdwg.mxu0
    %v1943 = vadd.f32 %v1799, %v1869
    %v1944 = vxor.u32 %v1943, 2147483648
    %v1945 = vmul.f32 %v1944, 1.442695
    %v1946 = vpow.pop %v1945
    %v1947 = vadd.f32 %v1946, 1.0
    %v1948 = vrcp.pop %v1947
    %v1949 = vmul.f32 1.0, %v1948
    %v1950 = vadd.f32 %v1800, %v1871
    %v1951 = vxor.u32 %v1950, 2147483648
    %v1952 = vmul.f32 %v1951, 1.442695
    %v1953 = vpow.pop %v1952
    %v1954 = vadd.f32 %v1953, 1.0
    %v1955 = vrcp.pop %v1954
    %v1956 = vmul.f32 1.0, %v1955
    %v1957 = vmul.f32 %v1949, %v1940
    %v1958 = vadd.f32 %v1801, %v1957
    %v1959 = vtanh.pop %v1958
    %v1960 = vsub.f32 %v1797, %v1959
    %v1961 = vmul.f32 %v1956, %v1960
    %v1962 = vadd.f32 %v1959, %v1961
    %1963 = vst [vmem:[#allocation12 + $0x20] sm:$0xff] %v1962
    %v1964 = vld [vmem:[#allocation2 + $0x78] sm:$0xff]
    %v1965 = vld [vmem:[#allocation2 + $0x80] sm:$0xff]
    %v1966 = vld [vmem:[#allocation2 + $0x88] sm:$0xff]
    %1967 = vmatprep.subr.mxu0 %v1119
    %1968 = vmatpush1.msra.mxu0 %v1118
    %1969 = vmatprep.subr.mxu0 %v1116
    %1970 = vmatpush1.msra.mxu0 %v1115
    %1971 = vmatprep.subr.mxu0 %v1113
    %1972 = vmatpush1.msra.mxu0 %v1112
    %1973 = vmatprep.subr.mxu0 %v1110
    %1974 = vmatpush1.msra.mxu0 %v1109
    %1975 = vmatprep.subr.mxu0 %v1107
    %1976 = vmatpush1.msra.mxu0 %v1106
    %1977 = vmatprep.subr.mxu0 %v1104
    %1978 = vmatpush1.msra.mxu0 %v1103
    %1979 = vmatprep.subr.mxu0 %v1101
    %1980 = vmatpush1.msra.mxu0 %v1100
    %1981 = vmatprep.subr.mxu0 %v1098
    %1982 = vmatpush1.msra.mxu0 %v1097
    %1983 = vmatprep.subr.mxu0 %v1095
    %1984 = vmatpush1.msra.mxu0 %v1094
    %1985 = vmatprep.subr.mxu0 %v1092
    %1986 = vmatpush1.msra.mxu0 %v1091
    %1987 = vmatprep.subr.mxu0 %v1089
    %1988 = vmatpush1.msra.mxu0 %v1088
    %1989 = vmatprep.subr.mxu0 %v1086
    %1990 = vmatpush1.msra.mxu0 %v1085
    %1991 = vmatprep.subr.mxu0 %v1083
    %1992 = vmatpush1.msra.mxu0 %v1082
    %1993 = vmatprep.subr.mxu0 %v1080
    %1994 = vmatpush1.msra.mxu0 %v1079
    %1995 = vmatprep.subr.mxu0 %v1077
    %1996 = vmatpush1.msra.mxu0 %v1076
    %1997 = vmatprep.subr.mxu0 %v1074
    %1998 = vmatpush1.msra.mxu0 %v1073
    %1999 = vmatprep.subr.mxu0 0.0
    %2000 = vmatpush2.msra.mxu0 0.0
    %2001 = vmatprep.subr.mxu0 0.0
    %2002 = vmatpush2.msra.mxu0 0.0
    %2003 = vmatprep.subr.mxu0 0.0
    %2004 = vmatpush2.msra.mxu0 0.0
    %2005 = vmatprep.subr.mxu0 0.0
    %2006 = vmatpush2.msra.mxu0 0.0
    %2007 = vmatprep.subr.mxu0 0.0
    %2008 = vmatpush2.msra.mxu0 0.0
    %2009 = vmatprep.subr.mxu0 0.0
    %2010 = vmatpush2.msra.mxu0 0.0
    %2011 = vmatprep.subr.mxu0 0.0
    %2012 = vmatpush2.msra.mxu0 0.0
    %2013 = vmatprep.subr.mxu0 0.0
    %2014 = vmatpush2.msra.mxu0 0.0
    %2015 = vmatprep.subr.mxu0 0.0
    %2016 = vmatpush2.msra.mxu0 0.0
    %2017 = vmatprep.subr.mxu0 0.0
    %2018 = vmatpush2.msra.mxu0 0.0
    %2019 = vmatprep.subr.mxu0 0.0
    %2020 = vmatpush2.msra.mxu0 0.0
    %2021 = vmatprep.subr.mxu0 0.0
    %2022 = vmatpush2.msra.mxu0 0.0
    %2023 = vmatprep.subr.mxu0 0.0
    %2024 = vmatpush2.msra.mxu0 0.0
    %2025 = vmatprep.subr.mxu0 0.0
    %2026 = vmatpush2.msra.mxu0 0.0
    %2027 = vmatprep.subr.mxu0 0.0
    %2028 = vmatpush2.msra.mxu0 0.0
    %2029 = vmatprep.subr.mxu0 0.0
    %2030 = vmatpush2.msra.mxu0 0.0
    %2031 = vmatprep.mubr.f32.mxu0 0.0
    %2032 = vmatmul.mubr.f32.gmra.mxu0 %v1962
    %v2033 = vpop.f32.mrf.mxu0
    %v2034 = vadd.f32 %v1126, %v2033
    %v2035 = vpop.f32.mrf.mxu0
    %v2036 = vadd.f32 %v1130, %v2035
    %2037 = vdwg.mxu0
    %2038 = vmatprep.subr.mxu0 0.0
    %2039 = vmatpush1.msra.mxu0 %v1120
    %2040 = vmatprep.subr.mxu0 0.0
    %2041 = vmatpush1.msra.mxu0 %v1117
    %2042 = vmatprep.subr.mxu0 0.0
    %2043 = vmatpush1.msra.mxu0 %v1114
    %2044 = vmatprep.subr.mxu0 0.0
    %2045 = vmatpush1.msra.mxu0 %v1111
    %2046 = vmatprep.subr.mxu0 0.0
    %2047 = vmatpush1.msra.mxu0 %v1108
    %2048 = vmatprep.subr.mxu0 0.0
    %2049 = vmatpush1.msra.mxu0 %v1105
    %2050 = vmatprep.subr.mxu0 0.0
    %2051 = vmatpush1.msra.mxu0 %v1102
    %2052 = vmatprep.subr.mxu0 0.0
    %2053 = vmatpush1.msra.mxu0 %v1099
    %2054 = vmatprep.subr.mxu0 0.0
    %2055 = vmatpush1.msra.mxu0 %v1096
    %2056 = vmatprep.subr.mxu0 0.0
    %2057 = vmatpush1.msra.mxu0 %v1093
    %2058 = vmatprep.subr.mxu0 0.0
    %2059 = vmatpush1.msra.mxu0 %v1090
    %2060 = vmatprep.subr.mxu0 0.0
    %2061 = vmatpush1.msra.mxu0 %v1087
    %2062 = vmatprep.subr.mxu0 0.0
    %2063 = vmatpush1.msra.mxu0 %v1084
    %2064 = vmatprep.subr.mxu0 0.0
    %2065 = vmatpush1.msra.mxu0 %v1081
    %2066 = vmatprep.subr.mxu0 0.0
    %2067 = vmatpush1.msra.mxu0 %v1078
    %2068 = vmatprep.subr.mxu0 0.0
    %2069 = vmatpush1.msra.mxu0 %v1075
    %2070 = vmatprep.subr.mxu0 0.0
    %2071 = vmatpush2.msra.mxu0 0.0
    %2072 = vmatprep.subr.mxu0 0.0
    %2073 = vmatpush2.msra.mxu0 0.0
    %2074 = vmatprep.subr.mxu0 0.0
    %2075 = vmatpush2.msra.mxu0 0.0
    %2076 = vmatprep.subr.mxu0 0.0
    %2077 = vmatpush2.msra.mxu0 0.0
    %2078 = vmatprep.subr.mxu0 0.0
    %2079 = vmatpush2.msra.mxu0 0.0
    %2080 = vmatprep.subr.mxu0 0.0
    %2081 = vmatpush2.msra.mxu0 0.0
    %2082 = vmatprep.subr.mxu0 0.0
    %2083 = vmatpush2.msra.mxu0 0.0
    %2084 = vmatprep.subr.mxu0 0.0
    %2085 = vmatpush2.msra.mxu0 0.0
    %2086 = vmatprep.subr.mxu0 0.0
    %2087 = vmatpush2.msra.mxu0 0.0
    %2088 = vmatprep.subr.mxu0 0.0
    %2089 = vmatpush2.msra.mxu0 0.0
    %2090 = vmatprep.subr.mxu0 0.0
    %2091 = vmatpush2.msra.mxu0 0.0
    %2092 = vmatprep.subr.mxu0 0.0
    %2093 = vmatpush2.msra.mxu0 0.0
    %2094 = vmatprep.subr.mxu0 0.0
    %2095 = vmatpush2.msra.mxu0 0.0
    %2096 = vmatprep.subr.mxu0 0.0
    %2097 = vmatpush2.msra.mxu0 0.0
    %2098 = vmatprep.subr.mxu0 0.0
    %2099 = vmatpush2.msra.mxu0 0.0
    %2100 = vmatprep.subr.mxu0 0.0
    %2101 = vmatpush2.msra.mxu0 0.0
    %2102 = vmatprep.mubr.f32.mxu0 0.0
    %2103 = vmatmul.mubr.f32.gmra.mxu0 %v1962
    %v2104 = vpop.f32.mrf.mxu0
    %v2105 = vadd.f32 %v1134, %v2104
    %v2106 = vpop.f32.mrf.mxu0
    %2107 = vdwg.mxu0
    %v2108 = vadd.f32 %v1964, %v2034
    %v2109 = vxor.u32 %v2108, 2147483648
    %v2110 = vmul.f32 %v2109, 1.442695
    %v2111 = vpow.pop %v2110
    %v2112 = vadd.f32 %v2111, 1.0
    %v2113 = vrcp.pop %v2112
    %v2114 = vmul.f32 1.0, %v2113
    %v2115 = vadd.f32 %v1965, %v2036
    %v2116 = vxor.u32 %v2115, 2147483648
    %v2117 = vmul.f32 %v2116, 1.442695
    %v2118 = vpow.pop %v2117
    %v2119 = vadd.f32 %v2118, 1.0
    %v2120 = vrcp.pop %v2119
    %v2121 = vmul.f32 1.0, %v2120
    %v2122 = vmul.f32 %v2114, %v2105
    %v2123 = vadd.f32 %v1966, %v2122
    %v2124 = vtanh.pop %v2123
    %v2125 = vsub.f32 %v1962, %v2124
    %v2126 = vmul.f32 %v2121, %v2125
    %v2127 = vadd.f32 %v2124, %v2126
    %2128 = vst [vmem:[#allocation12 + $0x28] sm:$0xff] %v2127
    %v2129 = vld [vmem:[#allocation2 + $0x90] sm:$0xff]
    %v2130 = vld [vmem:[#allocation2 + $0x98] sm:$0xff]
    %v2131 = vld [vmem:[#allocation2 + $0xa0] sm:$0xff]
    %2132 = vmatprep.subr.mxu0 %v1119
    %2133 = vmatpush1.msra.mxu0 %v1118
    %2134 = vmatprep.subr.mxu0 %v1116
    %2135 = vmatpush1.msra.mxu0 %v1115
    %2136 = vmatprep.subr.mxu0 %v1113
    %2137 = vmatpush1.msra.mxu0 %v1112
    %2138 = vmatprep.subr.mxu0 %v1110
    %2139 = vmatpush1.msra.mxu0 %v1109
    %2140 = vmatprep.subr.mxu0 %v1107
    %2141 = vmatpush1.msra.mxu0 %v1106
    %2142 = vmatprep.subr.mxu0 %v1104
    %2143 = vmatpush1.msra.mxu0 %v1103
    %2144 = vmatprep.subr.mxu0 %v1101
    %2145 = vmatpush1.msra.mxu0 %v1100
    %2146 = vmatprep.subr.mxu0 %v1098
    %2147 = vmatpush1.msra.mxu0 %v1097
    %2148 = vmatprep.subr.mxu0 %v1095
    %2149 = vmatpush1.msra.mxu0 %v1094
    %2150 = vmatprep.subr.mxu0 %v1092
    %2151 = vmatpush1.msra.mxu0 %v1091
    %2152 = vmatprep.subr.mxu0 %v1089
    %2153 = vmatpush1.msra.mxu0 %v1088
    %2154 = vmatprep.subr.mxu0 %v1086
    %2155 = vmatpush1.msra.mxu0 %v1085
    %2156 = vmatprep.subr.mxu0 %v1083
    %2157 = vmatpush1.msra.mxu0 %v1082
    %2158 = vmatprep.subr.mxu0 %v1080
    %2159 = vmatpush1.msra.mxu0 %v1079
    %2160 = vmatprep.subr.mxu0 %v1077
    %2161 = vmatpush1.msra.mxu0 %v1076
    %2162 = vmatprep.subr.mxu0 %v1074
    %2163 = vmatpush1.msra.mxu0 %v1073
    %2164 = vmatprep.subr.mxu0 0.0
    %2165 = vmatpush2.msra.mxu0 0.0
    %2166 = vmatprep.subr.mxu0 0.0
    %2167 = vmatpush2.msra.mxu0 0.0
    %2168 = vmatprep.subr.mxu0 0.0
    %2169 = vmatpush2.msra.mxu0 0.0
    %2170 = vmatprep.subr.mxu0 0.0
    %2171 = vmatpush2.msra.mxu0 0.0
    %2172 = vmatprep.subr.mxu0 0.0
    %2173 = vmatpush2.msra.mxu0 0.0
    %2174 = vmatprep.subr.mxu0 0.0
    %2175 = vmatpush2.msra.mxu0 0.0
    %2176 = vmatprep.subr.mxu0 0.0
    %2177 = vmatpush2.msra.mxu0 0.0
    %2178 = vmatprep.subr.mxu0 0.0
    %2179 = vmatpush2.msra.mxu0 0.0
    %2180 = vmatprep.subr.mxu0 0.0
    %2181 = vmatpush2.msra.mxu0 0.0
    %2182 = vmatprep.subr.mxu0 0.0
    %2183 = vmatpush2.msra.mxu0 0.0
    %2184 = vmatprep.subr.mxu0 0.0
    %2185 = vmatpush2.msra.mxu0 0.0
    %2186 = vmatprep.subr.mxu0 0.0
    %2187 = vmatpush2.msra.mxu0 0.0
    %2188 = vmatprep.subr.mxu0 0.0
    %2189 = vmatpush2.msra.mxu0 0.0
    %2190 = vmatprep.subr.mxu0 0.0
    %2191 = vmatpush2.msra.mxu0 0.0
    %2192 = vmatprep.subr.mxu0 0.0
    %2193 = vmatpush2.msra.mxu0 0.0
    %2194 = vmatprep.subr.mxu0 0.0
    %2195 = vmatpush2.msra.mxu0 0.0
    %2196 = vmatprep.mubr.f32.mxu0 0.0
    %2197 = vmatmul.mubr.f32.gmra.mxu0 %v2127
    %v2198 = vpop.f32.mrf.mxu0
    %v2199 = vadd.f32 %v1126, %v2198
    %v2200 = vpop.f32.mrf.mxu0
    %v2201 = vadd.f32 %v1130, %v2200
    %2202 = vdwg.mxu0
    %2203 = vmatprep.subr.mxu0 0.0
    %2204 = vmatpush1.msra.mxu0 %v1120
    %2205 = vmatprep.subr.mxu0 0.0
    %2206 = vmatpush1.msra.mxu0 %v1117
    %2207 = vmatprep.subr.mxu0 0.0
    %2208 = vmatpush1.msra.mxu0 %v1114
    %2209 = vmatprep.subr.mxu0 0.0
    %2210 = vmatpush1.msra.mxu0 %v1111
    %2211 = vmatprep.subr.mxu0 0.0
    %2212 = vmatpush1.msra.mxu0 %v1108
    %2213 = vmatprep.subr.mxu0 0.0
    %2214 = vmatpush1.msra.mxu0 %v1105
    %2215 = vmatprep.subr.mxu0 0.0
    %2216 = vmatpush1.msra.mxu0 %v1102
    %2217 = vmatprep.subr.mxu0 0.0
    %2218 = vmatpush1.msra.mxu0 %v1099
    %2219 = vmatprep.subr.mxu0 0.0
    %2220 = vmatpush1.msra.mxu0 %v1096
    %2221 = vmatprep.subr.mxu0 0.0
    %2222 = vmatpush1.msra.mxu0 %v1093
    %2223 = vmatprep.subr.mxu0 0.0
    %2224 = vmatpush1.msra.mxu0 %v1090
    %2225 = vmatprep.subr.mxu0 0.0
    %2226 = vmatpush1.msra.mxu0 %v1087
    %2227 = vmatprep.subr.mxu0 0.0
    %2228 = vmatpush1.msra.mxu0 %v1084
    %2229 = vmatprep.subr.mxu0 0.0
    %2230 = vmatpush1.msra.mxu0 %v1081
    %2231 = vmatprep.subr.mxu0 0.0
    %2232 = vmatpush1.msra.mxu0 %v1078
    %2233 = vmatprep.subr.mxu0 0.0
    %2234 = vmatpush1.msra.mxu0 %v1075
    %2235 = vmatprep.subr.mxu0 0.0
    %2236 = vmatpush2.msra.mxu0 0.0
    %2237 = vmatprep.subr.mxu0 0.0
    %2238 = vmatpush2.msra.mxu0 0.0
    %2239 = vmatprep.subr.mxu0 0.0
    %2240 = vmatpush2.msra.mxu0 0.0
    %2241 = vmatprep.subr.mxu0 0.0
    %2242 = vmatpush2.msra.mxu0 0.0
    %2243 = vmatprep.subr.mxu0 0.0
    %2244 = vmatpush2.msra.mxu0 0.0
    %2245 = vmatprep.subr.mxu0 0.0
    %2246 = vmatpush2.msra.mxu0 0.0
    %2247 = vmatprep.subr.mxu0 0.0
    %2248 = vmatpush2.msra.mxu0 0.0
    %2249 = vmatprep.subr.mxu0 0.0
    %2250 = vmatpush2.msra.mxu0 0.0
    %2251 = vmatprep.subr.mxu0 0.0
    %2252 = vmatpush2.msra.mxu0 0.0
    %2253 = vmatprep.subr.mxu0 0.0
    %2254 = vmatpush2.msra.mxu0 0.0
    %2255 = vmatprep.subr.mxu0 0.0
    %2256 = vmatpush2.msra.mxu0 0.0
    %2257 = vmatprep.subr.mxu0 0.0
    %2258 = vmatpush2.msra.mxu0 0.0
    %2259 = vmatprep.subr.mxu0 0.0
    %2260 = vmatpush2.msra.mxu0 0.0
    %2261 = vmatprep.subr.mxu0 0.0
    %2262 = vmatpush2.msra.mxu0 0.0
    %2263 = vmatprep.subr.mxu0 0.0
    %2264 = vmatpush2.msra.mxu0 0.0
    %2265 = vmatprep.subr.mxu0 0.0
    %2266 = vmatpush2.msra.mxu0 0.0
    %2267 = vmatprep.mubr.f32.mxu0 0.0
    %2268 = vmatmul.mubr.f32.gmra.mxu0 %v2127
    %v2269 = vpop.f32.mrf.mxu0
    %v2270 = vadd.f32 %v1134, %v2269
    %v2271 = vpop.f32.mrf.mxu0
    %2272 = vdwg.mxu0
    %v2273 = vadd.f32 %v2129, %v2199
    %v2274 = vxor.u32 %v2273, 2147483648
    %v2275 = vmul.f32 %v2274, 1.442695
    %v2276 = vpow.pop %v2275
    %v2277 = vadd.f32 %v2276, 1.0
    %v2278 = vrcp.pop %v2277
    %v2279 = vmul.f32 1.0, %v2278
    %v2280 = vadd.f32 %v2130, %v2201
    %v2281 = vxor.u32 %v2280, 2147483648
    %v2282 = vmul.f32 %v2281, 1.442695
    %v2283 = vpow.pop %v2282
    %v2284 = vadd.f32 %v2283, 1.0
    %v2285 = vrcp.pop %v2284
    %v2286 = vmul.f32 1.0, %v2285
    %v2287 = vmul.f32 %v2279, %v2270
    %v2288 = vadd.f32 %v2131, %v2287
    %v2289 = vtanh.pop %v2288
    %v2290 = vsub.f32 %v2127, %v2289
    %v2291 = vmul.f32 %v2286, %v2290
    %v2292 = vadd.f32 %v2289, %v2291
    %2293 = vst [vmem:[#allocation12 + $0x30] sm:$0xff] %v2292
    %v2294 = vld [vmem:[#allocation2 + $0xa8] sm:$0xff]
    %v2295 = vld [vmem:[#allocation2 + $0xb0] sm:$0xff]
    %v2296 = vld [vmem:[#allocation2 + $0xb8] sm:$0xff]
    %2297 = vmatprep.subr.mxu0 %v1119
    %2298 = vmatpush1.msra.mxu0 %v1118
    %2299 = vmatprep.subr.mxu0 %v1116
    %2300 = vmatpush1.msra.mxu0 %v1115
    %2301 = vmatprep.subr.mxu0 %v1113
    %2302 = vmatpush1.msra.mxu0 %v1112
    %2303 = vmatprep.subr.mxu0 %v1110
    %2304 = vmatpush1.msra.mxu0 %v1109
    %2305 = vmatprep.subr.mxu0 %v1107
    %2306 = vmatpush1.msra.mxu0 %v1106
    %2307 = vmatprep.subr.mxu0 %v1104
    %2308 = vmatpush1.msra.mxu0 %v1103
    %2309 = vmatprep.subr.mxu0 %v1101
    %2310 = vmatpush1.msra.mxu0 %v1100
    %2311 = vmatprep.subr.mxu0 %v1098
    %2312 = vmatpush1.msra.mxu0 %v1097
    %2313 = vmatprep.subr.mxu0 %v1095
    %2314 = vmatpush1.msra.mxu0 %v1094
    %2315 = vmatprep.subr.mxu0 %v1092
    %2316 = vmatpush1.msra.mxu0 %v1091
    %2317 = vmatprep.subr.mxu0 %v1089
    %2318 = vmatpush1.msra.mxu0 %v1088
    %2319 = vmatprep.subr.mxu0 %v1086
    %2320 = vmatpush1.msra.mxu0 %v1085
    %2321 = vmatprep.subr.mxu0 %v1083
    %2322 = vmatpush1.msra.mxu0 %v1082
    %2323 = vmatprep.subr.mxu0 %v1080
    %2324 = vmatpush1.msra.mxu0 %v1079
    %2325 = vmatprep.subr.mxu0 %v1077
    %2326 = vmatpush1.msra.mxu0 %v1076
    %2327 = vmatprep.subr.mxu0 %v1074
    %2328 = vmatpush1.msra.mxu0 %v1073
    %2329 = vmatprep.subr.mxu0 0.0
    %2330 = vmatpush2.msra.mxu0 0.0
    %2331 = vmatprep.subr.mxu0 0.0
    %2332 = vmatpush2.msra.mxu0 0.0
    %2333 = vmatprep.subr.mxu0 0.0
    %2334 = vmatpush2.msra.mxu0 0.0
    %2335 = vmatprep.subr.mxu0 0.0
    %2336 = vmatpush2.msra.mxu0 0.0
    %2337 = vmatprep.subr.mxu0 0.0
    %2338 = vmatpush2.msra.mxu0 0.0
    %2339 = vmatprep.subr.mxu0 0.0
    %2340 = vmatpush2.msra.mxu0 0.0
    %2341 = vmatprep.subr.mxu0 0.0
    %2342 = vmatpush2.msra.mxu0 0.0
    %2343 = vmatprep.subr.mxu0 0.0
    %2344 = vmatpush2.msra.mxu0 0.0
    %2345 = vmatprep.subr.mxu0 0.0
    %2346 = vmatpush2.msra.mxu0 0.0
    %2347 = vmatprep.subr.mxu0 0.0
    %2348 = vmatpush2.msra.mxu0 0.0
    %2349 = vmatprep.subr.mxu0 0.0
    %2350 = vmatpush2.msra.mxu0 0.0
    %2351 = vmatprep.subr.mxu0 0.0
    %2352 = vmatpush2.msra.mxu0 0.0
    %2353 = vmatprep.subr.mxu0 0.0
    %2354 = vmatpush2.msra.mxu0 0.0
    %2355 = vmatprep.subr.mxu0 0.0
    %2356 = vmatpush2.msra.mxu0 0.0
    %2357 = vmatprep.subr.mxu0 0.0
    %2358 = vmatpush2.msra.mxu0 0.0
    %2359 = vmatprep.subr.mxu0 0.0
    %2360 = vmatpush2.msra.mxu0 0.0
    %2361 = vmatprep.mubr.f32.mxu0 0.0
    %2362 = vmatmul.mubr.f32.gmra.mxu0 %v2292
    %v2363 = vpop.f32.mrf.mxu0
    %v2364 = vadd.f32 %v1126, %v2363
    %v2365 = vpop.f32.mrf.mxu0
    %v2366 = vadd.f32 %v1130, %v2365
    %2367 = vdwg.mxu0
    %2368 = vmatprep.subr.mxu0 0.0
    %2369 = vmatpush1.msra.mxu0 %v1120
    %2370 = vmatprep.subr.mxu0 0.0
    %2371 = vmatpush1.msra.mxu0 %v1117
    %2372 = vmatprep.subr.mxu0 0.0
    %2373 = vmatpush1.msra.mxu0 %v1114
    %2374 = vmatprep.subr.mxu0 0.0
    %2375 = vmatpush1.msra.mxu0 %v1111
    %2376 = vmatprep.subr.mxu0 0.0
    %2377 = vmatpush1.msra.mxu0 %v1108
    %2378 = vmatprep.subr.mxu0 0.0
    %2379 = vmatpush1.msra.mxu0 %v1105
    %2380 = vmatprep.subr.mxu0 0.0
    %2381 = vmatpush1.msra.mxu0 %v1102
    %2382 = vmatprep.subr.mxu0 0.0
    %2383 = vmatpush1.msra.mxu0 %v1099
    %2384 = vmatprep.subr.mxu0 0.0
    %2385 = vmatpush1.msra.mxu0 %v1096
    %2386 = vmatprep.subr.mxu0 0.0
    %2387 = vmatpush1.msra.mxu0 %v1093
    %2388 = vmatprep.subr.mxu0 0.0
    %2389 = vmatpush1.msra.mxu0 %v1090
    %2390 = vmatprep.subr.mxu0 0.0
    %2391 = vmatpush1.msra.mxu0 %v1087
    %2392 = vmatprep.subr.mxu0 0.0
    %2393 = vmatpush1.msra.mxu0 %v1084
    %2394 = vmatprep.subr.mxu0 0.0
    %2395 = vmatpush1.msra.mxu0 %v1081
    %2396 = vmatprep.subr.mxu0 0.0
    %2397 = vmatpush1.msra.mxu0 %v1078
    %2398 = vmatprep.subr.mxu0 0.0
    %2399 = vmatpush1.msra.mxu0 %v1075
    %2400 = vmatprep.subr.mxu0 0.0
    %2401 = vmatpush2.msra.mxu0 0.0
    %2402 = vmatprep.subr.mxu0 0.0
    %2403 = vmatpush2.msra.mxu0 0.0
    %2404 = vmatprep.subr.mxu0 0.0
    %2405 = vmatpush2.msra.mxu0 0.0
    %2406 = vmatprep.subr.mxu0 0.0
    %2407 = vmatpush2.msra.mxu0 0.0
    %2408 = vmatprep.subr.mxu0 0.0
    %2409 = vmatpush2.msra.mxu0 0.0
    %2410 = vmatprep.subr.mxu0 0.0
    %2411 = vmatpush2.msra.mxu0 0.0
    %2412 = vmatprep.subr.mxu0 0.0
    %2413 = vmatpush2.msra.mxu0 0.0
    %2414 = vmatprep.subr.mxu0 0.0
    %2415 = vmatpush2.msra.mxu0 0.0
    %2416 = vmatprep.subr.mxu0 0.0
    %2417 = vmatpush2.msra.mxu0 0.0
    %2418 = vmatprep.subr.mxu0 0.0
    %2419 = vmatpush2.msra.mxu0 0.0
    %2420 = vmatprep.subr.mxu0 0.0
    %2421 = vmatpush2.msra.mxu0 0.0
    %2422 = vmatprep.subr.mxu0 0.0
    %2423 = vmatpush2.msra.mxu0 0.0
    %2424 = vmatprep.subr.mxu0 0.0
    %2425 = vmatpush2.msra.mxu0 0.0
    %2426 = vmatprep.subr.mxu0 0.0
    %2427 = vmatpush2.msra.mxu0 0.0
    %2428 = vmatprep.subr.mxu0 0.0
    %2429 = vmatpush2.msra.mxu0 0.0
    %2430 = vmatprep.subr.mxu0 0.0
    %2431 = vmatpush2.msra.mxu0 0.0
    %2432 = vmatprep.mubr.f32.mxu0 0.0
    %2433 = vmatmul.mubr.f32.gmra.mxu0 %v2292
    %v2434 = vpop.f32.mrf.mxu0
    %v2435 = vadd.f32 %v1134, %v2434
    %v2436 = vpop.f32.mrf.mxu0
    %2437 = vdwg.mxu0
    %v2438 = vadd.f32 %v2294, %v2364
    %v2439 = vxor.u32 %v2438, 2147483648
    %v2440 = vmul.f32 %v2439, 1.442695
    %v2441 = vpow.pop %v2440
    %v2442 = vadd.f32 %v2441, 1.0
    %v2443 = vrcp.pop %v2442
    %v2444 = vmul.f32 1.0, %v2443
    %v2445 = vadd.f32 %v2295, %v2366
    %v2446 = vxor.u32 %v2445, 2147483648
    %v2447 = vmul.f32 %v2446, 1.442695
    %v2448 = vpow.pop %v2447
    %v2449 = vadd.f32 %v2448, 1.0
    %v2450 = vrcp.pop %v2449
    %v2451 = vmul.f32 1.0, %v2450
    %v2452 = vmul.f32 %v2444, %v2435
    %v2453 = vadd.f32 %v2296, %v2452
    %v2454 = vtanh.pop %v2453
    %v2455 = vsub.f32 %v2292, %v2454
    %v2456 = vmul.f32 %v2451, %v2455
    %v2457 = vadd.f32 %v2454, %v2456
    %2458 = vst [vmem:[#allocation12 + $0x38] sm:$0xff] %v2457
    %2459 = vst [vmem:[#allocation13] sm:$0xff] %v2457
    %v2460 = vld [vmem:[#allocation12] sm:$0xff]
    %v2461 = vld [vmem:[#allocation12 + $0x8] sm:$0xff]
    %v2462 = vld [vmem:[#allocation12 + $0x10] sm:$0xff]
    %v2463 = vld [vmem:[#allocation12 + $0x18] sm:$0xff]
    %v2464 = vld [vmem:[#allocation12 + $0x20] sm:$0xff]
    %v2465 = vld [vmem:[#allocation12 + $0x28] sm:$0xff]
    %v2466 = vld [vmem:[#allocation12 + $0x30] sm:$0xff]
    %v2467 = vld [vmem:[#allocation12 + $0x38] sm:$0xff]
    %v2468 = vld [vmem:[%s16] sm:$0x1]
    %v2469 = vld [vmem:[%s17] sm:$0x1]
    %2470 = vadd.xlane.f32.xlu0 %v2460
    %v2471 = vpop.xlane.xlu0 %2470
    %2472 = vadd.xlane.f32.xlu0 %v2461
    %v2473 = vpop.xlane.xlu0 %2472
    %2474 = vadd.xlane.f32.xlu0 %v2462
    %v2475 = vpop.xlane.xlu0 %2474
    %2476 = vadd.xlane.f32.xlu0 %v2463
    %v2477 = vpop.xlane.xlu0 %2476
    %2478 = vadd.xlane.f32.xlu0 %v2464
    %v2479 = vpop.xlane.xlu0 %2478
    %2480 = vadd.xlane.f32.xlu0 %v2465
    %v2481 = vpop.xlane.xlu0 %2480
    %2482 = vadd.xlane.f32.xlu0 %v2466
    %v2483 = vpop.xlane.xlu0 %2482
    %2484 = vadd.xlane.f32.xlu0 %v2467
    %v2485 = vpop.xlane.xlu0 %2484
    %v2486 = vmul.f32 %v2471, %v157
    %v2487 = vmul.f32 %v2473, %v157
    %v2488 = vmul.f32 %v2475, %v157
    %v2489 = vmul.f32 %v2477, %v157
    %v2490 = vmul.f32 %v2479, %v157
    %v2491 = vmul.f32 %v2481, %v157
    %v2492 = vmul.f32 %v2483, %v157
    %v2493 = vmul.f32 %v2485, %v157
    %v2494 = vsub.f32 %v2460, %v2486
    %v2495 = vsub.f32 %v2461, %v2487
    %v2496 = vsub.f32 %v2462, %v2488
    %v2497 = vsub.f32 %v2463, %v2489
    %v2498 = vsub.f32 %v2464, %v2490
    %v2499 = vsub.f32 %v2465, %v2491
    %v2500 = vsub.f32 %v2466, %v2492
    %v2501 = vsub.f32 %v2467, %v2493
    %v2502 = vmul.f32 %v2494, %v2494
    %v2503 = vmul.f32 %v2495, %v2495
    %v2504 = vmul.f32 %v2496, %v2496
    %v2505 = vmul.f32 %v2497, %v2497
    %v2506 = vmul.f32 %v2498, %v2498
    %v2507 = vmul.f32 %v2499, %v2499
    %v2508 = vmul.f32 %v2500, %v2500
    %v2509 = vmul.f32 %v2501, %v2501
    %2510 = vadd.xlane.f32.xlu0 %v2502
    %v2511 = vpop.xlane.xlu0 %2510
    %2512 = vadd.xlane.f32.xlu0 %v2503
    %v2513 = vpop.xlane.xlu0 %2512
    %2514 = vadd.xlane.f32.xlu0 %v2504
    %v2515 = vpop.xlane.xlu0 %2514
    %2516 = vadd.xlane.f32.xlu0 %v2505
    %v2517 = vpop.xlane.xlu0 %2516
    %2518 = vadd.xlane.f32.xlu0 %v2506
    %v2519 = vpop.xlane.xlu0 %2518
    %2520 = vadd.xlane.f32.xlu0 %v2507
    %v2521 = vpop.xlane.xlu0 %2520
    %2522 = vadd.xlane.f32.xlu0 %v2508
    %v2523 = vpop.xlane.xlu0 %2522
    %2524 = vadd.xlane.f32.xlu0 %v2509
    %v2525 = vpop.xlane.xlu0 %2524
    %v2526 = vmul.f32 %v2511, %v157
    %v2527 = vmul.f32 %v2513, %v157
    %v2528 = vmul.f32 %v2515, %v157
    %v2529 = vmul.f32 %v2517, %v157
    %v2530 = vmul.f32 %v2519, %v157
    %v2531 = vmul.f32 %v2521, %v157
    %v2532 = vmul.f32 %v2523, %v157
    %v2533 = vmul.f32 %v2525, %v157
    %v2534 = vadd.f32 %v2526, 1e-05
    %v2535 = vadd.f32 %v2527, 1e-05
    %v2536 = vadd.f32 %v2528, 1e-05
    %v2537 = vadd.f32 %v2529, 1e-05
    %v2538 = vadd.f32 %v2530, 1e-05
    %v2539 = vadd.f32 %v2531, 1e-05
    %v2540 = vadd.f32 %v2532, 1e-05
    %v2541 = vadd.f32 %v2533, 1e-05
    %v2542 = vrsqrt.pop %v2534
    %v2543 = vrsqrt.pop %v2535
    %v2544 = vrsqrt.pop %v2536
    %v2545 = vrsqrt.pop %v2537
    %v2546 = vrsqrt.pop %v2538
    %v2547 = vrsqrt.pop %v2539
    %v2548 = vrsqrt.pop %v2540
    %v2549 = vrsqrt.pop %v2541
    %v2550 = vmul.f32 %v2494, %v2542
    %v2551 = vmul.f32 %v2495, %v2543
    %v2552 = vmul.f32 %v2496, %v2544
    %v2553 = vmul.f32 %v2497, %v2545
    %v2554 = vmul.f32 %v2498, %v2546
    %v2555 = vmul.f32 %v2499, %v2547
    %v2556 = vmul.f32 %v2500, %v2548
    %v2557 = vmul.f32 %v2501, %v2549
    %v2559 = vlaneseq
    %v2560 = vshrl.u32 %v2559, 7
    %v2561 = vsub.s32 0, %v2560
    %v2562 = vrot.slane %v2468, %v2561
    %v2564 = vmul.f32 %v2550, %v2562
    %v2565 = vmul.f32 %v2551, %v2562
    %v2566 = vmul.f32 %v2552, %v2562
    %v2567 = vmul.f32 %v2553, %v2562
    %v2568 = vmul.f32 %v2554, %v2562
    %v2569 = vmul.f32 %v2555, %v2562
    %v2570 = vmul.f32 %v2556, %v2562
    %v2571 = vmul.f32 %v2557, %v2562
    %v2573 = vlaneseq
    %v2574 = vshrl.u32 %v2573, 7
    %v2575 = vsub.s32 0, %v2574
    %v2576 = vrot.slane %v2469, %v2575
    %v2578 = vadd.f32 %v2564, %v2576
    %v2579 = vadd.f32 %v2565, %v2576
    %v2580 = vadd.f32 %v2566, %v2576
    %v2581 = vadd.f32 %v2567, %v2576
    %v2582 = vadd.f32 %v2568, %v2576
    %v2583 = vadd.f32 %v2569, %v2576
    %v2584 = vadd.f32 %v2570, %v2576
    %v2585 = vadd.f32 %v2571, %v2576
    %2586 = vst [vmem:[#allocation12] sm:$0xff] %v2578
    %2587 = vst [vmem:[#allocation12 + $0x8] sm:$0xff] %v2579
    %2588 = vst [vmem:[#allocation12 + $0x10] sm:$0xff] %v2580
    %2589 = vst [vmem:[#allocation12 + $0x18] sm:$0xff] %v2581
    %2590 = vst [vmem:[#allocation12 + $0x20] sm:$0xff] %v2582
    %2591 = vst [vmem:[#allocation12 + $0x28] sm:$0xff] %v2583
    %2592 = vst [vmem:[#allocation12 + $0x30] sm:$0xff] %v2584
    %2593 = vst [vmem:[#allocation12 + $0x38] sm:$0xff] %v2585
    // Predicated region
    $region94: #{a_call__.1} parent=1 // pred_check
      _
    $region95: #{a_call__.1} parent=1 // pred_check_branch
      %2595 = sbr.rel (0) target = $region97
    $region96: #{a_call__.1} parent=1 // pred_region
      %s2597 = ssub.s32 1024, 1024
      %2598 = vsyncadd [#allocation5], %s2597
      %s2599 = sshll.u32 [#allocation12], 4
      %s2600 = int_to_ptr.vmem [resolvable:$true] %s2599
      %2605 = dma.vmem_to_hbm [thread:$0]  %s2600, 1024, %s18, [#allocation5], 128, 128, 8
    $region97: #{a_call__.1} parent=1 // pred_fallthru
      _
    // Predicated region
    $region98: #{a_call__.1} parent=1 // pred_check
      _
    $region99: #{a_call__.1} parent=1 // pred_check_branch
      %2607 = sbr.rel (0) target = $region101
    $region100: #{a_call__.1} parent=1 // pred_region
      %s2609 = ssub.s32 128, 128
      %2610 = vsyncadd [#allocation14], %s2609
      %s2612 = sshll.u32 [#allocation13], 4
      %s2613 = int_to_ptr.vmem [resolvable:$true] %s2612
      %2615 = dma.vmem_to_hbm [thread:$0]  %s2613, 128, %s19, [#allocation14]
    $region101: #{a_call__.1} parent=1 // pred_fallthru
      _
    // Predicated region
    $region102: #{a_call__.1} parent=1 // pred_check
      _
    $region103: #{a_call__.1} parent=1 // pred_check_branch
      %2617 = sbr.rel (0) target = $region105
    $region104: #{a_call__.1} parent=1 // pred_region
      %2618 = dma.done [#allocation5], 1024
    $region105: #{a_call__.1} parent=1 // pred_fallthru
      _
    // Predicated region
    $region106: #{a_call__.1} parent=1 // pred_check
      _
    $region107: #{a_call__.1} parent=1 // pred_check_branch
      %2620 = sbr.rel (0) target = $region109
    $region108: #{a_call__.1} parent=1 // pred_region
      %2621 = dma.done [#allocation14], 128
    $region109: #{a_call__.1} parent=1 // pred_fallthru
      _
    %2622 = vsyncpa [#allocation4], 1
    %2623 = vsyncpa [#allocation7], 1
    %2624 = vsyncpa [#allocation10], 1
    %2625 = vsyncpa [#allocation5], 1
    %2626 = vsyncpa [#allocation14], 1

</llo_original>
